<compile_context>
chip_gen: v6e
topology: v6e:2x2x1
jax: 0.10.0
libtpu: 0.0.40
codegen_flags: <defaults>
</compile_context>

<pallas_src>
import jax
import jax.numpy as jnp
import numpy as np
from jax import lax
from jax.experimental import pallas as pl
from jax.experimental.pallas import tpu as pltpu

# ---------------- configuration (small, TPU-tile friendly) ----------------
B           = 2
C_IN        = 32                              # in_channels
HEADS       = 4
DIM_HEAD_KQ = 4                               # dim_head_kq
D           = 16                              # `dim` (axial spatial extent)
DIM_HEAD    = C_IN // HEADS                   # 8
DIM_HEAD_V  = DIM_HEAD                        # 8
QKV_CH      = DIM_HEAD_V + 2 * DIM_HEAD_KQ    # qkv_channels = 16
C_QKV       = HEADS * QKV_CH                  # conv output channels = 64
HKQ         = HEADS * DIM_HEAD_KQ             # 16
HDV         = HEADS * DIM_HEAD_V              # 32
LANES       = DIM_HEAD_V * D                  # 128  (lane-dense output width)
EPS         = 1e-5


# ------------------------------ fused kernel --------------------------------
def _axial_fused_kernel(x_ref, w_ref, sc_ref, sh_ref,
                        rqh_ref, rkh_ref, sdt_ref,
                        rvflat_ref, e8_ref, dmask_ref,
                        skv_ref, sout_ref, tadd_ref,
                        out_ref):
    """Whole AxialAttention forward in one kernel invocation (no grid).

    Output layout (lane dense):
        out_ref[b*HEADS + h, i*D + d] == result[b, h*DIM_HEAD_V + i, d]
    """
    w = w_ref[...]            # [C_QKV, C_IN]
    sc = sc_ref[...]          # [C_QKV, 1]
    sh = sh_ref[...]          # [C_QKV, 1]
    rqh = rqh_ref[...]        # [HKQ, D, D]   r_q pre-scaled by s_qr[h]
    rkh = rkh_ref[...]        # [HKQ, D, D]   r_k pre-scaled by s_kr[h]
    sdt = sdt_ref[...]        # [HKQ, 1]      s_dots[h] per row
    rvflat = rvflat_ref[...]  # [D, LANES]    rvflat[j, i*D+d] = r_v[i, d, j]
    e8 = e8_ref[...]          # [DIM_HEAD_V, LANES]   e8[i, i'*D+d] = (i == i')
    dmask = dmask_ref[...]    # [D, LANES]            dmask[d', i*D+d] = (d' == d)

    for b in range(B):
        # ---- to_qvk: 1x1 Conv1d (no bias) + eval BatchNorm1d, rows permuted h-major
        y = jnp.dot(w, x_ref[b], preferred_element_type=jnp.float32)   # [C_QKV, D]
        y = y * sc + sh
        q = y[:HKQ, :]                  # [HKQ, D]  rows = h*KQ + i
        k = y[HKQ:2 * HKQ, :]           # [HKQ, D]
        v = y[2 * HKQ:, :]              # [HDV, D]  rows = h*DV + i

        # ---- relative-position logits (attention_norm scales pre-folded; its
        #      shifts are constant along j and thus softmax-invariant -> dropped)
        qr = (q[:, :, None] * rqh).reshape(HEADS, DIM_HEAD_KQ, D, D).sum(axis=1)
        kr = (k[:, :, None] * rkh).reshape(HEADS, DIM_HEAD_KQ, D, D).sum(axis=1)
        kd = k * sdt
        dots = (q[:, :, None] * kd[:, None, :]).reshape(
            HEADS, DIM_HEAD_KQ, D, D).sum(axis=1)
        logits = qr + kr + dots                       # [HEADS, D, D] = (h, d, j)

        # ---- softmax over j ----
        m = jnp.max(logits, axis=-1, keepdims=True)
        e = jnp.exp(logits - m)
        attn = e / jnp.sum(e, axis=-1, keepdims=True)   # [HEADS, D, D]

        # ---- output path: produce each (b, h) row directly lane-dense (i*D + d) ----
        for h in range(HEADS):
            attn_h = attn[h]                                      # [D, D]  (d, j)
            v_h = v[h * DIM_HEAD_V:(h + 1) * DIM_HEAD_V, :]       # [DV, D] (i, j)
            # vexp[j, i*D + d] = v_h[i, j]   (column replication through the MXU)
            vexp = lax.dot_general(v_h, e8, (((0,), (0,)), ((), ())),
                                   preferred_element_type=jnp.float32)
            # outb[d', i*D + d] = sum_j attn_h[d', j] * v_h[i, j]
            outb = jnp.dot(attn_h, vexp, preferred_element_type=jnp.float32)
            # kvb [d', i*D + d] = sum_j attn_h[d', j] * r_v[i, d, j]
            kvb = jnp.dot(attn_h, rvflat, preferred_element_type=jnp.float32)
            # out_norm (eval BN) scales, then keep only the d' == d "diagonal" rows.
            comb = skv_ref[h] * kvb + sout_ref[h] * outb          # [D, LANES]
            row = jnp.sum(comb * dmask, axis=0, keepdims=True) + tadd_ref[h]
            out_ref[pl.ds(b * HEADS + h, 1), :] = row             # [1, LANES]


# ------------------------------ wrapper -------------------------------------
def axial_attention_forward(x, prep):
    (w_p, sc, sh, rqh, rkh, sdt, rvflat, e8, dmask, skv, sout, tadd) = prep
    vmem = pl.BlockSpec(memory_space=pltpu.MemorySpace.VMEM)
    out8 = pl.pallas_call(
        _axial_fused_kernel,
        out_shape=jax.ShapeDtypeStruct((B * HEADS, LANES), jnp.float32),
        in_specs=[vmem] * 13,
        out_specs=vmem,
    )(x, w_p, sc, sh, rqh, rkh, sdt, rvflat, e8, dmask, skv, sout, tadd)
    # (b*H + h, i*D + d)  ->  (b, h*DV + i, d)   (row-major, so a plain reshape)
    return out8.reshape(B, C_IN, D)


axial_attention = jax.jit(axial_attention_forward)


# ------------------- parameter preparation (outside the hot path) -----------
def prepare_params(params):
    """Fold all parameter-only work (channel permutation, BN folding, relative
    position gather, constant packing matrices) out of the per-call path."""
    (w_qkv, qkv_scale, qkv_shift, relative,
     attn_scale, attn_shift, out_scale, out_shift) = params

    # Conv output channel o = qi*HEADS + h  ('b (q h) d -> b h q d').  Permute rows
    # so the projection directly emits [q | k | v] blocks, h-major inside each.
    perm = np.empty(C_QKV, dtype=np.int32)
    for h in range(HEADS):
        for i in range(DIM_HEAD_KQ):
            perm[h * DIM_HEAD_KQ + i] = i * HEADS + h
            perm[HKQ + h * DIM_HEAD_KQ + i] = (DIM_HEAD_KQ + i) * HEADS + h
        for i in range(DIM_HEAD_V):
            perm[2 * HKQ + h * DIM_HEAD_V + i] = (2 * DIM_HEAD_KQ + i) * HEADS + h
    perm = jnp.asarray(perm)

    w_p = w_qkv[perm]                                   # [C_QKV, C_IN]
    sc = qkv_scale[perm].reshape(C_QKV, 1)
    sh = qkv_shift[perm].reshape(C_QKV, 1)

    # Relative2DPosEncQKV: gather + split (parameter-only, hoisted out of forward).
    rel_idx = (np.arange(D)[:, None] - np.arange(D)[None, :] + D - 1).reshape(-1)
    r_all = jnp.take(relative, jnp.asarray(rel_idx), axis=1).reshape(QKV_CH, D, D)
    r_q = r_all[:DIM_HEAD_KQ]                           # [KQ, D, D]
    r_k = r_all[DIM_HEAD_KQ:2 * DIM_HEAD_KQ]
    r_v = r_all[2 * DIM_HEAD_KQ:]                       # [DV, D, D]

    # attention_norm (eval BN, channel = h*3 + {qr, kr, dots}): fold scales into
    # the relative tables / a per-row column.  (Shifts are softmax-invariant.)
    a_sc = attn_scale.reshape(HEADS, 3)
    rqh = (a_sc[:, 0][:, None, None, None] * r_q[None]).reshape(HKQ, D, D)
    rkh = (a_sc[:, 1][:, None, None, None] * r_k[None]).reshape(HKQ, D, D)
    sdt = jnp.repeat(a_sc[:, 2], DIM_HEAD_KQ).reshape(HKQ, 1)

    # Constant matrices that let the kernel emit lane-dense (i*D + d) rows:
    rvflat = jnp.transpose(r_v, (2, 0, 1)).reshape(D, LANES)         # [j, i*D+d]
    e8 = jnp.asarray(np.repeat(np.eye(DIM_HEAD_V, dtype=np.float32), D, axis=1))
    dmask = jnp.asarray(np.tile(np.eye(D, dtype=np.float32), (1, DIM_HEAD_V)))

    # out_norm (eval BN): channel = n*(H*DV) + h*DV + i  (n=0 -> kv, n=1 -> out),
    # broadcast to per-(h) lane rows of width DV*D.
    s_kv = out_scale[:HDV].reshape(HEADS, DIM_HEAD_V)
    s_out = out_scale[HDV:].reshape(HEADS, DIM_HEAD_V)
    t_sum = (out_shift[:HDV] + out_shift[HDV:]).reshape(HEADS, DIM_HEAD_V)
    skv = jnp.repeat(s_kv, D, axis=1).reshape(HEADS, 1, LANES)
    sout = jnp.repeat(s_out, D, axis=1).reshape(HEADS, 1, LANES)
    tadd = jnp.repeat(t_sum, D, axis=1).reshape(HEADS, 1, LANES)

    return (w_p, sc, sh, rqh, rkh, sdt, rvflat, e8, dmask, skv, sout, tadd)


# ------------------------- deterministic parameter init ---------------------
def init_params(key):
    ks = jax.random.split(key, 14)

    def bn(kg, kb, km, kvv, n):
        gamma = 1.0 + 0.1 * jax.random.normal(kg, (n,), jnp.float32)
        beta = 0.1 * jax.random.normal(kb, (n,), jnp.float32)
        mean = 0.1 * jax.random.normal(km, (n,), jnp.float32)
        var = 1.0 + 0.5 * jax.random.uniform(kvv, (n,), jnp.float32)
        scale = gamma / jnp.sqrt(var + EPS)
        shift = beta - mean * scale
        return scale, shift

    w_qkv = jax.random.normal(ks[0], (C_QKV, C_IN), jnp.float32) / np.sqrt(C_IN)
    relative = jax.random.normal(ks[1], (QKV_CH, 2 * D - 1), jnp.float32)
    qkv_scale, qkv_shift = bn(ks[2], ks[3], ks[4], ks[5], C_QKV)
    attn_scale, attn_shift = bn(ks[6], ks[7], ks[8], ks[9], 3 * HEADS)
    out_scale, out_shift = bn(ks[10], ks[11], ks[12], ks[13], 2 * HEADS * DIM_HEAD_V)
    return (w_qkv, qkv_scale, qkv_shift, relative,
            attn_scale, attn_shift, out_scale, out_shift)


# ------------------------------ pure-JAX reference --------------------------
def reference_forward(x, params):
    (w_qkv, qkv_scale, qkv_shift, relative,
     attn_scale, attn_shift, out_scale, out_shift) = params
    hp = jax.lax.Precision.HIGHEST

    qkv = jnp.einsum('oc,bcd->bod', w_qkv, x, precision=hp)
    qkv = qkv * qkv_scale[None, :, None] + qkv_shift[None, :, None]
    qkv = qkv.reshape(B, QKV_CH, HEADS, D).transpose(0, 2, 1, 3)
    q = qkv[:, :, :DIM_HEAD_KQ]
    k = qkv[:, :, DIM_HEAD_KQ:2 * DIM_HEAD_KQ]
    v = qkv[:, :, 2 * DIM_HEAD_KQ:]

    rel_idx = (jnp.arange(D)[:, None] - jnp.arange(D)[None, :] + D - 1).reshape(-1)
    r_all = jnp.take(relative, rel_idx, axis=1).reshape(QKV_CH, D, D)
    r_q = r_all[:DIM_HEAD_KQ]
    r_k = r_all[DIM_HEAD_KQ:2 * DIM_HEAD_KQ]
    r_v = r_all[2 * DIM_HEAD_KQ:]

    qr = jnp.einsum('bhid,idj->bhdj', q, r_q, precision=hp)
    kr = jnp.einsum('bhid,idj->bhdj', k, r_k, precision=hp)
    dots = jnp.einsum('bhid,bhij->bhdj', q, k, precision=hp)

    asc = attn_scale.reshape(HEADS, 3)
    ash = attn_shift.reshape(HEADS, 3)
    logits = (qr * asc[None, :, 0, None, None] + ash[None, :, 0, None, None]
              + kr * asc[None, :, 1, None, None] + ash[None, :, 1, None, None]
              + dots * asc[None, :, 2, None, None] + ash[None, :, 2, None, None])
    attn = jax.nn.softmax(logits, axis=-1)

    out = jnp.einsum('bhdj,bhij->bhid', attn, v, precision=hp)
    kv = jnp.einsum('bhdj,idj->bhid', attn, r_v, precision=hp)

    osc = out_scale.reshape(2, HEADS, DIM_HEAD_V)
    osh = out_shift.reshape(2, HEADS, DIM_HEAD_V)
    kvn = kv * osc[0][None, :, :, None] + osh[0][None, :, :, None]
    outn = out * osc[1][None, :, :, None] + osh[1][None, :, :, None]
    return (kvn + outn).reshape(B, C_IN, D)


# ------------------------------------ main -----------------------------------
if __name__ == "__main__":
    root = jax.random.PRNGKey(0)
    kx, kp = jax.random.split(root)
    x = jax.random.normal(kx, (B, C_IN, D), jnp.float32)
    params = init_params(kp)
    prep = prepare_params(params)

    out = jax.block_until_ready(axial_attention(x, prep))
    ref = jax.block_until_ready(reference_forward(x, params))

    assert out.shape == (B, C_IN, D)
    np.testing.assert_allclose(np.asarray(out), np.asarray(ref), rtol=5e-2, atol=5e-2)
    print("KERNEL_OK")
</pallas_src>

<mosaic_0001>
module attributes {stable_mosaic.version = 11 : i64} {
  func.func @_axial_fused_kernel(%arg0: memref<2x32x16xf32, #tpu.memory_space<vmem>>, %arg1: memref<64x32xf32, #tpu.memory_space<vmem>>, %arg2: memref<64x1xf32, #tpu.memory_space<vmem>>, %arg3: memref<64x1xf32, #tpu.memory_space<vmem>>, %arg4: memref<16x16x16xf32, #tpu.memory_space<vmem>>, %arg5: memref<16x16x16xf32, #tpu.memory_space<vmem>>, %arg6: memref<16x1xf32, #tpu.memory_space<vmem>>, %arg7: memref<16x128xf32, #tpu.memory_space<vmem>>, %arg8: memref<8x128xf32, #tpu.memory_space<vmem>>, %arg9: memref<16x128xf32, #tpu.memory_space<vmem>>, %arg10: memref<4x1x128xf32, #tpu.memory_space<vmem>>, %arg11: memref<4x1x128xf32, #tpu.memory_space<vmem>>, %arg12: memref<4x1x128xf32, #tpu.memory_space<vmem>>, %arg13: memref<8x128xf32, #tpu.memory_space<vmem>>) attributes {dimension_semantics = [], scalar_prefetch = 0 : i64, scratch_operands = 0 : i64, tpu.core_type = #tpu.core_type<tc>} {
    %c0 = arith.constant 0 : index
    %c0_0 = arith.constant 0 : index
    %0 = vector.load %arg1[%c0, %c0_0] : memref<64x32xf32, #tpu.memory_space<vmem>>, vector<64x32xf32>
    %c0_1 = arith.constant 0 : index
    %c0_2 = arith.constant 0 : index
    %1 = vector.load %arg2[%c0_1, %c0_2] : memref<64x1xf32, #tpu.memory_space<vmem>>, vector<64x1xf32>
    %c0_3 = arith.constant 0 : index
    %c0_4 = arith.constant 0 : index
    %2 = vector.load %arg3[%c0_3, %c0_4] : memref<64x1xf32, #tpu.memory_space<vmem>>, vector<64x1xf32>
    %c0_5 = arith.constant 0 : index
    %c0_6 = arith.constant 0 : index
    %c0_7 = arith.constant 0 : index
    %3 = vector.load %arg4[%c0_5, %c0_6, %c0_7] : memref<16x16x16xf32, #tpu.memory_space<vmem>>, vector<16x16x16xf32>
    %c0_8 = arith.constant 0 : index
    %c0_9 = arith.constant 0 : index
    %c0_10 = arith.constant 0 : index
    %4 = vector.load %arg5[%c0_8, %c0_9, %c0_10] : memref<16x16x16xf32, #tpu.memory_space<vmem>>, vector<16x16x16xf32>
    %c0_11 = arith.constant 0 : index
    %c0_12 = arith.constant 0 : index
    %5 = vector.load %arg6[%c0_11, %c0_12] : memref<16x1xf32, #tpu.memory_space<vmem>>, vector<16x1xf32>
    %c0_13 = arith.constant 0 : index
    %c0_14 = arith.constant 0 : index
    %6 = vector.load %arg7[%c0_13, %c0_14] : memref<16x128xf32, #tpu.memory_space<vmem>>, vector<16x128xf32>
    %c0_15 = arith.constant 0 : index
    %c0_16 = arith.constant 0 : index
    %7 = vector.load %arg8[%c0_15, %c0_16] : memref<8x128xf32, #tpu.memory_space<vmem>>, vector<8x128xf32>
    %c0_17 = arith.constant 0 : index
    %c0_18 = arith.constant 0 : index
    %8 = vector.load %arg9[%c0_17, %c0_18] : memref<16x128xf32, #tpu.memory_space<vmem>>, vector<16x128xf32>
    %c0_19 = arith.constant 0 : index
    %c0_20 = arith.constant 0 : index
    %c0_21 = arith.constant 0 : index
    %9 = vector.load %arg0[%c0_19, %c0_20, %c0_21] : memref<2x32x16xf32, #tpu.memory_space<vmem>>, vector<1x32x16xf32>
    %10 = vector.shape_cast %9 : vector<1x32x16xf32> to vector<32x16xf32>
    %cst = arith.constant dense<0.000000e+00> : vector<64x16xf32>
    %11 = tpu.matmul %0, %10, %cst {dimension_numbers = #tpu.dot_dimension_numbers<[1], [0], [0], [1], [0, 0, 1, 1], [], []>} : vector<64x32xf32>, vector<32x16xf32>, vector<64x16xf32> -> vector<64x16xf32>
    %12 = vector.broadcast %1 : vector<64x1xf32> to vector<64x16xf32>
    %13 = arith.mulf %11, %12 : vector<64x16xf32>
    %14 = vector.broadcast %2 : vector<64x1xf32> to vector<64x16xf32>
    %15 = arith.addf %13, %14 : vector<64x16xf32>
    %16 = vector.extract_strided_slice %15 {offsets = [0, 0], sizes = [16, 16], strides = [1, 1]} : vector<64x16xf32> to vector<16x16xf32>
    %17 = vector.extract_strided_slice %15 {offsets = [16, 0], sizes = [16, 16], strides = [1, 1]} : vector<64x16xf32> to vector<16x16xf32>
    %18 = vector.extract_strided_slice %15 {offsets = [32, 0], sizes = [32, 16], strides = [1, 1]} : vector<64x16xf32> to vector<32x16xf32>
    %19 = vector.shape_cast %16 : vector<16x16xf32> to vector<16x16x1xf32>
    %20 = vector.broadcast %19 : vector<16x16x1xf32> to vector<16x16x16xf32>
    %21 = arith.mulf %20, %3 : vector<16x16x16xf32>
    %22 = vector.shape_cast %21 : vector<16x16x16xf32> to vector<4x4x16x16xf32>
    %cst_22 = arith.constant dense<0.000000e+00> : vector<4x16x16xf32>
    %23 = vector.multi_reduction <add>, %22, %cst_22 [1] : vector<4x4x16x16xf32> to vector<4x16x16xf32>
    %24 = vector.shape_cast %17 : vector<16x16xf32> to vector<16x16x1xf32>
    %25 = vector.broadcast %24 : vector<16x16x1xf32> to vector<16x16x16xf32>
    %26 = arith.mulf %25, %4 : vector<16x16x16xf32>
    %27 = vector.shape_cast %26 : vector<16x16x16xf32> to vector<4x4x16x16xf32>
    %cst_23 = arith.constant dense<0.000000e+00> : vector<4x16x16xf32>
    %28 = vector.multi_reduction <add>, %27, %cst_23 [1] : vector<4x4x16x16xf32> to vector<4x16x16xf32>
    %29 = vector.broadcast %5 : vector<16x1xf32> to vector<16x16xf32>
    %30 = arith.mulf %17, %29 : vector<16x16xf32>
    %31 = vector.shape_cast %16 : vector<16x16xf32> to vector<16x16x1xf32>
    %32 = vector.shape_cast %30 : vector<16x16xf32> to vector<16x1x16xf32>
    %33 = vector.broadcast %31 : vector<16x16x1xf32> to vector<16x16x16xf32>
    %34 = vector.broadcast %32 : vector<16x1x16xf32> to vector<16x16x16xf32>
    %35 = arith.mulf %33, %34 : vector<16x16x16xf32>
    %36 = vector.shape_cast %35 : vector<16x16x16xf32> to vector<4x4x16x16xf32>
    %cst_24 = arith.constant dense<0.000000e+00> : vector<4x16x16xf32>
    %37 = vector.multi_reduction <add>, %36, %cst_24 [1] : vector<4x4x16x16xf32> to vector<4x16x16xf32>
    %38 = arith.addf %23, %28 : vector<4x16x16xf32>
    %39 = arith.addf %38, %37 : vector<4x16x16xf32>
    %cst_25 = arith.constant dense<0xFF800000> : vector<4x16xf32>
    %40 = vector.multi_reduction <maximumf>, %39, %cst_25 [2] : vector<4x16x16xf32> to vector<4x16xf32>
    %41 = vector.shape_cast %40 : vector<4x16xf32> to vector<4x16x1xf32>
    %42 = vector.broadcast %41 : vector<4x16x1xf32> to vector<4x16x16xf32>
    %43 = arith.subf %39, %42 : vector<4x16x16xf32>
    %44 = math.exp %43 : vector<4x16x16xf32>
    %cst_26 = arith.constant dense<0.000000e+00> : vector<4x16xf32>
    %45 = vector.multi_reduction <add>, %44, %cst_26 [2] : vector<4x16x16xf32> to vector<4x16xf32>
    %46 = vector.shape_cast %45 : vector<4x16xf32> to vector<4x16x1xf32>
    %47 = vector.broadcast %46 : vector<4x16x1xf32> to vector<4x16x16xf32>
    %48 = arith.divf %44, %47 : vector<4x16x16xf32>
    %49 = vector.extract_strided_slice %48 {offsets = [0, 0, 0], sizes = [1, 16, 16], strides = [1, 1, 1]} : vector<4x16x16xf32> to vector<1x16x16xf32>
    %50 = vector.shape_cast %49 : vector<1x16x16xf32> to vector<16x16xf32>
    %51 = vector.extract_strided_slice %18 {offsets = [0, 0], sizes = [8, 16], strides = [1, 1]} : vector<32x16xf32> to vector<8x16xf32>
    %cst_27 = arith.constant dense<0.000000e+00> : vector<16x128xf32>
    %52 = tpu.matmul %51, %7, %cst_27 {dimension_numbers = #tpu.dot_dimension_numbers<[0], [0], [1], [1], [0, 1, 1, 1], [], []>} : vector<8x16xf32>, vector<8x128xf32>, vector<16x128xf32> -> vector<16x128xf32>
    %cst_28 = arith.constant dense<0.000000e+00> : vector<16x128xf32>
    %53 = tpu.matmul %50, %52, %cst_28 {dimension_numbers = #tpu.dot_dimension_numbers<[1], [0], [0], [1], [0, 0, 1, 1], [], []>} : vector<16x16xf32>, vector<16x128xf32>, vector<16x128xf32> -> vector<16x128xf32>
    %cst_29 = arith.constant dense<0.000000e+00> : vector<16x128xf32>
    %54 = tpu.matmul %50, %6, %cst_29 {dimension_numbers = #tpu.dot_dimension_numbers<[1], [0], [0], [1], [0, 0, 1, 1], [], []>} : vector<16x16xf32>, vector<16x128xf32>, vector<16x128xf32> -> vector<16x128xf32>
    %c0_30 = arith.constant 0 : index
    %c0_31 = arith.constant 0 : index
    %c0_32 = arith.constant 0 : index
    %55 = vector.load %arg10[%c0_30, %c0_31, %c0_32] : memref<4x1x128xf32, #tpu.memory_space<vmem>>, vector<1x1x128xf32>
    %56 = vector.shape_cast %55 : vector<1x1x128xf32> to vector<1x128xf32>
    %57 = vector.broadcast %56 : vector<1x128xf32> to vector<16x128xf32>
    %58 = arith.mulf %57, %54 : vector<16x128xf32>
    %c0_33 = arith.constant 0 : index
    %c0_34 = arith.constant 0 : index
    %c0_35 = arith.constant 0 : index
    %59 = vector.load %arg11[%c0_33, %c0_34, %c0_35] : memref<4x1x128xf32, #tpu.memory_space<vmem>>, vector<1x1x128xf32>
    %60 = vector.shape_cast %59 : vector<1x1x128xf32> to vector<1x128xf32>
    %61 = vector.broadcast %60 : vector<1x128xf32> to vector<16x128xf32>
    %62 = arith.mulf %61, %53 : vector<16x128xf32>
    %63 = arith.addf %58, %62 : vector<16x128xf32>
    %64 = arith.mulf %63, %8 : vector<16x128xf32>
    %cst_36 = arith.constant dense<0.000000e+00> : vector<128xf32>
    %65 = vector.multi_reduction <add>, %64, %cst_36 [0] : vector<16x128xf32> to vector<128xf32>
    %66 = vector.shape_cast %65 : vector<128xf32> to vector<1x128xf32>
    %c0_37 = arith.constant 0 : index
    %c0_38 = arith.constant 0 : index
    %c0_39 = arith.constant 0 : index
    %67 = vector.load %arg12[%c0_37, %c0_38, %c0_39] : memref<4x1x128xf32, #tpu.memory_space<vmem>>, vector<1x1x128xf32>
    %68 = vector.shape_cast %67 : vector<1x1x128xf32> to vector<1x128xf32>
    %69 = arith.addf %66, %68 : vector<1x128xf32>
    %c0_40 = arith.constant 0 : index
    %c0_41 = arith.constant 0 : index
    %70 = vector.load %arg13[%c0_40, %c0_41] : memref<8x128xf32, #tpu.memory_space<vmem>>, vector<1x128xf32>
    tpu.vector_store %arg13[%c0_40, %c0_41], %69 {strides = array<i32>} : memref<8x128xf32, #tpu.memory_space<vmem>>, vector<1x128xf32>,
    %71 = vector.extract_strided_slice %48 {offsets = [1, 0, 0], sizes = [1, 16, 16], strides = [1, 1, 1]} : vector<4x16x16xf32> to vector<1x16x16xf32>
    %72 = vector.shape_cast %71 : vector<1x16x16xf32> to vector<16x16xf32>
    %73 = vector.extract_strided_slice %18 {offsets = [8, 0], sizes = [8, 16], strides = [1, 1]} : vector<32x16xf32> to vector<8x16xf32>
    %cst_42 = arith.constant dense<0.000000e+00> : vector<16x128xf32>
    %74 = tpu.matmul %73, %7, %cst_42 {dimension_numbers = #tpu.dot_dimension_numbers<[0], [0], [1], [1], [0, 1, 1, 1], [], []>} : vector<8x16xf32>, vector<8x128xf32>, vector<16x128xf32> -> vector<16x128xf32>
    %cst_43 = arith.constant dense<0.000000e+00> : vector<16x128xf32>
    %75 = tpu.matmul %72, %74, %cst_43 {dimension_numbers = #tpu.dot_dimension_numbers<[1], [0], [0], [1], [0, 0, 1, 1], [], []>} : vector<16x16xf32>, vector<16x128xf32>, vector<16x128xf32> -> vector<16x128xf32>
    %cst_44 = arith.constant dense<0.000000e+00> : vector<16x128xf32>
    %76 = tpu.matmul %72, %6, %cst_44 {dimension_numbers = #tpu.dot_dimension_numbers<[1], [0], [0], [1], [0, 0, 1, 1], [], []>} : vector<16x16xf32>, vector<16x128xf32>, vector<16x128xf32> -> vector<16x128xf32>
    %c1 = arith.constant 1 : index
    %c0_45 = arith.constant 0 : index
    %c0_46 = arith.constant 0 : index
    %77 = vector.load %arg10[%c1, %c0_45, %c0_46] : memref<4x1x128xf32, #tpu.memory_space<vmem>>, vector<1x1x128xf32>
    %78 = vector.shape_cast %77 : vector<1x1x128xf32> to vector<1x128xf32>
    %79 = vector.broadcast %78 : vector<1x128xf32> to vector<16x128xf32>
    %80 = arith.mulf %79, %76 : vector<16x128xf32>
    %c1_47 = arith.constant 1 : index
    %c0_48 = arith.constant 0 : index
    %c0_49 = arith.constant 0 : index
    %81 = vector.load %arg11[%c1_47, %c0_48, %c0_49] : memref<4x1x128xf32, #tpu.memory_space<vmem>>, vector<1x1x128xf32>
    %82 = vector.shape_cast %81 : vector<1x1x128xf32> to vector<1x128xf32>
    %83 = vector.broadcast %82 : vector<1x128xf32> to vector<16x128xf32>
    %84 = arith.mulf %83, %75 : vector<16x128xf32>
    %85 = arith.addf %80, %84 : vector<16x128xf32>
    %86 = arith.mulf %85, %8 : vector<16x128xf32>
    %cst_50 = arith.constant dense<0.000000e+00> : vector<128xf32>
    %87 = vector.multi_reduction <add>, %86, %cst_50 [0] : vector<16x128xf32> to vector<128xf32>
    %88 = vector.shape_cast %87 : vector<128xf32> to vector<1x128xf32>
    %c1_51 = arith.constant 1 : index
    %c0_52 = arith.constant 0 : index
    %c0_53 = arith.constant 0 : index
    %89 = vector.load %arg12[%c1_51, %c0_52, %c0_53] : memref<4x1x128xf32, #tpu.memory_space<vmem>>, vector<1x1x128xf32>
    %90 = vector.shape_cast %89 : vector<1x1x128xf32> to vector<1x128xf32>
    %91 = arith.addf %88, %90 : vector<1x128xf32>
    %c1_54 = arith.constant 1 : index
    %c0_55 = arith.constant 0 : index
    %92 = vector.load %arg13[%c1_54, %c0_55] : memref<8x128xf32, #tpu.memory_space<vmem>>, vector<1x128xf32>
    tpu.vector_store %arg13[%c1_54, %c0_55], %91 {strides = array<i32>} : memref<8x128xf32, #tpu.memory_space<vmem>>, vector<1x128xf32>,
    %93 = vector.extract_strided_slice %48 {offsets = [2, 0, 0], sizes = [1, 16, 16], strides = [1, 1, 1]} : vector<4x16x16xf32> to vector<1x16x16xf32>
    %94 = vector.shape_cast %93 : vector<1x16x16xf32> to vector<16x16xf32>
    %95 = vector.extract_strided_slice %18 {offsets = [16, 0], sizes = [8, 16], strides = [1, 1]} : vector<32x16xf32> to vector<8x16xf32>
    %cst_56 = arith.constant dense<0.000000e+00> : vector<16x128xf32>
    %96 = tpu.matmul %95, %7, %cst_56 {dimension_numbers = #tpu.dot_dimension_numbers<[0], [0], [1], [1], [0, 1, 1, 1], [], []>} : vector<8x16xf32>, vector<8x128xf32>, vector<16x128xf32> -> vector<16x128xf32>
    %cst_57 = arith.constant dense<0.000000e+00> : vector<16x128xf32>
    %97 = tpu.matmul %94, %96, %cst_57 {dimension_numbers = #tpu.dot_dimension_numbers<[1], [0], [0], [1], [0, 0, 1, 1], [], []>} : vector<16x16xf32>, vector<16x128xf32>, vector<16x128xf32> -> vector<16x128xf32>
    %cst_58 = arith.constant dense<0.000000e+00> : vector<16x128xf32>
    %98 = tpu.matmul %94, %6, %cst_58 {dimension_numbers = #tpu.dot_dimension_numbers<[1], [0], [0], [1], [0, 0, 1, 1], [], []>} : vector<16x16xf32>, vector<16x128xf32>, vector<16x128xf32> -> vector<16x128xf32>
    %c2 = arith.constant 2 : index
    %c0_59 = arith.constant 0 : index
    %c0_60 = arith.constant 0 : index
    %99 = vector.load %arg10[%c2, %c0_59, %c0_60] : memref<4x1x128xf32, #tpu.memory_space<vmem>>, vector<1x1x128xf32>
    %100 = vector.shape_cast %99 : vector<1x1x128xf32> to vector<1x128xf32>
    %101 = vector.broadcast %100 : vector<1x128xf32> to vector<16x128xf32>
    %102 = arith.mulf %101, %98 : vector<16x128xf32>
    %c2_61 = arith.constant 2 : index
    %c0_62 = arith.constant 0 : index
    %c0_63 = arith.constant 0 : index
    %103 = vector.load %arg11[%c2_61, %c0_62, %c0_63] : memref<4x1x128xf32, #tpu.memory_space<vmem>>, vector<1x1x128xf32>
    %104 = vector.shape_cast %103 : vector<1x1x128xf32> to vector<1x128xf32>
    %105 = vector.broadcast %104 : vector<1x128xf32> to vector<16x128xf32>
    %106 = arith.mulf %105, %97 : vector<16x128xf32>
    %107 = arith.addf %102, %106 : vector<16x128xf32>
    %108 = arith.mulf %107, %8 : vector<16x128xf32>
    %cst_64 = arith.constant dense<0.000000e+00> : vector<128xf32>
    %109 = vector.multi_reduction <add>, %108, %cst_64 [0] : vector<16x128xf32> to vector<128xf32>
    %110 = vector.shape_cast %109 : vector<128xf32> to vector<1x128xf32>
    %c2_65 = arith.constant 2 : index
    %c0_66 = arith.constant 0 : index
    %c0_67 = arith.constant 0 : index
    %111 = vector.load %arg12[%c2_65, %c0_66, %c0_67] : memref<4x1x128xf32, #tpu.memory_space<vmem>>, vector<1x1x128xf32>
    %112 = vector.shape_cast %111 : vector<1x1x128xf32> to vector<1x128xf32>
    %113 = arith.addf %110, %112 : vector<1x128xf32>
    %c2_68 = arith.constant 2 : index
    %c0_69 = arith.constant 0 : index
    %114 = vector.load %arg13[%c2_68, %c0_69] : memref<8x128xf32, #tpu.memory_space<vmem>>, vector<1x128xf32>
    tpu.vector_store %arg13[%c2_68, %c0_69], %113 {strides = array<i32>} : memref<8x128xf32, #tpu.memory_space<vmem>>, vector<1x128xf32>,
    %115 = vector.extract_strided_slice %48 {offsets = [3, 0, 0], sizes = [1, 16, 16], strides = [1, 1, 1]} : vector<4x16x16xf32> to vector<1x16x16xf32>
    %116 = vector.shape_cast %115 : vector<1x16x16xf32> to vector<16x16xf32>
    %117 = vector.extract_strided_slice %18 {offsets = [24, 0], sizes = [8, 16], strides = [1, 1]} : vector<32x16xf32> to vector<8x16xf32>
    %cst_70 = arith.constant dense<0.000000e+00> : vector<16x128xf32>
    %118 = tpu.matmul %117, %7, %cst_70 {dimension_numbers = #tpu.dot_dimension_numbers<[0], [0], [1], [1], [0, 1, 1, 1], [], []>} : vector<8x16xf32>, vector<8x128xf32>, vector<16x128xf32> -> vector<16x128xf32>
    %cst_71 = arith.constant dense<0.000000e+00> : vector<16x128xf32>
    %119 = tpu.matmul %116, %118, %cst_71 {dimension_numbers = #tpu.dot_dimension_numbers<[1], [0], [0], [1], [0, 0, 1, 1], [], []>} : vector<16x16xf32>, vector<16x128xf32>, vector<16x128xf32> -> vector<16x128xf32>
    %cst_72 = arith.constant dense<0.000000e+00> : vector<16x128xf32>
    %120 = tpu.matmul %116, %6, %cst_72 {dimension_numbers = #tpu.dot_dimension_numbers<[1], [0], [0], [1], [0, 0, 1, 1], [], []>} : vector<16x16xf32>, vector<16x128xf32>, vector<16x128xf32> -> vector<16x128xf32>
    %c3 = arith.constant 3 : index
    %c0_73 = arith.constant 0 : index
    %c0_74 = arith.constant 0 : index
    %121 = vector.load %arg10[%c3, %c0_73, %c0_74] : memref<4x1x128xf32, #tpu.memory_space<vmem>>, vector<1x1x128xf32>
    %122 = vector.shape_cast %121 : vector<1x1x128xf32> to vector<1x128xf32>
    %123 = vector.broadcast %122 : vector<1x128xf32> to vector<16x128xf32>
    %124 = arith.mulf %123, %120 : vector<16x128xf32>
    %c3_75 = arith.constant 3 : index
    %c0_76 = arith.constant 0 : index
    %c0_77 = arith.constant 0 : index
    %125 = vector.load %arg11[%c3_75, %c0_76, %c0_77] : memref<4x1x128xf32, #tpu.memory_space<vmem>>, vector<1x1x128xf32>
    %126 = vector.shape_cast %125 : vector<1x1x128xf32> to vector<1x128xf32>
    %127 = vector.broadcast %126 : vector<1x128xf32> to vector<16x128xf32>
    %128 = arith.mulf %127, %119 : vector<16x128xf32>
    %129 = arith.addf %124, %128 : vector<16x128xf32>
    %130 = arith.mulf %129, %8 : vector<16x128xf32>
    %cst_78 = arith.constant dense<0.000000e+00> : vector<128xf32>
    %131 = vector.multi_reduction <add>, %130, %cst_78 [0] : vector<16x128xf32> to vector<128xf32>
    %132 = vector.shape_cast %131 : vector<128xf32> to vector<1x128xf32>
    %c3_79 = arith.constant 3 : index
    %c0_80 = arith.constant 0 : index
    %c0_81 = arith.constant 0 : index
    %133 = vector.load %arg12[%c3_79, %c0_80, %c0_81] : memref<4x1x128xf32, #tpu.memory_space<vmem>>, vector<1x1x128xf32>
    %134 = vector.shape_cast %133 : vector<1x1x128xf32> to vector<1x128xf32>
    %135 = arith.addf %132, %134 : vector<1x128xf32>
    %c3_82 = arith.constant 3 : index
    %c0_83 = arith.constant 0 : index
    %136 = vector.load %arg13[%c3_82, %c0_83] : memref<8x128xf32, #tpu.memory_space<vmem>>, vector<1x128xf32>
    tpu.vector_store %arg13[%c3_82, %c0_83], %135 {strides = array<i32>} : memref<8x128xf32, #tpu.memory_space<vmem>>, vector<1x128xf32>,
    %c1_84 = arith.constant 1 : index
    %c0_85 = arith.constant 0 : index
    %c0_86 = arith.constant 0 : index
    %137 = vector.load %arg0[%c1_84, %c0_85, %c0_86] : memref<2x32x16xf32, #tpu.memory_space<vmem>>, vector<1x32x16xf32>
    %138 = vector.shape_cast %137 : vector<1x32x16xf32> to vector<32x16xf32>
    %cst_87 = arith.constant dense<0.000000e+00> : vector<64x16xf32>
    %139 = tpu.matmul %0, %138, %cst_87 {dimension_numbers = #tpu.dot_dimension_numbers<[1], [0], [0], [1], [0, 0, 1, 1], [], []>} : vector<64x32xf32>, vector<32x16xf32>, vector<64x16xf32> -> vector<64x16xf32>
    %140 = vector.broadcast %1 : vector<64x1xf32> to vector<64x16xf32>
    %141 = arith.mulf %139, %140 : vector<64x16xf32>
    %142 = vector.broadcast %2 : vector<64x1xf32> to vector<64x16xf32>
    %143 = arith.addf %141, %142 : vector<64x16xf32>
    %144 = vector.extract_strided_slice %143 {offsets = [0, 0], sizes = [16, 16], strides = [1, 1]} : vector<64x16xf32> to vector<16x16xf32>
    %145 = vector.extract_strided_slice %143 {offsets = [16, 0], sizes = [16, 16], strides = [1, 1]} : vector<64x16xf32> to vector<16x16xf32>
    %146 = vector.extract_strided_slice %143 {offsets = [32, 0], sizes = [32, 16], strides = [1, 1]} : vector<64x16xf32> to vector<32x16xf32>
    %147 = vector.shape_cast %144 : vector<16x16xf32> to vector<16x16x1xf32>
    %148 = vector.broadcast %147 : vector<16x16x1xf32> to vector<16x16x16xf32>
    %149 = arith.mulf %148, %3 : vector<16x16x16xf32>
    %150 = vector.shape_cast %149 : vector<16x16x16xf32> to vector<4x4x16x16xf32>
    %cst_88 = arith.constant dense<0.000000e+00> : vector<4x16x16xf32>
    %151 = vector.multi_reduction <add>, %150, %cst_88 [1] : vector<4x4x16x16xf32> to vector<4x16x16xf32>
    %152 = vector.shape_cast %145 : vector<16x16xf32> to vector<16x16x1xf32>
    %153 = vector.broadcast %152 : vector<16x16x1xf32> to vector<16x16x16xf32>
    %154 = arith.mulf %153, %4 : vector<16x16x16xf32>
    %155 = vector.shape_cast %154 : vector<16x16x16xf32> to vector<4x4x16x16xf32>
    %cst_89 = arith.constant dense<0.000000e+00> : vector<4x16x16xf32>
    %156 = vector.multi_reduction <add>, %155, %cst_89 [1] : vector<4x4x16x16xf32> to vector<4x16x16xf32>
    %157 = vector.broadcast %5 : vector<16x1xf32> to vector<16x16xf32>
    %158 = arith.mulf %145, %157 : vector<16x16xf32>
    %159 = vector.shape_cast %144 : vector<16x16xf32> to vector<16x16x1xf32>
    %160 = vector.shape_cast %158 : vector<16x16xf32> to vector<16x1x16xf32>
    %161 = vector.broadcast %159 : vector<16x16x1xf32> to vector<16x16x16xf32>
    %162 = vector.broadcast %160 : vector<16x1x16xf32> to vector<16x16x16xf32>
    %163 = arith.mulf %161, %162 : vector<16x16x16xf32>
    %164 = vector.shape_cast %163 : vector<16x16x16xf32> to vector<4x4x16x16xf32>
    %cst_90 = arith.constant dense<0.000000e+00> : vector<4x16x16xf32>
    %165 = vector.multi_reduction <add>, %164, %cst_90 [1] : vector<4x4x16x16xf32> to vector<4x16x16xf32>
    %166 = arith.addf %151, %156 : vector<4x16x16xf32>
    %167 = arith.addf %166, %165 : vector<4x16x16xf32>
    %cst_91 = arith.constant dense<0xFF800000> : vector<4x16xf32>
    %168 = vector.multi_reduction <maximumf>, %167, %cst_91 [2] : vector<4x16x16xf32> to vector<4x16xf32>
    %169 = vector.shape_cast %168 : vector<4x16xf32> to vector<4x16x1xf32>
    %170 = vector.broadcast %169 : vector<4x16x1xf32> to vector<4x16x16xf32>
    %171 = arith.subf %167, %170 : vector<4x16x16xf32>
    %172 = math.exp %171 : vector<4x16x16xf32>
    %cst_92 = arith.constant dense<0.000000e+00> : vector<4x16xf32>
    %173 = vector.multi_reduction <add>, %172, %cst_92 [2] : vector<4x16x16xf32> to vector<4x16xf32>
    %174 = vector.shape_cast %173 : vector<4x16xf32> to vector<4x16x1xf32>
    %175 = vector.broadcast %174 : vector<4x16x1xf32> to vector<4x16x16xf32>
    %176 = arith.divf %172, %175 : vector<4x16x16xf32>
    %177 = vector.extract_strided_slice %176 {offsets = [0, 0, 0], sizes = [1, 16, 16], strides = [1, 1, 1]} : vector<4x16x16xf32> to vector<1x16x16xf32>
    %178 = vector.shape_cast %177 : vector<1x16x16xf32> to vector<16x16xf32>
    %179 = vector.extract_strided_slice %146 {offsets = [0, 0], sizes = [8, 16], strides = [1, 1]} : vector<32x16xf32> to vector<8x16xf32>
    %cst_93 = arith.constant dense<0.000000e+00> : vector<16x128xf32>
    %180 = tpu.matmul %179, %7, %cst_93 {dimension_numbers = #tpu.dot_dimension_numbers<[0], [0], [1], [1], [0, 1, 1, 1], [], []>} : vector<8x16xf32>, vector<8x128xf32>, vector<16x128xf32> -> vector<16x128xf32>
    %cst_94 = arith.constant dense<0.000000e+00> : vector<16x128xf32>
    %181 = tpu.matmul %178, %180, %cst_94 {dimension_numbers = #tpu.dot_dimension_numbers<[1], [0], [0], [1], [0, 0, 1, 1], [], []>} : vector<16x16xf32>, vector<16x128xf32>, vector<16x128xf32> -> vector<16x128xf32>
    %cst_95 = arith.constant dense<0.000000e+00> : vector<16x128xf32>
    %182 = tpu.matmul %178, %6, %cst_95 {dimension_numbers = #tpu.dot_dimension_numbers<[1], [0], [0], [1], [0, 0, 1, 1], [], []>} : vector<16x16xf32>, vector<16x128xf32>, vector<16x128xf32> -> vector<16x128xf32>
    %c0_96 = arith.constant 0 : index
    %c0_97 = arith.constant 0 : index
    %c0_98 = arith.constant 0 : index
    %183 = vector.load %arg10[%c0_96, %c0_97, %c0_98] : memref<4x1x128xf32, #tpu.memory_space<vmem>>, vector<1x1x128xf32>
    %184 = vector.shape_cast %183 : vector<1x1x128xf32> to vector<1x128xf32>
    %185 = vector.broadcast %184 : vector<1x128xf32> to vector<16x128xf32>
    %186 = arith.mulf %185, %182 : vector<16x128xf32>
    %c0_99 = arith.constant 0 : index
    %c0_100 = arith.constant 0 : index
    %c0_101 = arith.constant 0 : index
    %187 = vector.load %arg11[%c0_99, %c0_100, %c0_101] : memref<4x1x128xf32, #tpu.memory_space<vmem>>, vector<1x1x128xf32>
    %188 = vector.shape_cast %187 : vector<1x1x128xf32> to vector<1x128xf32>
    %189 = vector.broadcast %188 : vector<1x128xf32> to vector<16x128xf32>
    %190 = arith.mulf %189, %181 : vector<16x128xf32>
    %191 = arith.addf %186, %190 : vector<16x128xf32>
    %192 = arith.mulf %191, %8 : vector<16x128xf32>
    %cst_102 = arith.constant dense<0.000000e+00> : vector<128xf32>
    %193 = vector.multi_reduction <add>, %192, %cst_102 [0] : vector<16x128xf32> to vector<128xf32>
    %194 = vector.shape_cast %193 : vector<128xf32> to vector<1x128xf32>
    %c0_103 = arith.constant 0 : index
    %c0_104 = arith.constant 0 : index
    %c0_105 = arith.constant 0 : index
    %195 = vector.load %arg12[%c0_103, %c0_104, %c0_105] : memref<4x1x128xf32, #tpu.memory_space<vmem>>, vector<1x1x128xf32>
    %196 = vector.shape_cast %195 : vector<1x1x128xf32> to vector<1x128xf32>
    %197 = arith.addf %194, %196 : vector<1x128xf32>
    %c4 = arith.constant 4 : index
    %c0_106 = arith.constant 0 : index
    %198 = vector.load %arg13[%c4, %c0_106] : memref<8x128xf32, #tpu.memory_space<vmem>>, vector<1x128xf32>
    tpu.vector_store %arg13[%c4, %c0_106], %197 {strides = array<i32>} : memref<8x128xf32, #tpu.memory_space<vmem>>, vector<1x128xf32>,
    %199 = vector.extract_strided_slice %176 {offsets = [1, 0, 0], sizes = [1, 16, 16], strides = [1, 1, 1]} : vector<4x16x16xf32> to vector<1x16x16xf32>
    %200 = vector.shape_cast %199 : vector<1x16x16xf32> to vector<16x16xf32>
    %201 = vector.extract_strided_slice %146 {offsets = [8, 0], sizes = [8, 16], strides = [1, 1]} : vector<32x16xf32> to vector<8x16xf32>
    %cst_107 = arith.constant dense<0.000000e+00> : vector<16x128xf32>
    %202 = tpu.matmul %201, %7, %cst_107 {dimension_numbers = #tpu.dot_dimension_numbers<[0], [0], [1], [1], [0, 1, 1, 1], [], []>} : vector<8x16xf32>, vector<8x128xf32>, vector<16x128xf32> -> vector<16x128xf32>
    %cst_108 = arith.constant dense<0.000000e+00> : vector<16x128xf32>
    %203 = tpu.matmul %200, %202, %cst_108 {dimension_numbers = #tpu.dot_dimension_numbers<[1], [0], [0], [1], [0, 0, 1, 1], [], []>} : vector<16x16xf32>, vector<16x128xf32>, vector<16x128xf32> -> vector<16x128xf32>
    %cst_109 = arith.constant dense<0.000000e+00> : vector<16x128xf32>
    %204 = tpu.matmul %200, %6, %cst_109 {dimension_numbers = #tpu.dot_dimension_numbers<[1], [0], [0], [1], [0, 0, 1, 1], [], []>} : vector<16x16xf32>, vector<16x128xf32>, vector<16x128xf32> -> vector<16x128xf32>
    %c1_110 = arith.constant 1 : index
    %c0_111 = arith.constant 0 : index
    %c0_112 = arith.constant 0 : index
    %205 = vector.load %arg10[%c1_110, %c0_111, %c0_112] : memref<4x1x128xf32, #tpu.memory_space<vmem>>, vector<1x1x128xf32>
    %206 = vector.shape_cast %205 : vector<1x1x128xf32> to vector<1x128xf32>
    %207 = vector.broadcast %206 : vector<1x128xf32> to vector<16x128xf32>
    %208 = arith.mulf %207, %204 : vector<16x128xf32>
    %c1_113 = arith.constant 1 : index
    %c0_114 = arith.constant 0 : index
    %c0_115 = arith.constant 0 : index
    %209 = vector.load %arg11[%c1_113, %c0_114, %c0_115] : memref<4x1x128xf32, #tpu.memory_space<vmem>>, vector<1x1x128xf32>
    %210 = vector.shape_cast %209 : vector<1x1x128xf32> to vector<1x128xf32>
    %211 = vector.broadcast %210 : vector<1x128xf32> to vector<16x128xf32>
    %212 = arith.mulf %211, %203 : vector<16x128xf32>
    %213 = arith.addf %208, %212 : vector<16x128xf32>
    %214 = arith.mulf %213, %8 : vector<16x128xf32>
    %cst_116 = arith.constant dense<0.000000e+00> : vector<128xf32>
    %215 = vector.multi_reduction <add>, %214, %cst_116 [0] : vector<16x128xf32> to vector<128xf32>
    %216 = vector.shape_cast %215 : vector<128xf32> to vector<1x128xf32>
    %c1_117 = arith.constant 1 : index
    %c0_118 = arith.constant 0 : index
    %c0_119 = arith.constant 0 : index
    %217 = vector.load %arg12[%c1_117, %c0_118, %c0_119] : memref<4x1x128xf32, #tpu.memory_space<vmem>>, vector<1x1x128xf32>
    %218 = vector.shape_cast %217 : vector<1x1x128xf32> to vector<1x128xf32>
    %219 = arith.addf %216, %218 : vector<1x128xf32>
    %c5 = arith.constant 5 : index
    %c0_120 = arith.constant 0 : index
    %220 = vector.load %arg13[%c5, %c0_120] : memref<8x128xf32, #tpu.memory_space<vmem>>, vector<1x128xf32>
    tpu.vector_store %arg13[%c5, %c0_120], %219 {strides = array<i32>} : memref<8x128xf32, #tpu.memory_space<vmem>>, vector<1x128xf32>,
    %221 = vector.extract_strided_slice %176 {offsets = [2, 0, 0], sizes = [1, 16, 16], strides = [1, 1, 1]} : vector<4x16x16xf32> to vector<1x16x16xf32>
    %222 = vector.shape_cast %221 : vector<1x16x16xf32> to vector<16x16xf32>
    %223 = vector.extract_strided_slice %146 {offsets = [16, 0], sizes = [8, 16], strides = [1, 1]} : vector<32x16xf32> to vector<8x16xf32>
    %cst_121 = arith.constant dense<0.000000e+00> : vector<16x128xf32>
    %224 = tpu.matmul %223, %7, %cst_121 {dimension_numbers = #tpu.dot_dimension_numbers<[0], [0], [1], [1], [0, 1, 1, 1], [], []>} : vector<8x16xf32>, vector<8x128xf32>, vector<16x128xf32> -> vector<16x128xf32>
    %cst_122 = arith.constant dense<0.000000e+00> : vector<16x128xf32>
    %225 = tpu.matmul %222, %224, %cst_122 {dimension_numbers = #tpu.dot_dimension_numbers<[1], [0], [0], [1], [0, 0, 1, 1], [], []>} : vector<16x16xf32>, vector<16x128xf32>, vector<16x128xf32> -> vector<16x128xf32>
    %cst_123 = arith.constant dense<0.000000e+00> : vector<16x128xf32>
    %226 = tpu.matmul %222, %6, %cst_123 {dimension_numbers = #tpu.dot_dimension_numbers<[1], [0], [0], [1], [0, 0, 1, 1], [], []>} : vector<16x16xf32>, vector<16x128xf32>, vector<16x128xf32> -> vector<16x128xf32>
    %c2_124 = arith.constant 2 : index
    %c0_125 = arith.constant 0 : index
    %c0_126 = arith.constant 0 : index
    %227 = vector.load %arg10[%c2_124, %c0_125, %c0_126] : memref<4x1x128xf32, #tpu.memory_space<vmem>>, vector<1x1x128xf32>
    %228 = vector.shape_cast %227 : vector<1x1x128xf32> to vector<1x128xf32>
    %229 = vector.broadcast %228 : vector<1x128xf32> to vector<16x128xf32>
    %230 = arith.mulf %229, %226 : vector<16x128xf32>
    %c2_127 = arith.constant 2 : index
    %c0_128 = arith.constant 0 : index
    %c0_129 = arith.constant 0 : index
    %231 = vector.load %arg11[%c2_127, %c0_128, %c0_129] : memref<4x1x128xf32, #tpu.memory_space<vmem>>, vector<1x1x128xf32>
    %232 = vector.shape_cast %231 : vector<1x1x128xf32> to vector<1x128xf32>
    %233 = vector.broadcast %232 : vector<1x128xf32> to vector<16x128xf32>
    %234 = arith.mulf %233, %225 : vector<16x128xf32>
    %235 = arith.addf %230, %234 : vector<16x128xf32>
    %236 = arith.mulf %235, %8 : vector<16x128xf32>
    %cst_130 = arith.constant dense<0.000000e+00> : vector<128xf32>
    %237 = vector.multi_reduction <add>, %236, %cst_130 [0] : vector<16x128xf32> to vector<128xf32>
    %238 = vector.shape_cast %237 : vector<128xf32> to vector<1x128xf32>
    %c2_131 = arith.constant 2 : index
    %c0_132 = arith.constant 0 : index
    %c0_133 = arith.constant 0 : index
    %239 = vector.load %arg12[%c2_131, %c0_132, %c0_133] : memref<4x1x128xf32, #tpu.memory_space<vmem>>, vector<1x1x128xf32>
    %240 = vector.shape_cast %239 : vector<1x1x128xf32> to vector<1x128xf32>
    %241 = arith.addf %238, %240 : vector<1x128xf32>
    %c6 = arith.constant 6 : index
    %c0_134 = arith.constant 0 : index
    %242 = vector.load %arg13[%c6, %c0_134] : memref<8x128xf32, #tpu.memory_space<vmem>>, vector<1x128xf32>
    tpu.vector_store %arg13[%c6, %c0_134], %241 {strides = array<i32>} : memref<8x128xf32, #tpu.memory_space<vmem>>, vector<1x128xf32>,
    %243 = vector.extract_strided_slice %176 {offsets = [3, 0, 0], sizes = [1, 16, 16], strides = [1, 1, 1]} : vector<4x16x16xf32> to vector<1x16x16xf32>
    %244 = vector.shape_cast %243 : vector<1x16x16xf32> to vector<16x16xf32>
    %245 = vector.extract_strided_slice %146 {offsets = [24, 0], sizes = [8, 16], strides = [1, 1]} : vector<32x16xf32> to vector<8x16xf32>
    %cst_135 = arith.constant dense<0.000000e+00> : vector<16x128xf32>
    %246 = tpu.matmul %245, %7, %cst_135 {dimension_numbers = #tpu.dot_dimension_numbers<[0], [0], [1], [1], [0, 1, 1, 1], [], []>} : vector<8x16xf32>, vector<8x128xf32>, vector<16x128xf32> -> vector<16x128xf32>
    %cst_136 = arith.constant dense<0.000000e+00> : vector<16x128xf32>
    %247 = tpu.matmul %244, %246, %cst_136 {dimension_numbers = #tpu.dot_dimension_numbers<[1], [0], [0], [1], [0, 0, 1, 1], [], []>} : vector<16x16xf32>, vector<16x128xf32>, vector<16x128xf32> -> vector<16x128xf32>
    %cst_137 = arith.constant dense<0.000000e+00> : vector<16x128xf32>
    %248 = tpu.matmul %244, %6, %cst_137 {dimension_numbers = #tpu.dot_dimension_numbers<[1], [0], [0], [1], [0, 0, 1, 1], [], []>} : vector<16x16xf32>, vector<16x128xf32>, vector<16x128xf32> -> vector<16x128xf32>
    %c3_138 = arith.constant 3 : index
    %c0_139 = arith.constant 0 : index
    %c0_140 = arith.constant 0 : index
    %249 = vector.load %arg10[%c3_138, %c0_139, %c0_140] : memref<4x1x128xf32, #tpu.memory_space<vmem>>, vector<1x1x128xf32>
    %250 = vector.shape_cast %249 : vector<1x1x128xf32> to vector<1x128xf32>
    %251 = vector.broadcast %250 : vector<1x128xf32> to vector<16x128xf32>
    %252 = arith.mulf %251, %248 : vector<16x128xf32>
    %c3_141 = arith.constant 3 : index
    %c0_142 = arith.constant 0 : index
    %c0_143 = arith.constant 0 : index
    %253 = vector.load %arg11[%c3_141, %c0_142, %c0_143] : memref<4x1x128xf32, #tpu.memory_space<vmem>>, vector<1x1x128xf32>
    %254 = vector.shape_cast %253 : vector<1x1x128xf32> to vector<1x128xf32>
    %255 = vector.broadcast %254 : vector<1x128xf32> to vector<16x128xf32>
    %256 = arith.mulf %255, %247 : vector<16x128xf32>
    %257 = arith.addf %252, %256 : vector<16x128xf32>
    %258 = arith.mulf %257, %8 : vector<16x128xf32>
    %cst_144 = arith.constant dense<0.000000e+00> : vector<128xf32>
    %259 = vector.multi_reduction <add>, %258, %cst_144 [0] : vector<16x128xf32> to vector<128xf32>
    %260 = vector.shape_cast %259 : vector<128xf32> to vector<1x128xf32>
    %c3_145 = arith.constant 3 : index
    %c0_146 = arith.constant 0 : index
    %c0_147 = arith.constant 0 : index
    %261 = vector.load %arg12[%c3_145, %c0_146, %c0_147] : memref<4x1x128xf32, #tpu.memory_space<vmem>>, vector<1x1x128xf32>
    %262 = vector.shape_cast %261 : vector<1x1x128xf32> to vector<1x128xf32>
    %263 = arith.addf %260, %262 : vector<1x128xf32>
    %c7 = arith.constant 7 : index
    %c0_148 = arith.constant 0 : index
    %264 = vector.load %arg13[%c7, %c0_148] : memref<8x128xf32, #tpu.memory_space<vmem>>, vector<1x128xf32>
    tpu.vector_store %arg13[%c7, %c0_148], %263 {strides = array<i32>} : memref<8x128xf32, #tpu.memory_space<vmem>>, vector<1x128xf32>,
    return
  }
}

</mosaic_0001>

<llo_original>
// kernel: axial_attention_forward.1
$region0: #{axial_attention_forward.1}
  #allocation0 [shape = 'u32[]', space=smem, size = 0x4, offset = 0x4, fixed_abs, tag = 'smem constant byte address 0x4 - core index']
  #allocation1 [shape = 'u32[144,128]{1,0:T(1,128)}', space=vmem, size = 0x12000, scoped, tag = 'internal scratch']
  %s0 = inlined_call_operand.vmem [shape: f32[2,32,16], index: 0, kind: input, shape index: {}]
  %s1 = inlined_call_operand.vmem [shape: f32[64,32], index: 1, kind: input, shape index: {}]
  %s2 = inlined_call_operand.vmem [shape: f32[64,1], index: 2, kind: input, shape index: {}]
  %s3 = inlined_call_operand.vmem [shape: f32[64,1], index: 3, kind: input, shape index: {}]
  %s4 = inlined_call_operand.vmem [shape: f32[16,16,16], index: 4, kind: input, shape index: {}]
  %s5 = inlined_call_operand.hbm [shape: f32[16,16,16], index: 5, kind: input, shape index: {}]
  %s6 = inlined_call_operand.vmem [shape: f32[16,1], index: 6, kind: input, shape index: {}]
  %s7 = inlined_call_operand.vmem [shape: f32[16,128], index: 7, kind: input, shape index: {}]
  %s8 = inlined_call_operand.vmem [shape: f32[8,128], index: 8, kind: input, shape index: {}]
  %s9 = inlined_call_operand.vmem [shape: f32[16,128], index: 9, kind: input, shape index: {}]
  %s10 = inlined_call_operand.vmem [shape: f32[4,1,128], index: 10, kind: input, shape index: {}]
  %s11 = inlined_call_operand.vmem [shape: f32[4,1,128], index: 11, kind: input, shape index: {}]
  %s12 = inlined_call_operand.vmem [shape: f32[4,1,128], index: 12, kind: input, shape index: {}]
  %s13 = inlined_call_operand.vmem [shape: f32[8,128], index: 13, kind: output, shape index: {}]
  %s14 = sld [smem:[#allocation0]]
  $region66: #{axial_attention_forward.1} parent=0
    _
  %s16 = ssub.s32 1, %s14
  %s17 = scalar_select 0, %s16, %s14
  $region1: #{axial_attention_forward.1} parent=0
    #allocation2 [shape = 'u8[131072]{0}', space=vmem, size = 0x20000, scoped, tag = 'input window, operand 5, single buffered']
    #allocation3 [shape = 's32[1]{0}', space=sflag, size = 0x4, scoped, tag = 'scoped memory for axial_attention_forward.1']
    %18 = vsyncpa [#allocation3], 0
    // Predicated region
    $region2: #{axial_attention_forward.1} parent=1 // pred_check
      _
    $region3: #{axial_attention_forward.1} parent=1 // pred_check_branch
      %20 = sbr.rel (0) target = $region5
    $region4: #{axial_attention_forward.1} parent=1 // pred_region
      _
    $region5: #{axial_attention_forward.1} parent=1 // pred_fallthru
      _
    // Predicated region
    $region6: #{axial_attention_forward.1} parent=1 // pred_check
      _
    $region7: #{axial_attention_forward.1} parent=1 // pred_check_branch
      %22 = sbr.rel (0) target = $region9
    $region8: #{axial_attention_forward.1} parent=1 // pred_region
      _
    $region9: #{axial_attention_forward.1} parent=1 // pred_fallthru
      _
    // Predicated region
    $region10: #{axial_attention_forward.1} parent=1 // pred_check
      _
    $region11: #{axial_attention_forward.1} parent=1 // pred_check_branch
      %24 = sbr.rel (0) target = $region13
    $region12: #{axial_attention_forward.1} parent=1 // pred_region
      _
    $region13: #{axial_attention_forward.1} parent=1 // pred_fallthru
      _
    // Predicated region
    $region14: #{axial_attention_forward.1} parent=1 // pred_check
      _
    $region15: #{axial_attention_forward.1} parent=1 // pred_check_branch
      %26 = sbr.rel (0) target = $region17
    $region16: #{axial_attention_forward.1} parent=1 // pred_region
      _
    $region17: #{axial_attention_forward.1} parent=1 // pred_fallthru
      _
    // Predicated region
    $region18: #{axial_attention_forward.1} parent=1 // pred_check
      _
    $region19: #{axial_attention_forward.1} parent=1 // pred_check_branch
      %28 = sbr.rel (0) target = $region21
    $region20: #{axial_attention_forward.1} parent=1 // pred_region
      _
    $region21: #{axial_attention_forward.1} parent=1 // pred_fallthru
      _
    // Predicated region
    $region22: #{axial_attention_forward.1} parent=1 // pred_check
      _
    $region23: #{axial_attention_forward.1} parent=1 // pred_check_branch
      %30 = sbr.rel (0) target = $region25
    $region24: #{axial_attention_forward.1} parent=1 // pred_region
      %s32 = ssub.s32 4096, 4096
      %33 = vsyncadd [#allocation3], %s32
      %s34 = sshll.u32 [#allocation2], 4
      %s35 = int_to_ptr.vmem [resolvable:$true] %s34
      %40 = dma.hbm_to_vmem [thread:$0]  %s5, 4096, %s35, [#allocation3], 128, 128, 8
    $region25: #{axial_attention_forward.1} parent=1 // pred_fallthru
      _
    // Predicated region
    $region26: #{axial_attention_forward.1} parent=1 // pred_check
      _
    $region27: #{axial_attention_forward.1} parent=1 // pred_check_branch
      %42 = sbr.rel (0) target = $region29
    $region28: #{axial_attention_forward.1} parent=1 // pred_region
      _
    $region29: #{axial_attention_forward.1} parent=1 // pred_fallthru
      _
    // Predicated region
    $region30: #{axial_attention_forward.1} parent=1 // pred_check
      _
    $region31: #{axial_attention_forward.1} parent=1 // pred_check_branch
      %44 = sbr.rel (0) target = $region33
    $region32: #{axial_attention_forward.1} parent=1 // pred_region
      _
    $region33: #{axial_attention_forward.1} parent=1 // pred_fallthru
      _
    // Predicated region
    $region34: #{axial_attention_forward.1} parent=1 // pred_check
      _
    $region35: #{axial_attention_forward.1} parent=1 // pred_check_branch
      %46 = sbr.rel (0) target = $region37
    $region36: #{axial_attention_forward.1} parent=1 // pred_region
      _
    $region37: #{axial_attention_forward.1} parent=1 // pred_fallthru
      _
    // Predicated region
    $region38: #{axial_attention_forward.1} parent=1 // pred_check
      _
    $region39: #{axial_attention_forward.1} parent=1 // pred_check_branch
      %48 = sbr.rel (0) target = $region41
    $region40: #{axial_attention_forward.1} parent=1 // pred_region
      _
    $region41: #{axial_attention_forward.1} parent=1 // pred_fallthru
      _
    // Predicated region
    $region42: #{axial_attention_forward.1} parent=1 // pred_check
      _
    $region43: #{axial_attention_forward.1} parent=1 // pred_check_branch
      %50 = sbr.rel (0) target = $region45
    $region44: #{axial_attention_forward.1} parent=1 // pred_region
      _
    $region45: #{axial_attention_forward.1} parent=1 // pred_fallthru
      _
    // Predicated region
    $region46: #{axial_attention_forward.1} parent=1 // pred_check
      _
    $region47: #{axial_attention_forward.1} parent=1 // pred_check_branch
      %52 = sbr.rel (0) target = $region49
    $region48: #{axial_attention_forward.1} parent=1 // pred_region
      _
    $region49: #{axial_attention_forward.1} parent=1 // pred_fallthru
      _
    // Predicated region
    $region50: #{axial_attention_forward.1} parent=1 // pred_check
      _
    $region51: #{axial_attention_forward.1} parent=1 // pred_check_branch
      %54 = sbr.rel (0) target = $region53
    $region52: #{axial_attention_forward.1} parent=1 // pred_region
      _
    $region53: #{axial_attention_forward.1} parent=1 // pred_fallthru
      _
    // Predicated region
    $region54: #{axial_attention_forward.1} parent=1 // pred_check
      _
    $region55: #{axial_attention_forward.1} parent=1 // pred_check_branch
      %56 = sbr.rel (0) target = $region57
    $region56: #{axial_attention_forward.1} parent=1 // pred_region
      %57 = dma.done [#allocation3], 4096
    $region57: #{axial_attention_forward.1} parent=1 // pred_fallthru
      _
    %v58 = vld [vmem:[%s1] sm:$0xff]
    %v59 = vld [vmem:[%s1 + $0x8] sm:$0xff]
    %v60 = vld [vmem:[%s1 + $0x10] sm:$0xff]
    %v61 = vld [vmem:[%s1 + $0x18] sm:$0xff]
    %v62 = vld [vmem:[%s1 + $0x20] sm:$0xff]
    %v63 = vld [vmem:[%s1 + $0x28] sm:$0xff]
    %v64 = vld [vmem:[%s1 + $0x30] sm:$0xff]
    %v65 = vld [vmem:[%s1 + $0x38] sm:$0xff]
    %v66 = vld [vmem:[%s2] sm:$0xff]
    %v67 = vld [vmem:[%s2 + $0x8] sm:$0xff]
    %v68 = vld [vmem:[%s2 + $0x10] sm:$0xff]
    %v69 = vld [vmem:[%s2 + $0x18] sm:$0xff]
    %v70 = vld [vmem:[%s2 + $0x20] sm:$0xff]
    %v71 = vld [vmem:[%s2 + $0x28] sm:$0xff]
    %v72 = vld [vmem:[%s2 + $0x30] sm:$0xff]
    %v73 = vld [vmem:[%s2 + $0x38] sm:$0xff]
    %v74 = vld [vmem:[%s3] sm:$0xff]
    %v75 = vld [vmem:[%s3 + $0x8] sm:$0xff]
    %v76 = vld [vmem:[%s3 + $0x10] sm:$0xff]
    %v77 = vld [vmem:[%s3 + $0x18] sm:$0xff]
    %v78 = vld [vmem:[%s3 + $0x20] sm:$0xff]
    %v79 = vld [vmem:[%s3 + $0x28] sm:$0xff]
    %v80 = vld [vmem:[%s3 + $0x30] sm:$0xff]
    %v81 = vld [vmem:[%s3 + $0x38] sm:$0xff]
    %v82 = vld [vmem:[%s4] sm:$0xff]
    %v83 = vld [vmem:[%s4 + $0x8] sm:$0xff]
    %v84 = vld [vmem:[%s4 + $0x10] sm:$0xff]
    %v85 = vld [vmem:[%s4 + $0x18] sm:$0xff]
    %v86 = vld [vmem:[%s4 + $0x20] sm:$0xff]
    %v87 = vld [vmem:[%s4 + $0x28] sm:$0xff]
    %v88 = vld [vmem:[%s4 + $0x30] sm:$0xff]
    %v89 = vld [vmem:[%s4 + $0x38] sm:$0xff]
    %v90 = vld [vmem:[%s4 + $0x40] sm:$0xff]
    %v91 = vld [vmem:[%s4 + $0x48] sm:$0xff]
    %v92 = vld [vmem:[%s4 + $0x50] sm:$0xff]
    %v93 = vld [vmem:[%s4 + $0x58] sm:$0xff]
    %v94 = vld [vmem:[%s4 + $0x60] sm:$0xff]
    %v95 = vld [vmem:[%s4 + $0x68] sm:$0xff]
    %v96 = vld [vmem:[%s4 + $0x70] sm:$0xff]
    %v97 = vld [vmem:[%s4 + $0x78] sm:$0xff]
    %v98 = vld [vmem:[%s4 + $0x80] sm:$0xff]
    %v99 = vld [vmem:[%s4 + $0x88] sm:$0xff]
    %v100 = vld [vmem:[%s4 + $0x90] sm:$0xff]
    %v101 = vld [vmem:[%s4 + $0x98] sm:$0xff]
    %v102 = vld [vmem:[%s4 + $0xa0] sm:$0xff]
    %v103 = vld [vmem:[%s4 + $0xa8] sm:$0xff]
    %v104 = vld [vmem:[%s4 + $0xb0] sm:$0xff]
    %v105 = vld [vmem:[%s4 + $0xb8] sm:$0xff]
    %v106 = vld [vmem:[%s4 + $0xc0] sm:$0xff]
    %v107 = vld [vmem:[%s4 + $0xc8] sm:$0xff]
    %v108 = vld [vmem:[%s4 + $0xd0] sm:$0xff]
    %v109 = vld [vmem:[%s4 + $0xd8] sm:$0xff]
    %v110 = vld [vmem:[%s4 + $0xe0] sm:$0xff]
    %v111 = vld [vmem:[%s4 + $0xe8] sm:$0xff]
    %v112 = vld [vmem:[%s4 + $0xf0] sm:$0xff]
    %v113 = vld [vmem:[%s4 + $0xf8] sm:$0xff]
    %v114 = vld [vmem:[#allocation2] sm:$0xff]
    %v115 = vld [vmem:[#allocation2 + $0x8] sm:$0xff]
    %v116 = vld [vmem:[#allocation2 + $0x10] sm:$0xff]
    %v117 = vld [vmem:[#allocation2 + $0x18] sm:$0xff]
    %v118 = vld [vmem:[#allocation2 + $0x20] sm:$0xff]
    %v119 = vld [vmem:[#allocation2 + $0x28] sm:$0xff]
    %v120 = vld [vmem:[#allocation2 + $0x30] sm:$0xff]
    %v121 = vld [vmem:[#allocation2 + $0x38] sm:$0xff]
    %v122 = vld [vmem:[#allocation2 + $0x40] sm:$0xff]
    %v123 = vld [vmem:[#allocation2 + $0x48] sm:$0xff]
    %v124 = vld [vmem:[#allocation2 + $0x50] sm:$0xff]
    %v125 = vld [vmem:[#allocation2 + $0x58] sm:$0xff]
    %v126 = vld [vmem:[#allocation2 + $0x60] sm:$0xff]
    %v127 = vld [vmem:[#allocation2 + $0x68] sm:$0xff]
    %v128 = vld [vmem:[#allocation2 + $0x70] sm:$0xff]
    %v129 = vld [vmem:[#allocation2 + $0x78] sm:$0xff]
    %v130 = vld [vmem:[#allocation2 + $0x80] sm:$0xff]
    %v131 = vld [vmem:[#allocation2 + $0x88] sm:$0xff]
    %v132 = vld [vmem:[#allocation2 + $0x90] sm:$0xff]
    %v133 = vld [vmem:[#allocation2 + $0x98] sm:$0xff]
    %v134 = vld [vmem:[#allocation2 + $0xa0] sm:$0xff]
    %v135 = vld [vmem:[#allocation2 + $0xa8] sm:$0xff]
    %v136 = vld [vmem:[#allocation2 + $0xb0] sm:$0xff]
    %v137 = vld [vmem:[#allocation2 + $0xb8] sm:$0xff]
    %v138 = vld [vmem:[#allocation2 + $0xc0] sm:$0xff]
    %v139 = vld [vmem:[#allocation2 + $0xc8] sm:$0xff]
    %v140 = vld [vmem:[#allocation2 + $0xd0] sm:$0xff]
    %v141 = vld [vmem:[#allocation2 + $0xd8] sm:$0xff]
    %v142 = vld [vmem:[#allocation2 + $0xe0] sm:$0xff]
    %v143 = vld [vmem:[#allocation2 + $0xe8] sm:$0xff]
    %v144 = vld [vmem:[#allocation2 + $0xf0] sm:$0xff]
    %v145 = vld [vmem:[#allocation2 + $0xf8] sm:$0xff]
    %v146 = vld [vmem:[%s6] sm:$0xff]
    %v147 = vld [vmem:[%s6 + $0x8] sm:$0xff]
    %v148 = vld [vmem:[%s7] sm:$0xff]
    %v149 = vld [vmem:[%s7 + $0x8] sm:$0xff]
    %v150 = vld [vmem:[%s8] sm:$0xff]
    %v151 = vld [vmem:[%s9] sm:$0xff]
    %v152 = vld [vmem:[%s9 + $0x8] sm:$0xff]
    %v153 = vld [vmem:[%s0] sm:$0xff]
    %v154 = vld [vmem:[%s0 + $0x8] sm:$0xff]
    %v155 = vld [vmem:[%s0 + $0x10] sm:$0xff]
    %v156 = vld [vmem:[%s0 + $0x18] sm:$0xff]
    %vm157 = vcmask 261120
    %v159 = vsel %vm157, %v58, 0
    %v162 = vsel %vm157, %v59, 0
    %v165 = vsel %vm157, %v60, 0
    %v168 = vsel %vm157, %v61, 0
    %v171 = vsel %vm157, %v62, 0
    %v174 = vsel %vm157, %v63, 0
    %v177 = vsel %vm157, %v64, 0
    %v180 = vsel %vm157, %v65, 0
    %182 = vmatprep.subr.mxu0 0.0
    %183 = vmatpush1.msra.mxu0 0.0
    %184 = vmatprep.subr.mxu0 0.0
    %185 = vmatpush1.msra.mxu0 0.0
    %186 = vmatprep.subr.mxu0 0.0
    %187 = vmatpush1.msra.mxu0 0.0
    %188 = vmatprep.subr.mxu0 0.0
    %189 = vmatpush1.msra.mxu0 0.0
    %190 = vmatprep.subr.mxu0 0.0
    %191 = vmatpush1.msra.mxu0 0.0
    %192 = vmatprep.subr.mxu0 0.0
    %193 = vmatpush1.msra.mxu0 0.0
    %194 = vmatprep.subr.mxu0 0.0
    %195 = vmatpush1.msra.mxu0 0.0
    %196 = vmatprep.subr.mxu0 0.0
    %197 = vmatpush1.msra.mxu0 0.0
    %198 = vmatprep.subr.mxu0 0.0
    %199 = vmatpush1.msra.mxu0 0.0
    %200 = vmatprep.subr.mxu0 0.0
    %201 = vmatpush1.msra.mxu0 0.0
    %202 = vmatprep.subr.mxu0 0.0
    %203 = vmatpush1.msra.mxu0 0.0
    %204 = vmatprep.subr.mxu0 0.0
    %205 = vmatpush1.msra.mxu0 0.0
    %206 = vmatprep.subr.mxu0 0.0
    %207 = vmatpush1.msra.mxu0 %v156
    %208 = vmatprep.subr.mxu0 0.0
    %209 = vmatpush1.msra.mxu0 %v155
    %210 = vmatprep.subr.mxu0 0.0
    %211 = vmatpush1.msra.mxu0 %v154
    %212 = vmatprep.subr.mxu0 0.0
    %213 = vmatpush1.msra.mxu0 %v153
    %214 = vmatprep.subr.mxu0 0.0
    %215 = vmatpush2.msra.mxu0 0.0
    %216 = vmatprep.subr.mxu0 0.0
    %217 = vmatpush2.msra.mxu0 0.0
    %218 = vmatprep.subr.mxu0 0.0
    %219 = vmatpush2.msra.mxu0 0.0
    %220 = vmatprep.subr.mxu0 0.0
    %221 = vmatpush2.msra.mxu0 0.0
    %222 = vmatprep.subr.mxu0 0.0
    %223 = vmatpush2.msra.mxu0 0.0
    %224 = vmatprep.subr.mxu0 0.0
    %225 = vmatpush2.msra.mxu0 0.0
    %226 = vmatprep.subr.mxu0 0.0
    %227 = vmatpush2.msra.mxu0 0.0
    %228 = vmatprep.subr.mxu0 0.0
    %229 = vmatpush2.msra.mxu0 0.0
    %230 = vmatprep.subr.mxu0 0.0
    %231 = vmatpush2.msra.mxu0 0.0
    %232 = vmatprep.subr.mxu0 0.0
    %233 = vmatpush2.msra.mxu0 0.0
    %234 = vmatprep.subr.mxu0 0.0
    %235 = vmatpush2.msra.mxu0 0.0
    %236 = vmatprep.subr.mxu0 0.0
    %237 = vmatpush2.msra.mxu0 0.0
    %238 = vmatprep.subr.mxu0 0.0
    %239 = vmatpush2.msra.mxu0 0.0
    %240 = vmatprep.subr.mxu0 0.0
    %241 = vmatpush2.msra.mxu0 0.0
    %242 = vmatprep.subr.mxu0 0.0
    %243 = vmatpush2.msra.mxu0 0.0
    %244 = vmatprep.subr.mxu0 0.0
    %245 = vmatpush2.msra.mxu0 0.0
    %246 = vmatprep.mubr.f32.mxu0 0.0
    %247 = vmatmul.mubr.f32.gmra.mxu0 %v159
    %v248 = vpop.f32.mrf.mxu0
    %v249 = vadd.f32 0.0, %v248
    %v250 = vpop.f32.mrf.mxu0
    %251 = vmatprep.mubr.f32.mxu0 0.0
    %252 = vmatmul.mubr.f32.gmra.mxu0 %v162
    %v253 = vpop.f32.mrf.mxu0
    %v254 = vadd.f32 0.0, %v253
    %v255 = vpop.f32.mrf.mxu0
    %256 = vmatprep.mubr.f32.mxu0 0.0
    %257 = vmatmul.mubr.f32.gmra.mxu0 %v165
    %v258 = vpop.f32.mrf.mxu0
    %v259 = vadd.f32 0.0, %v258
    %v260 = vpop.f32.mrf.mxu0
    %261 = vmatprep.mubr.f32.mxu0 0.0
    %262 = vmatmul.mubr.f32.gmra.mxu0 %v168
    %v263 = vpop.f32.mrf.mxu0
    %v264 = vadd.f32 0.0, %v263
    %v265 = vpop.f32.mrf.mxu0
    %266 = vmatprep.mubr.f32.mxu0 0.0
    %267 = vmatmul.mubr.f32.gmra.mxu0 %v171
    %v268 = vpop.f32.mrf.mxu0
    %v269 = vadd.f32 0.0, %v268
    %v270 = vpop.f32.mrf.mxu0
    %271 = vmatprep.mubr.f32.mxu0 0.0
    %272 = vmatmul.mubr.f32.gmra.mxu0 %v174
    %v273 = vpop.f32.mrf.mxu0
    %v274 = vadd.f32 0.0, %v273
    %v275 = vpop.f32.mrf.mxu0
    %276 = vmatprep.mubr.f32.mxu0 0.0
    %277 = vmatmul.mubr.f32.gmra.mxu0 %v177
    %v278 = vpop.f32.mrf.mxu0
    %v279 = vadd.f32 0.0, %v278
    %v280 = vpop.f32.mrf.mxu0
    %281 = vmatprep.mubr.f32.mxu0 0.0
    %282 = vmatmul.mubr.f32.gmra.mxu0 %v180
    %v283 = vpop.f32.mrf.mxu0
    %v284 = vadd.f32 0.0, %v283
    %v285 = vpop.f32.mrf.mxu0
    %286 = vdwg.mxu0
    %288 = vset.pattern.permute.xlu0 0
    %289 = vperm.xlu0 %288, %v66
    %v290 = vpop.permute.xlu0 %289
    %293 = vset.pattern.permute.xlu0 0
    %294 = vperm.xlu0 %293, %v67
    %v295 = vpop.permute.xlu0 %294
    %298 = vset.pattern.permute.xlu0 0
    %299 = vperm.xlu0 %298, %v68
    %v300 = vpop.permute.xlu0 %299
    %303 = vset.pattern.permute.xlu0 0
    %304 = vperm.xlu0 %303, %v69
    %v305 = vpop.permute.xlu0 %304
    %308 = vset.pattern.permute.xlu0 0
    %309 = vperm.xlu0 %308, %v70
    %v310 = vpop.permute.xlu0 %309
    %313 = vset.pattern.permute.xlu0 0
    %314 = vperm.xlu0 %313, %v71
    %v315 = vpop.permute.xlu0 %314
    %318 = vset.pattern.permute.xlu0 0
    %319 = vperm.xlu0 %318, %v72
    %v320 = vpop.permute.xlu0 %319
    %323 = vset.pattern.permute.xlu0 0
    %324 = vperm.xlu0 %323, %v73
    %v325 = vpop.permute.xlu0 %324
    %v327 = vmul.f32 %v249, %v290
    %v328 = vmul.f32 %v254, %v295
    %v329 = vmul.f32 %v259, %v300
    %v330 = vmul.f32 %v264, %v305
    %v331 = vmul.f32 %v269, %v310
    %v332 = vmul.f32 %v274, %v315
    %v333 = vmul.f32 %v279, %v320
    %v334 = vmul.f32 %v284, %v325
    %336 = vset.pattern.permute.xlu0 0
    %337 = vperm.xlu0 %336, %v74
    %v338 = vpop.permute.xlu0 %337
    %341 = vset.pattern.permute.xlu0 0
    %342 = vperm.xlu0 %341, %v75
    %v343 = vpop.permute.xlu0 %342
    %346 = vset.pattern.permute.xlu0 0
    %347 = vperm.xlu0 %346, %v76
    %v348 = vpop.permute.xlu0 %347
    %351 = vset.pattern.permute.xlu0 0
    %352 = vperm.xlu0 %351, %v77
    %v353 = vpop.permute.xlu0 %352
    %356 = vset.pattern.permute.xlu0 0
    %357 = vperm.xlu0 %356, %v78
    %v358 = vpop.permute.xlu0 %357
    %361 = vset.pattern.permute.xlu0 0
    %362 = vperm.xlu0 %361, %v79
    %v363 = vpop.permute.xlu0 %362
    %366 = vset.pattern.permute.xlu0 0
    %367 = vperm.xlu0 %366, %v80
    %v368 = vpop.permute.xlu0 %367
    %371 = vset.pattern.permute.xlu0 0
    %372 = vperm.xlu0 %371, %v81
    %v373 = vpop.permute.xlu0 %372
    %v375 = vadd.f32 %v327, %v338
    %v376 = vadd.f32 %v328, %v343
    %v377 = vadd.f32 %v329, %v348
    %v378 = vadd.f32 %v330, %v353
    %v379 = vadd.f32 %v331, %v358
    %v380 = vadd.f32 %v332, %v363
    %v381 = vadd.f32 %v333, %v368
    %v382 = vadd.f32 %v334, %v373
    %v383 = vlaneseq
    %v384 = vshrl.u32 %v383, 7
    %v385 = vsub.s32 0, %v384
    %v386 = vrot.slane %v375, %v385
    %388 = vbcast.lane.b32.xlu0 %v386, 256
    %v389 = vpop.permute.xlu0 %388
    %s391 = sor.u32 256, 8
    %392 = vbcast.lane.b32.xlu0 %v386, %s391
    %v393 = vpop.permute.xlu0 %392
    %v394 = vlaneseq
    %v395 = vshrl.u32 %v394, 7
    %v396 = vsub.s32 1, %v395
    %v397 = vrot.slane %v375, %v396
    %399 = vbcast.lane.b32.xlu0 %v397, 256
    %v400 = vpop.permute.xlu0 %399
    %s402 = sor.u32 256, 8
    %403 = vbcast.lane.b32.xlu0 %v397, %s402
    %v404 = vpop.permute.xlu0 %403
    %v405 = vlaneseq
    %v406 = vshrl.u32 %v405, 7
    %v407 = vsub.s32 2, %v406
    %v408 = vrot.slane %v375, %v407
    %410 = vbcast.lane.b32.xlu0 %v408, 256
    %v411 = vpop.permute.xlu0 %410
    %s413 = sor.u32 256, 8
    %414 = vbcast.lane.b32.xlu0 %v408, %s413
    %v415 = vpop.permute.xlu0 %414
    %v416 = vlaneseq
    %v417 = vshrl.u32 %v416, 7
    %v418 = vsub.s32 3, %v417
    %v419 = vrot.slane %v375, %v418
    %421 = vbcast.lane.b32.xlu0 %v419, 256
    %v422 = vpop.permute.xlu0 %421
    %s424 = sor.u32 256, 8
    %425 = vbcast.lane.b32.xlu0 %v419, %s424
    %v426 = vpop.permute.xlu0 %425
    %v427 = vlaneseq
    %v428 = vshrl.u32 %v427, 7
    %v429 = vsub.s32 4, %v428
    %v430 = vrot.slane %v375, %v429
    %432 = vbcast.lane.b32.xlu0 %v430, 256
    %v433 = vpop.permute.xlu0 %432
    %s435 = sor.u32 256, 8
    %436 = vbcast.lane.b32.xlu0 %v430, %s435
    %v437 = vpop.permute.xlu0 %436
    %v438 = vlaneseq
    %v439 = vshrl.u32 %v438, 7
    %v440 = vsub.s32 5, %v439
    %v441 = vrot.slane %v375, %v440
    %443 = vbcast.lane.b32.xlu0 %v441, 256
    %v444 = vpop.permute.xlu0 %443
    %s446 = sor.u32 256, 8
    %447 = vbcast.lane.b32.xlu0 %v441, %s446
    %v448 = vpop.permute.xlu0 %447
    %v449 = vlaneseq
    %v450 = vshrl.u32 %v449, 7
    %v451 = vsub.s32 6, %v450
    %v452 = vrot.slane %v375, %v451
    %454 = vbcast.lane.b32.xlu0 %v452, 256
    %v455 = vpop.permute.xlu0 %454
    %s457 = sor.u32 256, 8
    %458 = vbcast.lane.b32.xlu0 %v452, %s457
    %v459 = vpop.permute.xlu0 %458
    %v460 = vlaneseq
    %v461 = vshrl.u32 %v460, 7
    %v462 = vsub.s32 7, %v461
    %v463 = vrot.slane %v375, %v462
    %465 = vbcast.lane.b32.xlu0 %v463, 256
    %v466 = vpop.permute.xlu0 %465
    %s468 = sor.u32 256, 8
    %469 = vbcast.lane.b32.xlu0 %v463, %s468
    %v470 = vpop.permute.xlu0 %469
    %v471 = vlaneseq
    %v472 = vshrl.u32 %v471, 7
    %v473 = vsub.s32 0, %v472
    %v474 = vrot.slane %v376, %v473
    %476 = vbcast.lane.b32.xlu0 %v474, 256
    %v477 = vpop.permute.xlu0 %476
    %s479 = sor.u32 256, 8
    %480 = vbcast.lane.b32.xlu0 %v474, %s479
    %v481 = vpop.permute.xlu0 %480
    %v482 = vlaneseq
    %v483 = vshrl.u32 %v482, 7
    %v484 = vsub.s32 1, %v483
    %v485 = vrot.slane %v376, %v484
    %487 = vbcast.lane.b32.xlu0 %v485, 256
    %v488 = vpop.permute.xlu0 %487
    %s490 = sor.u32 256, 8
    %491 = vbcast.lane.b32.xlu0 %v485, %s490
    %v492 = vpop.permute.xlu0 %491
    %v493 = vlaneseq
    %v494 = vshrl.u32 %v493, 7
    %v495 = vsub.s32 2, %v494
    %v496 = vrot.slane %v376, %v495
    %498 = vbcast.lane.b32.xlu0 %v496, 256
    %v499 = vpop.permute.xlu0 %498
    %s501 = sor.u32 256, 8
    %502 = vbcast.lane.b32.xlu0 %v496, %s501
    %v503 = vpop.permute.xlu0 %502
    %v504 = vlaneseq
    %v505 = vshrl.u32 %v504, 7
    %v506 = vsub.s32 3, %v505
    %v507 = vrot.slane %v376, %v506
    %509 = vbcast.lane.b32.xlu0 %v507, 256
    %v510 = vpop.permute.xlu0 %509
    %s512 = sor.u32 256, 8
    %513 = vbcast.lane.b32.xlu0 %v507, %s512
    %v514 = vpop.permute.xlu0 %513
    %v515 = vlaneseq
    %v516 = vshrl.u32 %v515, 7
    %v517 = vsub.s32 4, %v516
    %v518 = vrot.slane %v376, %v517
    %520 = vbcast.lane.b32.xlu0 %v518, 256
    %v521 = vpop.permute.xlu0 %520
    %s523 = sor.u32 256, 8
    %524 = vbcast.lane.b32.xlu0 %v518, %s523
    %v525 = vpop.permute.xlu0 %524
    %v526 = vlaneseq
    %v527 = vshrl.u32 %v526, 7
    %v528 = vsub.s32 5, %v527
    %v529 = vrot.slane %v376, %v528
    %531 = vbcast.lane.b32.xlu0 %v529, 256
    %v532 = vpop.permute.xlu0 %531
    %s534 = sor.u32 256, 8
    %535 = vbcast.lane.b32.xlu0 %v529, %s534
    %v536 = vpop.permute.xlu0 %535
    %v537 = vlaneseq
    %v538 = vshrl.u32 %v537, 7
    %v539 = vsub.s32 6, %v538
    %v540 = vrot.slane %v376, %v539
    %542 = vbcast.lane.b32.xlu0 %v540, 256
    %v543 = vpop.permute.xlu0 %542
    %s545 = sor.u32 256, 8
    %546 = vbcast.lane.b32.xlu0 %v540, %s545
    %v547 = vpop.permute.xlu0 %546
    %v548 = vlaneseq
    %v549 = vshrl.u32 %v548, 7
    %v550 = vsub.s32 7, %v549
    %v551 = vrot.slane %v376, %v550
    %553 = vbcast.lane.b32.xlu0 %v551, 256
    %v554 = vpop.permute.xlu0 %553
    %s556 = sor.u32 256, 8
    %557 = vbcast.lane.b32.xlu0 %v551, %s556
    %v558 = vpop.permute.xlu0 %557
    %v559 = vmul.f32 %v389, %v82
    %v560 = vmul.f32 %v393, %v83
    %v561 = vmul.f32 %v400, %v84
    %v562 = vmul.f32 %v404, %v85
    %v563 = vmul.f32 %v411, %v86
    %v564 = vmul.f32 %v415, %v87
    %v565 = vmul.f32 %v422, %v88
    %v566 = vmul.f32 %v426, %v89
    %v567 = vmul.f32 %v433, %v90
    %v568 = vmul.f32 %v437, %v91
    %v569 = vmul.f32 %v444, %v92
    %v570 = vmul.f32 %v448, %v93
    %v571 = vmul.f32 %v455, %v94
    %v572 = vmul.f32 %v459, %v95
    %v573 = vmul.f32 %v466, %v96
    %v574 = vmul.f32 %v470, %v97
    %v575 = vmul.f32 %v477, %v98
    %v576 = vmul.f32 %v481, %v99
    %v577 = vmul.f32 %v488, %v100
    %v578 = vmul.f32 %v492, %v101
    %v579 = vmul.f32 %v499, %v102
    %v580 = vmul.f32 %v503, %v103
    %v581 = vmul.f32 %v510, %v104
    %v582 = vmul.f32 %v514, %v105
    %v583 = vmul.f32 %v521, %v106
    %v584 = vmul.f32 %v525, %v107
    %v585 = vmul.f32 %v532, %v108
    %v586 = vmul.f32 %v536, %v109
    %v587 = vmul.f32 %v543, %v110
    %v588 = vmul.f32 %v547, %v111
    %v589 = vmul.f32 %v554, %v112
    %v590 = vmul.f32 %v558, %v113
    %vm591 = vcmask 130048
    %v592 = vsel %vm591, %v559, 0.0
    %v593 = vsel %vm591, %v561, 0.0
    %v594 = vadd.f32 %v592, %v593
    %v595 = vsel %vm591, %v563, 0.0
    %v596 = vadd.f32 %v594, %v595
    %v597 = vsel %vm591, %v565, 0.0
    %v598 = vadd.f32 %v596, %v597
    %v599 = vsel %vm591, %v560, 0.0
    %v600 = vsel %vm591, %v562, 0.0
    %v601 = vadd.f32 %v599, %v600
    %v602 = vsel %vm591, %v564, 0.0
    %v603 = vadd.f32 %v601, %v602
    %v604 = vsel %vm591, %v566, 0.0
    %v605 = vadd.f32 %v603, %v604
    %v606 = vsel %vm591, %v567, 0.0
    %v607 = vsel %vm591, %v569, 0.0
    %v608 = vadd.f32 %v606, %v607
    %v609 = vsel %vm591, %v571, 0.0
    %v610 = vadd.f32 %v608, %v609
    %v611 = vsel %vm591, %v573, 0.0
    %v612 = vadd.f32 %v610, %v611
    %v613 = vsel %vm591, %v568, 0.0
    %v614 = vsel %vm591, %v570, 0.0
    %v615 = vadd.f32 %v613, %v614
    %v616 = vsel %vm591, %v572, 0.0
    %v617 = vadd.f32 %v615, %v616
    %v618 = vsel %vm591, %v574, 0.0
    %v619 = vadd.f32 %v617, %v618
    %v620 = vsel %vm591, %v575, 0.0
    %v621 = vsel %vm591, %v577, 0.0
    %v622 = vadd.f32 %v620, %v621
    %v623 = vsel %vm591, %v579, 0.0
    %v624 = vadd.f32 %v622, %v623
    %v625 = vsel %vm591, %v581, 0.0
    %v626 = vadd.f32 %v624, %v625
    %v627 = vsel %vm591, %v576, 0.0
    %v628 = vsel %vm591, %v578, 0.0
    %v629 = vadd.f32 %v627, %v628
    %v630 = vsel %vm591, %v580, 0.0
    %v631 = vadd.f32 %v629, %v630
    %v632 = vsel %vm591, %v582, 0.0
    %v633 = vadd.f32 %v631, %v632
    %v634 = vsel %vm591, %v583, 0.0
    %v635 = vsel %vm591, %v585, 0.0
    %v636 = vadd.f32 %v634, %v635
    %v637 = vsel %vm591, %v587, 0.0
    %v638 = vadd.f32 %v636, %v637
    %v639 = vsel %vm591, %v589, 0.0
    %v640 = vadd.f32 %v638, %v639
    %v641 = vsel %vm591, %v584, 0.0
    %v642 = vsel %vm591, %v586, 0.0
    %v643 = vadd.f32 %v641, %v642
    %v644 = vsel %vm591, %v588, 0.0
    %v645 = vadd.f32 %v643, %v644
    %v646 = vsel %vm591, %v590, 0.0
    %v647 = vadd.f32 %v645, %v646
    %v648 = vlaneseq
    %v649 = vshrl.u32 %v648, 7
    %v650 = vsub.s32 0, %v649
    %v651 = vrot.slane %v377, %v650
    %653 = vbcast.lane.b32.xlu0 %v651, 256
    %v654 = vpop.permute.xlu0 %653
    %s656 = sor.u32 256, 8
    %657 = vbcast.lane.b32.xlu0 %v651, %s656
    %v658 = vpop.permute.xlu0 %657
    %v659 = vlaneseq
    %v660 = vshrl.u32 %v659, 7
    %v661 = vsub.s32 1, %v660
    %v662 = vrot.slane %v377, %v661
    %664 = vbcast.lane.b32.xlu0 %v662, 256
    %v665 = vpop.permute.xlu0 %664
    %s667 = sor.u32 256, 8
    %668 = vbcast.lane.b32.xlu0 %v662, %s667
    %v669 = vpop.permute.xlu0 %668
    %v670 = vlaneseq
    %v671 = vshrl.u32 %v670, 7
    %v672 = vsub.s32 2, %v671
    %v673 = vrot.slane %v377, %v672
    %675 = vbcast.lane.b32.xlu0 %v673, 256
    %v676 = vpop.permute.xlu0 %675
    %s678 = sor.u32 256, 8
    %679 = vbcast.lane.b32.xlu0 %v673, %s678
    %v680 = vpop.permute.xlu0 %679
    %v681 = vlaneseq
    %v682 = vshrl.u32 %v681, 7
    %v683 = vsub.s32 3, %v682
    %v684 = vrot.slane %v377, %v683
    %686 = vbcast.lane.b32.xlu0 %v684, 256
    %v687 = vpop.permute.xlu0 %686
    %s689 = sor.u32 256, 8
    %690 = vbcast.lane.b32.xlu0 %v684, %s689
    %v691 = vpop.permute.xlu0 %690
    %v692 = vlaneseq
    %v693 = vshrl.u32 %v692, 7
    %v694 = vsub.s32 4, %v693
    %v695 = vrot.slane %v377, %v694
    %697 = vbcast.lane.b32.xlu0 %v695, 256
    %v698 = vpop.permute.xlu0 %697
    %s700 = sor.u32 256, 8
    %701 = vbcast.lane.b32.xlu0 %v695, %s700
    %v702 = vpop.permute.xlu0 %701
    %v703 = vlaneseq
    %v704 = vshrl.u32 %v703, 7
    %v705 = vsub.s32 5, %v704
    %v706 = vrot.slane %v377, %v705
    %708 = vbcast.lane.b32.xlu0 %v706, 256
    %v709 = vpop.permute.xlu0 %708
    %s711 = sor.u32 256, 8
    %712 = vbcast.lane.b32.xlu0 %v706, %s711
    %v713 = vpop.permute.xlu0 %712
    %v714 = vlaneseq
    %v715 = vshrl.u32 %v714, 7
    %v716 = vsub.s32 6, %v715
    %v717 = vrot.slane %v377, %v716
    %719 = vbcast.lane.b32.xlu0 %v717, 256
    %v720 = vpop.permute.xlu0 %719
    %s722 = sor.u32 256, 8
    %723 = vbcast.lane.b32.xlu0 %v717, %s722
    %v724 = vpop.permute.xlu0 %723
    %v725 = vlaneseq
    %v726 = vshrl.u32 %v725, 7
    %v727 = vsub.s32 7, %v726
    %v728 = vrot.slane %v377, %v727
    %730 = vbcast.lane.b32.xlu0 %v728, 256
    %v731 = vpop.permute.xlu0 %730
    %s733 = sor.u32 256, 8
    %734 = vbcast.lane.b32.xlu0 %v728, %s733
    %v735 = vpop.permute.xlu0 %734
    %v736 = vlaneseq
    %v737 = vshrl.u32 %v736, 7
    %v738 = vsub.s32 0, %v737
    %v739 = vrot.slane %v378, %v738
    %741 = vbcast.lane.b32.xlu0 %v739, 256
    %v742 = vpop.permute.xlu0 %741
    %s744 = sor.u32 256, 8
    %745 = vbcast.lane.b32.xlu0 %v739, %s744
    %v746 = vpop.permute.xlu0 %745
    %v747 = vlaneseq
    %v748 = vshrl.u32 %v747, 7
    %v749 = vsub.s32 1, %v748
    %v750 = vrot.slane %v378, %v749
    %752 = vbcast.lane.b32.xlu0 %v750, 256
    %v753 = vpop.permute.xlu0 %752
    %s755 = sor.u32 256, 8
    %756 = vbcast.lane.b32.xlu0 %v750, %s755
    %v757 = vpop.permute.xlu0 %756
    %v758 = vlaneseq
    %v759 = vshrl.u32 %v758, 7
    %v760 = vsub.s32 2, %v759
    %v761 = vrot.slane %v378, %v760
    %763 = vbcast.lane.b32.xlu0 %v761, 256
    %v764 = vpop.permute.xlu0 %763
    %s766 = sor.u32 256, 8
    %767 = vbcast.lane.b32.xlu0 %v761, %s766
    %v768 = vpop.permute.xlu0 %767
    %v769 = vlaneseq
    %v770 = vshrl.u32 %v769, 7
    %v771 = vsub.s32 3, %v770
    %v772 = vrot.slane %v378, %v771
    %774 = vbcast.lane.b32.xlu0 %v772, 256
    %v775 = vpop.permute.xlu0 %774
    %s777 = sor.u32 256, 8
    %778 = vbcast.lane.b32.xlu0 %v772, %s777
    %v779 = vpop.permute.xlu0 %778
    %v780 = vlaneseq
    %v781 = vshrl.u32 %v780, 7
    %v782 = vsub.s32 4, %v781
    %v783 = vrot.slane %v378, %v782
    %785 = vbcast.lane.b32.xlu0 %v783, 256
    %v786 = vpop.permute.xlu0 %785
    %s788 = sor.u32 256, 8
    %789 = vbcast.lane.b32.xlu0 %v783, %s788
    %v790 = vpop.permute.xlu0 %789
    %v791 = vlaneseq
    %v792 = vshrl.u32 %v791, 7
    %v793 = vsub.s32 5, %v792
    %v794 = vrot.slane %v378, %v793
    %796 = vbcast.lane.b32.xlu0 %v794, 256
    %v797 = vpop.permute.xlu0 %796
    %s799 = sor.u32 256, 8
    %800 = vbcast.lane.b32.xlu0 %v794, %s799
    %v801 = vpop.permute.xlu0 %800
    %v802 = vlaneseq
    %v803 = vshrl.u32 %v802, 7
    %v804 = vsub.s32 6, %v803
    %v805 = vrot.slane %v378, %v804
    %807 = vbcast.lane.b32.xlu0 %v805, 256
    %v808 = vpop.permute.xlu0 %807
    %s810 = sor.u32 256, 8
    %811 = vbcast.lane.b32.xlu0 %v805, %s810
    %v812 = vpop.permute.xlu0 %811
    %v813 = vlaneseq
    %v814 = vshrl.u32 %v813, 7
    %v815 = vsub.s32 7, %v814
    %v816 = vrot.slane %v378, %v815
    %818 = vbcast.lane.b32.xlu0 %v816, 256
    %v819 = vpop.permute.xlu0 %818
    %s821 = sor.u32 256, 8
    %822 = vbcast.lane.b32.xlu0 %v816, %s821
    %v823 = vpop.permute.xlu0 %822
    %v824 = vmul.f32 %v654, %v114
    %v825 = vmul.f32 %v658, %v115
    %v826 = vmul.f32 %v665, %v116
    %v827 = vmul.f32 %v669, %v117
    %v828 = vmul.f32 %v676, %v118
    %v829 = vmul.f32 %v680, %v119
    %v830 = vmul.f32 %v687, %v120
    %v831 = vmul.f32 %v691, %v121
    %v832 = vmul.f32 %v698, %v122
    %v833 = vmul.f32 %v702, %v123
    %v834 = vmul.f32 %v709, %v124
    %v835 = vmul.f32 %v713, %v125
    %v836 = vmul.f32 %v720, %v126
    %v837 = vmul.f32 %v724, %v127
    %v838 = vmul.f32 %v731, %v128
    %v839 = vmul.f32 %v735, %v129
    %v840 = vmul.f32 %v742, %v130
    %v841 = vmul.f32 %v746, %v131
    %v842 = vmul.f32 %v753, %v132
    %v843 = vmul.f32 %v757, %v133
    %v844 = vmul.f32 %v764, %v134
    %v845 = vmul.f32 %v768, %v135
    %v846 = vmul.f32 %v775, %v136
    %v847 = vmul.f32 %v779, %v137
    %v848 = vmul.f32 %v786, %v138
    %v849 = vmul.f32 %v790, %v139
    %v850 = vmul.f32 %v797, %v140
    %v851 = vmul.f32 %v801, %v141
    %v852 = vmul.f32 %v808, %v142
    %v853 = vmul.f32 %v812, %v143
    %v854 = vmul.f32 %v819, %v144
    %v855 = vmul.f32 %v823, %v145
    %v856 = vsel %vm591, %v824, 0.0
    %v857 = vsel %vm591, %v826, 0.0
    %v858 = vadd.f32 %v856, %v857
    %v859 = vsel %vm591, %v828, 0.0
    %v860 = vadd.f32 %v858, %v859
    %v861 = vsel %vm591, %v830, 0.0
    %v862 = vadd.f32 %v860, %v861
    %v863 = vsel %vm591, %v825, 0.0
    %v864 = vsel %vm591, %v827, 0.0
    %v865 = vadd.f32 %v863, %v864
    %v866 = vsel %vm591, %v829, 0.0
    %v867 = vadd.f32 %v865, %v866
    %v868 = vsel %vm591, %v831, 0.0
    %v869 = vadd.f32 %v867, %v868
    %v870 = vsel %vm591, %v832, 0.0
    %v871 = vsel %vm591, %v834, 0.0
    %v872 = vadd.f32 %v870, %v871
    %v873 = vsel %vm591, %v836, 0.0
    %v874 = vadd.f32 %v872, %v873
    %v875 = vsel %vm591, %v838, 0.0
    %v876 = vadd.f32 %v874, %v875
    %v877 = vsel %vm591, %v833, 0.0
    %v878 = vsel %vm591, %v835, 0.0
    %v879 = vadd.f32 %v877, %v878
    %v880 = vsel %vm591, %v837, 0.0
    %v881 = vadd.f32 %v879, %v880
    %v882 = vsel %vm591, %v839, 0.0
    %v883 = vadd.f32 %v881, %v882
    %v884 = vsel %vm591, %v840, 0.0
    %v885 = vsel %vm591, %v842, 0.0
    %v886 = vadd.f32 %v884, %v885
    %v887 = vsel %vm591, %v844, 0.0
    %v888 = vadd.f32 %v886, %v887
    %v889 = vsel %vm591, %v846, 0.0
    %v890 = vadd.f32 %v888, %v889
    %v891 = vsel %vm591, %v841, 0.0
    %v892 = vsel %vm591, %v843, 0.0
    %v893 = vadd.f32 %v891, %v892
    %v894 = vsel %vm591, %v845, 0.0
    %v895 = vadd.f32 %v893, %v894
    %v896 = vsel %vm591, %v847, 0.0
    %v897 = vadd.f32 %v895, %v896
    %v898 = vsel %vm591, %v848, 0.0
    %v899 = vsel %vm591, %v850, 0.0
    %v900 = vadd.f32 %v898, %v899
    %v901 = vsel %vm591, %v852, 0.0
    %v902 = vadd.f32 %v900, %v901
    %v903 = vsel %vm591, %v854, 0.0
    %v904 = vadd.f32 %v902, %v903
    %v905 = vsel %vm591, %v849, 0.0
    %v906 = vsel %vm591, %v851, 0.0
    %v907 = vadd.f32 %v905, %v906
    %v908 = vsel %vm591, %v853, 0.0
    %v909 = vadd.f32 %v907, %v908
    %v910 = vsel %vm591, %v855, 0.0
    %v911 = vadd.f32 %v909, %v910
    %913 = vset.pattern.permute.xlu0 0
    %914 = vperm.xlu0 %913, %v146
    %v915 = vpop.permute.xlu0 %914
    %918 = vset.pattern.permute.xlu0 0
    %919 = vperm.xlu0 %918, %v147
    %v920 = vpop.permute.xlu0 %919
    %v922 = vmul.f32 %v377, %v915
    %v923 = vmul.f32 %v378, %v920
    %v926 = vcombine.high %v922, %v922
    %v928 = vunpack.c.l.s4 1966171168
    %v929 = vunpack.c.0.s8 %v928
    %v930 = vlaneseq
    %v931 = vshrl.u32 %v930, 7
    %v932 = vsub.s32 %v929, %v931
    %v933 = vrot.slane %v922, %v932
    %v935 = vunpack.c.l.s4 1966171168
    %v936 = vunpack.c.0.s8 %v935
    %v937 = vlaneseq
    %v938 = vshrl.u32 %v937, 7
    %v939 = vsub.s32 %v936, %v938
    %v940 = vrot.slane %v926, %v939
    %v941 = vcombine.high %v933, %v933
    %v942 = vcombine.high %v940, %v940
    %v944 = vunpack.c.l.s4 1966171168
    %v945 = vunpack.c.0.s8 %v944
    %v946 = vlaneseq
    %v947 = vshrl.u32 %v946, 7
    %v948 = vsub.s32 %v945, %v947
    %v949 = vrot.slane %v933, %v948
    %v951 = vunpack.c.l.s4 1966171168
    %v952 = vunpack.c.0.s8 %v951
    %v953 = vlaneseq
    %v954 = vshrl.u32 %v953, 7
    %v955 = vsub.s32 %v952, %v954
    %v956 = vrot.slane %v940, %v955
    %v958 = vunpack.c.l.s4 1966171168
    %v959 = vunpack.c.0.s8 %v958
    %v960 = vlaneseq
    %v961 = vshrl.u32 %v960, 7
    %v962 = vsub.s32 %v959, %v961
    %v963 = vrot.slane %v941, %v962
    %v965 = vunpack.c.l.s4 1966171168
    %v966 = vunpack.c.0.s8 %v965
    %v967 = vlaneseq
    %v968 = vshrl.u32 %v967, 7
    %v969 = vsub.s32 %v966, %v968
    %v970 = vrot.slane %v942, %v969
    %v971 = vcombine.high %v949, %v949
    %v972 = vcombine.high %v956, %v956
    %v973 = vcombine.high %v963, %v963
    %v974 = vcombine.high %v970, %v970
    %v975 = vcombine.high %v923, %v923
    %v977 = vunpack.c.l.s4 1966171168
    %v978 = vunpack.c.0.s8 %v977
    %v979 = vlaneseq
    %v980 = vshrl.u32 %v979, 7
    %v981 = vsub.s32 %v978, %v980
    %v982 = vrot.slane %v923, %v981
    %v984 = vunpack.c.l.s4 1966171168
    %v985 = vunpack.c.0.s8 %v984
    %v986 = vlaneseq
    %v987 = vshrl.u32 %v986, 7
    %v988 = vsub.s32 %v985, %v987
    %v989 = vrot.slane %v975, %v988
    %v990 = vcombine.high %v982, %v982
    %v991 = vcombine.high %v989, %v989
    %v993 = vunpack.c.l.s4 1966171168
    %v994 = vunpack.c.0.s8 %v993
    %v995 = vlaneseq
    %v996 = vshrl.u32 %v995, 7
    %v997 = vsub.s32 %v994, %v996
    %v998 = vrot.slane %v982, %v997
    %v1000 = vunpack.c.l.s4 1966171168
    %v1001 = vunpack.c.0.s8 %v1000
    %v1002 = vlaneseq
    %v1003 = vshrl.u32 %v1002, 7
    %v1004 = vsub.s32 %v1001, %v1003
    %v1005 = vrot.slane %v989, %v1004
    %v1007 = vunpack.c.l.s4 1966171168
    %v1008 = vunpack.c.0.s8 %v1007
    %v1009 = vlaneseq
    %v1010 = vshrl.u32 %v1009, 7
    %v1011 = vsub.s32 %v1008, %v1010
    %v1012 = vrot.slane %v990, %v1011
    %v1014 = vunpack.c.l.s4 1966171168
    %v1015 = vunpack.c.0.s8 %v1014
    %v1016 = vlaneseq
    %v1017 = vshrl.u32 %v1016, 7
    %v1018 = vsub.s32 %v1015, %v1017
    %v1019 = vrot.slane %v991, %v1018
    %v1020 = vcombine.high %v998, %v998
    %v1021 = vcombine.high %v1005, %v1005
    %v1022 = vcombine.high %v1012, %v1012
    %v1023 = vcombine.high %v1019, %v1019
    %v1024 = vlaneseq
    %v1025 = vshrl.u32 %v1024, 7
    %v1026 = vsub.s32 0, %v1025
    %v1027 = vrot.slane %v949, %v1026
    %v1028 = vlaneseq
    %v1029 = vshrl.u32 %v1028, 7
    %v1030 = vsub.s32 0, %v1029
    %v1031 = vrot.slane %v963, %v1030
    %v1032 = vlaneseq
    %v1033 = vshrl.u32 %v1032, 7
    %v1034 = vsub.s32 0, %v1033
    %v1035 = vrot.slane %v971, %v1034
    %v1036 = vlaneseq
    %v1037 = vshrl.u32 %v1036, 7
    %v1038 = vsub.s32 0, %v1037
    %v1039 = vrot.slane %v973, %v1038
    %v1040 = vlaneseq
    %v1041 = vshrl.u32 %v1040, 7
    %v1042 = vsub.s32 0, %v1041
    %v1043 = vrot.slane %v956, %v1042
    %v1044 = vlaneseq
    %v1045 = vshrl.u32 %v1044, 7
    %v1046 = vsub.s32 0, %v1045
    %v1047 = vrot.slane %v970, %v1046
    %v1048 = vlaneseq
    %v1049 = vshrl.u32 %v1048, 7
    %v1050 = vsub.s32 0, %v1049
    %v1051 = vrot.slane %v972, %v1050
    %v1052 = vlaneseq
    %v1053 = vshrl.u32 %v1052, 7
    %v1054 = vsub.s32 0, %v1053
    %v1055 = vrot.slane %v974, %v1054
    %v1056 = vlaneseq
    %v1057 = vshrl.u32 %v1056, 7
    %v1058 = vsub.s32 0, %v1057
    %v1059 = vrot.slane %v998, %v1058
    %v1060 = vlaneseq
    %v1061 = vshrl.u32 %v1060, 7
    %v1062 = vsub.s32 0, %v1061
    %v1063 = vrot.slane %v1012, %v1062
    %v1064 = vlaneseq
    %v1065 = vshrl.u32 %v1064, 7
    %v1066 = vsub.s32 0, %v1065
    %v1067 = vrot.slane %v1020, %v1066
    %v1068 = vlaneseq
    %v1069 = vshrl.u32 %v1068, 7
    %v1070 = vsub.s32 0, %v1069
    %v1071 = vrot.slane %v1022, %v1070
    %v1072 = vlaneseq
    %v1073 = vshrl.u32 %v1072, 7
    %v1074 = vsub.s32 0, %v1073
    %v1075 = vrot.slane %v1005, %v1074
    %v1076 = vlaneseq
    %v1077 = vshrl.u32 %v1076, 7
    %v1078 = vsub.s32 0, %v1077
    %v1079 = vrot.slane %v1019, %v1078
    %v1080 = vlaneseq
    %v1081 = vshrl.u32 %v1080, 7
    %v1082 = vsub.s32 0, %v1081
    %v1083 = vrot.slane %v1021, %v1082
    %v1084 = vlaneseq
    %v1085 = vshrl.u32 %v1084, 7
    %v1086 = vsub.s32 0, %v1085
    %v1087 = vrot.slane %v1023, %v1086
    %v1104 = vmul.f32 %v389, %v1027
    %v1105 = vmul.f32 %v393, %v1027
    %v1106 = vmul.f32 %v400, %v1031
    %v1107 = vmul.f32 %v404, %v1031
    %v1108 = vmul.f32 %v411, %v1035
    %v1109 = vmul.f32 %v415, %v1035
    %v1110 = vmul.f32 %v422, %v1039
    %v1111 = vmul.f32 %v426, %v1039
    %v1112 = vmul.f32 %v433, %v1043
    %v1113 = vmul.f32 %v437, %v1043
    %v1114 = vmul.f32 %v444, %v1047
    %v1115 = vmul.f32 %v448, %v1047
    %v1116 = vmul.f32 %v455, %v1051
    %v1117 = vmul.f32 %v459, %v1051
    %v1118 = vmul.f32 %v466, %v1055
    %v1119 = vmul.f32 %v470, %v1055
    %v1120 = vmul.f32 %v477, %v1059
    %v1121 = vmul.f32 %v481, %v1059
    %v1122 = vmul.f32 %v488, %v1063
    %v1123 = vmul.f32 %v492, %v1063
    %v1124 = vmul.f32 %v499, %v1067
    %v1125 = vmul.f32 %v503, %v1067
    %v1126 = vmul.f32 %v510, %v1071
    %v1127 = vmul.f32 %v514, %v1071
    %v1128 = vmul.f32 %v521, %v1075
    %v1129 = vmul.f32 %v525, %v1075
    %v1130 = vmul.f32 %v532, %v1079
    %v1131 = vmul.f32 %v536, %v1079
    %v1132 = vmul.f32 %v543, %v1083
    %v1133 = vmul.f32 %v547, %v1083
    %v1134 = vmul.f32 %v554, %v1087
    %v1135 = vmul.f32 %v558, %v1087
    %v1136 = vsel %vm591, %v1104, 0.0
    %v1137 = vsel %vm591, %v1106, 0.0
    %v1138 = vadd.f32 %v1136, %v1137
    %v1139 = vsel %vm591, %v1108, 0.0
    %v1140 = vadd.f32 %v1138, %v1139
    %v1141 = vsel %vm591, %v1110, 0.0
    %v1142 = vadd.f32 %v1140, %v1141
    %v1143 = vsel %vm591, %v1105, 0.0
    %v1144 = vsel %vm591, %v1107, 0.0
    %v1145 = vadd.f32 %v1143, %v1144
    %v1146 = vsel %vm591, %v1109, 0.0
    %v1147 = vadd.f32 %v1145, %v1146
    %v1148 = vsel %vm591, %v1111, 0.0
    %v1149 = vadd.f32 %v1147, %v1148
    %v1150 = vsel %vm591, %v1112, 0.0
    %v1151 = vsel %vm591, %v1114, 0.0
    %v1152 = vadd.f32 %v1150, %v1151
    %v1153 = vsel %vm591, %v1116, 0.0
    %v1154 = vadd.f32 %v1152, %v1153
    %v1155 = vsel %vm591, %v1118, 0.0
    %v1156 = vadd.f32 %v1154, %v1155
    %v1157 = vsel %vm591, %v1113, 0.0
    %v1158 = vsel %vm591, %v1115, 0.0
    %v1159 = vadd.f32 %v1157, %v1158
    %v1160 = vsel %vm591, %v1117, 0.0
    %v1161 = vadd.f32 %v1159, %v1160
    %v1162 = vsel %vm591, %v1119, 0.0
    %v1163 = vadd.f32 %v1161, %v1162
    %v1164 = vsel %vm591, %v1120, 0.0
    %v1165 = vsel %vm591, %v1122, 0.0
    %v1166 = vadd.f32 %v1164, %v1165
    %v1167 = vsel %vm591, %v1124, 0.0
    %v1168 = vadd.f32 %v1166, %v1167
    %v1169 = vsel %vm591, %v1126, 0.0
    %v1170 = vadd.f32 %v1168, %v1169
    %v1171 = vsel %vm591, %v1121, 0.0
    %v1172 = vsel %vm591, %v1123, 0.0
    %v1173 = vadd.f32 %v1171, %v1172
    %v1174 = vsel %vm591, %v1125, 0.0
    %v1175 = vadd.f32 %v1173, %v1174
    %v1176 = vsel %vm591, %v1127, 0.0
    %v1177 = vadd.f32 %v1175, %v1176
    %v1178 = vsel %vm591, %v1128, 0.0
    %v1179 = vsel %vm591, %v1130, 0.0
    %v1180 = vadd.f32 %v1178, %v1179
    %v1181 = vsel %vm591, %v1132, 0.0
    %v1182 = vadd.f32 %v1180, %v1181
    %v1183 = vsel %vm591, %v1134, 0.0
    %v1184 = vadd.f32 %v1182, %v1183
    %v1185 = vsel %vm591, %v1129, 0.0
    %v1186 = vsel %vm591, %v1131, 0.0
    %v1187 = vadd.f32 %v1185, %v1186
    %v1188 = vsel %vm591, %v1133, 0.0
    %v1189 = vadd.f32 %v1187, %v1188
    %v1190 = vsel %vm591, %v1135, 0.0
    %v1191 = vadd.f32 %v1189, %v1190
    %v1192 = vadd.f32 %v598, %v862
    %v1193 = vadd.f32 %v605, %v869
    %v1194 = vadd.f32 %v612, %v876
    %v1195 = vadd.f32 %v619, %v883
    %v1196 = vadd.f32 %v626, %v890
    %v1197 = vadd.f32 %v633, %v897
    %v1198 = vadd.f32 %v640, %v904
    %v1199 = vadd.f32 %v647, %v911
    %v1200 = vadd.f32 %v1192, %v1142
    %v1201 = vadd.f32 %v1193, %v1149
    %v1202 = vadd.f32 %v1194, %v1156
    %v1203 = vadd.f32 %v1195, %v1163
    %v1204 = vadd.f32 %v1196, %v1170
    %v1205 = vadd.f32 %v1197, %v1177
    %v1206 = vadd.f32 %v1198, %v1184
    %v1207 = vadd.f32 %v1199, %v1191
    %v1208 = vsel %vm591, %v1200, -inf
    %1209 = vmax.xlane.f32.xlu0 %v1208
    %v1210 = vpop.xlane.xlu0 %1209
    %v1211 = vsel %vm591, %v1201, -inf
    %1212 = vmax.xlane.f32.xlu0 %v1211
    %v1213 = vpop.xlane.xlu0 %1212
    %v1214 = vsel %vm591, %v1202, -inf
    %1215 = vmax.xlane.f32.xlu0 %v1214
    %v1216 = vpop.xlane.xlu0 %1215
    %v1217 = vsel %vm591, %v1203, -inf
    %1218 = vmax.xlane.f32.xlu0 %v1217
    %v1219 = vpop.xlane.xlu0 %1218
    %v1220 = vsel %vm591, %v1204, -inf
    %1221 = vmax.xlane.f32.xlu0 %v1220
    %v1222 = vpop.xlane.xlu0 %1221
    %v1223 = vsel %vm591, %v1205, -inf
    %1224 = vmax.xlane.f32.xlu0 %v1223
    %v1225 = vpop.xlane.xlu0 %1224
    %v1226 = vsel %vm591, %v1206, -inf
    %1227 = vmax.xlane.f32.xlu0 %v1226
    %v1228 = vpop.xlane.xlu0 %1227
    %v1229 = vsel %vm591, %v1207, -inf
    %1230 = vmax.xlane.f32.xlu0 %v1229
    %v1231 = vpop.xlane.xlu0 %1230
    %v1232 = vsub.f32 %v1200, %v1210
    %v1233 = vsub.f32 %v1201, %v1213
    %v1234 = vsub.f32 %v1202, %v1216
    %v1235 = vsub.f32 %v1203, %v1219
    %v1236 = vsub.f32 %v1204, %v1222
    %v1237 = vsub.f32 %v1205, %v1225
    %v1238 = vsub.f32 %v1206, %v1228
    %v1239 = vsub.f32 %v1207, %v1231
    %v1240 = vmul.f32 %v1232, 1.442695
    %v1241 = vpow.pop %v1240
    %v1242 = vmul.f32 %v1233, 1.442695
    %v1243 = vpow.pop %v1242
    %v1244 = vmul.f32 %v1234, 1.442695
    %v1245 = vpow.pop %v1244
    %v1246 = vmul.f32 %v1235, 1.442695
    %v1247 = vpow.pop %v1246
    %v1248 = vmul.f32 %v1236, 1.442695
    %v1249 = vpow.pop %v1248
    %v1250 = vmul.f32 %v1237, 1.442695
    %v1251 = vpow.pop %v1250
    %v1252 = vmul.f32 %v1238, 1.442695
    %v1253 = vpow.pop %v1252
    %v1254 = vmul.f32 %v1239, 1.442695
    %v1255 = vpow.pop %v1254
    %v1256 = vsel %vm591, %v1241, 0.0
    %1257 = vadd.xlane.f32.xlu0 %v1256
    %v1258 = vpop.xlane.xlu0 %1257
    %v1259 = vsel %vm591, %v1243, 0.0
    %1260 = vadd.xlane.f32.xlu0 %v1259
    %v1261 = vpop.xlane.xlu0 %1260
    %v1262 = vsel %vm591, %v1245, 0.0
    %1263 = vadd.xlane.f32.xlu0 %v1262
    %v1264 = vpop.xlane.xlu0 %1263
    %v1265 = vsel %vm591, %v1247, 0.0
    %1266 = vadd.xlane.f32.xlu0 %v1265
    %v1267 = vpop.xlane.xlu0 %1266
    %v1268 = vsel %vm591, %v1249, 0.0
    %1269 = vadd.xlane.f32.xlu0 %v1268
    %v1270 = vpop.xlane.xlu0 %1269
    %v1271 = vsel %vm591, %v1251, 0.0
    %1272 = vadd.xlane.f32.xlu0 %v1271
    %v1273 = vpop.xlane.xlu0 %1272
    %v1274 = vsel %vm591, %v1253, 0.0
    %1275 = vadd.xlane.f32.xlu0 %v1274
    %v1276 = vpop.xlane.xlu0 %1275
    %v1277 = vsel %vm591, %v1255, 0.0
    %1278 = vadd.xlane.f32.xlu0 %v1277
    %v1279 = vpop.xlane.xlu0 %1278
    %v1280 = vrcp.pop %v1258
    %v1281 = vmul.f32 %v1241, %v1280
    %v1282 = vrcp.pop %v1261
    %v1283 = vmul.f32 %v1243, %v1282
    %v1284 = vrcp.pop %v1264
    %v1285 = vmul.f32 %v1245, %v1284
    %v1286 = vrcp.pop %v1267
    %v1287 = vmul.f32 %v1247, %v1286
    %v1288 = vrcp.pop %v1270
    %v1289 = vmul.f32 %v1249, %v1288
    %v1290 = vrcp.pop %v1273
    %v1291 = vmul.f32 %v1251, %v1290
    %v1292 = vrcp.pop %v1276
    %v1293 = vmul.f32 %v1253, %v1292
    %v1294 = vrcp.pop %v1279
    %v1295 = vmul.f32 %v1255, %v1294
    %1296 = vxpose.xlu0.b32.start [1/16] %v379, 128
    %1297 = vxpose.xlu0.b32.cont [2/16] 0.0, 128
    %1298 = vxpose.xlu0.b32.cont [3/16] 0.0, 128
    %1299 = vxpose.xlu0.b32.cont [4/16] 0.0, 128
    %1300 = vxpose.xlu0.b32.cont [5/16] 0.0, 128
    %1301 = vxpose.xlu0.b32.cont [6/16] 0.0, 128
    %1302 = vxpose.xlu0.b32.cont [7/16] 0.0, 128
    %1303 = vxpose.xlu0.b32.cont [8/16] 0.0, 128
    %1304 = vxpose.xlu0.b32.cont [9/16] 0.0, 128
    %1305 = vxpose.xlu0.b32.cont [10/16] 0.0, 128
    %1306 = vxpose.xlu0.b32.cont [11/16] 0.0, 128
    %1307 = vxpose.xlu0.b32.cont [12/16] 0.0, 128
    %1308 = vxpose.xlu0.b32.cont [13/16] 0.0, 128
    %1309 = vxpose.xlu0.b32.cont [14/16] 0.0, 128
    %1310 = vxpose.xlu0.b32.cont [15/16] 0.0, 128
    %1311 = vxpose.xlu0.b32.end [16/16] 0.0, 128
    %v1312 = vpop.trf.xlu0
    %v1313 = vpop.trf.xlu0
    %v1314 = vpop.trf.xlu0
    %v1315 = vpop.trf.xlu0
    %v1316 = vpop.trf.xlu0
    %v1317 = vpop.trf.xlu0
    %v1318 = vpop.trf.xlu0
    %v1319 = vpop.trf.xlu0
    %v1320 = vpop.trf.xlu0
    %v1321 = vpop.trf.xlu0
    %v1322 = vpop.trf.xlu0
    %v1323 = vpop.trf.xlu0
    %v1324 = vpop.trf.xlu0
    %v1325 = vpop.trf.xlu0
    %v1326 = vpop.trf.xlu0
    %v1327 = vpop.trf.xlu0
    %vm1328 = vcmask 64512
    %v1330 = vsel %vm1328, %v1312, 0
    %v1333 = vsel %vm1328, %v1313, 0
    %1335 = vmatprep.subr.mxu0 0.0
    %1336 = vmatpush1.msra.mxu0 0.0
    %1337 = vmatprep.subr.mxu0 0.0
    %1338 = vmatpush1.msra.mxu0 0.0
    %1339 = vmatprep.subr.mxu0 0.0
    %1340 = vmatpush1.msra.mxu0 0.0
    %1341 = vmatprep.subr.mxu0 0.0
    %1342 = vmatpush1.msra.mxu0 0.0
    %1343 = vmatprep.subr.mxu0 0.0
    %1344 = vmatpush1.msra.mxu0 0.0
    %1345 = vmatprep.subr.mxu0 0.0
    %1346 = vmatpush1.msra.mxu0 0.0
    %1347 = vmatprep.subr.mxu0 0.0
    %1348 = vmatpush1.msra.mxu0 0.0
    %1349 = vmatprep.subr.mxu0 0.0
    %1350 = vmatpush1.msra.mxu0 0.0
    %1351 = vmatprep.subr.mxu0 0.0
    %1352 = vmatpush1.msra.mxu0 0.0
    %1353 = vmatprep.subr.mxu0 0.0
    %1354 = vmatpush1.msra.mxu0 0.0
    %1355 = vmatprep.subr.mxu0 0.0
    %1356 = vmatpush1.msra.mxu0 0.0
    %1357 = vmatprep.subr.mxu0 0.0
    %1358 = vmatpush1.msra.mxu0 0.0
    %1359 = vmatprep.subr.mxu0 0.0
    %1360 = vmatpush1.msra.mxu0 0.0
    %1361 = vmatprep.subr.mxu0 0.0
    %1362 = vmatpush1.msra.mxu0 0.0
    %1363 = vmatprep.subr.mxu0 0.0
    %1364 = vmatpush1.msra.mxu0 0.0
    %1365 = vmatprep.subr.mxu0 0.0
    %1366 = vmatpush1.msra.mxu0 %v150
    %1367 = vmatprep.subr.mxu0 0.0
    %1368 = vmatpush2.msra.mxu0 0.0
    %1369 = vmatprep.subr.mxu0 0.0
    %1370 = vmatpush2.msra.mxu0 0.0
    %1371 = vmatprep.subr.mxu0 0.0
    %1372 = vmatpush2.msra.mxu0 0.0
    %1373 = vmatprep.subr.mxu0 0.0
    %1374 = vmatpush2.msra.mxu0 0.0
    %1375 = vmatprep.subr.mxu0 0.0
    %1376 = vmatpush2.msra.mxu0 0.0
    %1377 = vmatprep.subr.mxu0 0.0
    %1378 = vmatpush2.msra.mxu0 0.0
    %1379 = vmatprep.subr.mxu0 0.0
    %1380 = vmatpush2.msra.mxu0 0.0
    %1381 = vmatprep.subr.mxu0 0.0
    %1382 = vmatpush2.msra.mxu0 0.0
    %1383 = vmatprep.subr.mxu0 0.0
    %1384 = vmatpush2.msra.mxu0 0.0
    %1385 = vmatprep.subr.mxu0 0.0
    %1386 = vmatpush2.msra.mxu0 0.0
    %1387 = vmatprep.subr.mxu0 0.0
    %1388 = vmatpush2.msra.mxu0 0.0
    %1389 = vmatprep.subr.mxu0 0.0
    %1390 = vmatpush2.msra.mxu0 0.0
    %1391 = vmatprep.subr.mxu0 0.0
    %1392 = vmatpush2.msra.mxu0 0.0
    %1393 = vmatprep.subr.mxu0 0.0
    %1394 = vmatpush2.msra.mxu0 0.0
    %1395 = vmatprep.subr.mxu0 0.0
    %1396 = vmatpush2.msra.mxu0 0.0
    %1397 = vmatprep.subr.mxu0 0.0
    %1398 = vmatpush2.msra.mxu0 0.0
    %1399 = vmatprep.mubr.f32.mxu0 0.0
    %1400 = vmatmul.mubr.f32.gmra.mxu0 %v1330
    %v1401 = vpop.f32.mrf.mxu0
    %v1402 = vadd.f32 0.0, %v1401
    %v1403 = vpop.f32.mrf.mxu0
    %1404 = vmatprep.mubr.f32.mxu0 0.0
    %1405 = vmatmul.mubr.f32.gmra.mxu0 %v1333
    %v1406 = vpop.f32.mrf.mxu0
    %v1407 = vadd.f32 0.0, %v1406
    %v1408 = vpop.f32.mrf.mxu0
    %1409 = vdwg.mxu0
    %v1411 = vsel %vm591, %v1281, 0
    %v1414 = vsel %vm591, %v1283, 0
    %1416 = vmatprep.subr.mxu0 0.0
    %1417 = vmatpush1.msra.mxu0 0.0
    %1418 = vmatprep.subr.mxu0 0.0
    %1419 = vmatpush1.msra.mxu0 0.0
    %1420 = vmatprep.subr.mxu0 0.0
    %1421 = vmatpush1.msra.mxu0 0.0
    %1422 = vmatprep.subr.mxu0 0.0
    %1423 = vmatpush1.msra.mxu0 0.0
    %1424 = vmatprep.subr.mxu0 0.0
    %1425 = vmatpush1.msra.mxu0 0.0
    %1426 = vmatprep.subr.mxu0 0.0
    %1427 = vmatpush1.msra.mxu0 0.0
    %1428 = vmatprep.subr.mxu0 0.0
    %1429 = vmatpush1.msra.mxu0 0.0
    %1430 = vmatprep.subr.mxu0 0.0
    %1431 = vmatpush1.msra.mxu0 0.0
    %1432 = vmatprep.subr.mxu0 0.0
    %1433 = vmatpush1.msra.mxu0 0.0
    %1434 = vmatprep.subr.mxu0 0.0
    %1435 = vmatpush1.msra.mxu0 0.0
    %1436 = vmatprep.subr.mxu0 0.0
    %1437 = vmatpush1.msra.mxu0 0.0
    %1438 = vmatprep.subr.mxu0 0.0
    %1439 = vmatpush1.msra.mxu0 0.0
    %1440 = vmatprep.subr.mxu0 0.0
    %1441 = vmatpush1.msra.mxu0 0.0
    %1442 = vmatprep.subr.mxu0 0.0
    %1443 = vmatpush1.msra.mxu0 0.0
    %1444 = vmatprep.subr.mxu0 0.0
    %1445 = vmatpush1.msra.mxu0 %v1407
    %1446 = vmatprep.subr.mxu0 0.0
    %1447 = vmatpush1.msra.mxu0 %v1402
    %1448 = vmatprep.subr.mxu0 0.0
    %1449 = vmatpush2.msra.mxu0 0.0
    %1450 = vmatprep.subr.mxu0 0.0
    %1451 = vmatpush2.msra.mxu0 0.0
    %1452 = vmatprep.subr.mxu0 0.0
    %1453 = vmatpush2.msra.mxu0 0.0
    %1454 = vmatprep.subr.mxu0 0.0
    %1455 = vmatpush2.msra.mxu0 0.0
    %1456 = vmatprep.subr.mxu0 0.0
    %1457 = vmatpush2.msra.mxu0 0.0
    %1458 = vmatprep.subr.mxu0 0.0
    %1459 = vmatpush2.msra.mxu0 0.0
    %1460 = vmatprep.subr.mxu0 0.0
    %1461 = vmatpush2.msra.mxu0 0.0
    %1462 = vmatprep.subr.mxu0 0.0
    %1463 = vmatpush2.msra.mxu0 0.0
    %1464 = vmatprep.subr.mxu0 0.0
    %1465 = vmatpush2.msra.mxu0 0.0
    %1466 = vmatprep.subr.mxu0 0.0
    %1467 = vmatpush2.msra.mxu0 0.0
    %1468 = vmatprep.subr.mxu0 0.0
    %1469 = vmatpush2.msra.mxu0 0.0
    %1470 = vmatprep.subr.mxu0 0.0
    %1471 = vmatpush2.msra.mxu0 0.0
    %1472 = vmatprep.subr.mxu0 0.0
    %1473 = vmatpush2.msra.mxu0 0.0
    %1474 = vmatprep.subr.mxu0 0.0
    %1475 = vmatpush2.msra.mxu0 0.0
    %1476 = vmatprep.subr.mxu0 0.0
    %1477 = vmatpush2.msra.mxu0 0.0
    %1478 = vmatprep.subr.mxu0 0.0
    %1479 = vmatpush2.msra.mxu0 0.0
    %1480 = vmatprep.mubr.f32.mxu0 0.0
    %1481 = vmatmul.mubr.f32.gmra.mxu0 %v1411
    %v1482 = vpop.f32.mrf.mxu0
    %v1483 = vadd.f32 0.0, %v1482
    %v1484 = vpop.f32.mrf.mxu0
    %1485 = vmatprep.mubr.f32.mxu0 0.0
    %1486 = vmatmul.mubr.f32.gmra.mxu0 %v1414
    %v1487 = vpop.f32.mrf.mxu0
    %v1488 = vadd.f32 0.0, %v1487
    %v1489 = vpop.f32.mrf.mxu0
    %1490 = vdwg.mxu0
    %1491 = vmatprep.subr.mxu0 0.0
    %1492 = vmatpush1.msra.mxu0 0.0
    %1493 = vmatprep.subr.mxu0 0.0
    %1494 = vmatpush1.msra.mxu0 0.0
    %1495 = vmatprep.subr.mxu0 0.0
    %1496 = vmatpush1.msra.mxu0 0.0
    %1497 = vmatprep.subr.mxu0 0.0
    %1498 = vmatpush1.msra.mxu0 0.0
    %1499 = vmatprep.subr.mxu0 0.0
    %1500 = vmatpush1.msra.mxu0 0.0
    %1501 = vmatprep.subr.mxu0 0.0
    %1502 = vmatpush1.msra.mxu0 0.0
    %1503 = vmatprep.subr.mxu0 0.0
    %1504 = vmatpush1.msra.mxu0 0.0
    %1505 = vmatprep.subr.mxu0 0.0
    %1506 = vmatpush1.msra.mxu0 0.0
    %1507 = vmatprep.subr.mxu0 0.0
    %1508 = vmatpush1.msra.mxu0 0.0
    %1509 = vmatprep.subr.mxu0 0.0
    %1510 = vmatpush1.msra.mxu0 0.0
    %1511 = vmatprep.subr.mxu0 0.0
    %1512 = vmatpush1.msra.mxu0 0.0
    %1513 = vmatprep.subr.mxu0 0.0
    %1514 = vmatpush1.msra.mxu0 0.0
    %1515 = vmatprep.subr.mxu0 0.0
    %1516 = vmatpush1.msra.mxu0 0.0
    %1517 = vmatprep.subr.mxu0 0.0
    %1518 = vmatpush1.msra.mxu0 0.0
    %1519 = vmatprep.subr.mxu0 0.0
    %1520 = vmatpush1.msra.mxu0 %v149
    %1521 = vmatprep.subr.mxu0 0.0
    %1522 = vmatpush1.msra.mxu0 %v148
    %1523 = vmatprep.subr.mxu0 0.0
    %1524 = vmatpush2.msra.mxu0 0.0
    %1525 = vmatprep.subr.mxu0 0.0
    %1526 = vmatpush2.msra.mxu0 0.0
    %1527 = vmatprep.subr.mxu0 0.0
    %1528 = vmatpush2.msra.mxu0 0.0
    %1529 = vmatprep.subr.mxu0 0.0
    %1530 = vmatpush2.msra.mxu0 0.0
    %1531 = vmatprep.subr.mxu0 0.0
    %1532 = vmatpush2.msra.mxu0 0.0
    %1533 = vmatprep.subr.mxu0 0.0
    %1534 = vmatpush2.msra.mxu0 0.0
    %1535 = vmatprep.subr.mxu0 0.0
    %1536 = vmatpush2.msra.mxu0 0.0
    %1537 = vmatprep.subr.mxu0 0.0
    %1538 = vmatpush2.msra.mxu0 0.0
    %1539 = vmatprep.subr.mxu0 0.0
    %1540 = vmatpush2.msra.mxu0 0.0
    %1541 = vmatprep.subr.mxu0 0.0
    %1542 = vmatpush2.msra.mxu0 0.0
    %1543 = vmatprep.subr.mxu0 0.0
    %1544 = vmatpush2.msra.mxu0 0.0
    %1545 = vmatprep.subr.mxu0 0.0
    %1546 = vmatpush2.msra.mxu0 0.0
    %1547 = vmatprep.subr.mxu0 0.0
    %1548 = vmatpush2.msra.mxu0 0.0
    %1549 = vmatprep.subr.mxu0 0.0
    %1550 = vmatpush2.msra.mxu0 0.0
    %1551 = vmatprep.subr.mxu0 0.0
    %1552 = vmatpush2.msra.mxu0 0.0
    %1553 = vmatprep.subr.mxu0 0.0
    %1554 = vmatpush2.msra.mxu0 0.0
    %1555 = vmatprep.mubr.f32.mxu0 0.0
    %1556 = vmatmul.mubr.f32.gmra.mxu0 %v1411
    %v1557 = vpop.f32.mrf.mxu0
    %v1558 = vadd.f32 0.0, %v1557
    %v1559 = vpop.f32.mrf.mxu0
    %1560 = vmatprep.mubr.f32.mxu0 0.0
    %1561 = vmatmul.mubr.f32.gmra.mxu0 %v1414
    %v1562 = vpop.f32.mrf.mxu0
    %v1563 = vadd.f32 0.0, %v1562
    %v1564 = vpop.f32.mrf.mxu0
    %1565 = vdwg.mxu0
    %v1566 = vld [vmem:[%s10] sm:$0x1]
    %v1568 = vlaneseq
    %v1569 = vshrl.u32 %v1568, 7
    %v1570 = vsub.s32 0, %v1569
    %v1571 = vrot.slane %v1566, %v1570
    %v1573 = vmul.f32 %v1571, %v1558
    %v1574 = vmul.f32 %v1571, %v1563
    %v1575 = vld [vmem:[%s11] sm:$0x1]
    %v1577 = vlaneseq
    %v1578 = vshrl.u32 %v1577, 7
    %v1579 = vsub.s32 0, %v1578
    %v1580 = vrot.slane %v1575, %v1579
    %v1582 = vmul.f32 %v1580, %v1483
    %v1583 = vmul.f32 %v1580, %v1488
    %v1584 = vadd.f32 %v1573, %v1582
    %v1585 = vadd.f32 %v1574, %v1583
    %v1586 = vmul.f32 %v1584, %v151
    %v1587 = vmul.f32 %v1585, %v152
    %v1588 = vadd.f32 %v1586, %v1587
    %v1589 = vrot.slane %v1588, 4
    %v1590 = vadd.f32 %v1588, %v1589
    %v1591 = vrot.slane %v1590, 2
    %v1592 = vadd.f32 %v1590, %v1591
    %v1593 = vrot.slane %v1592, 1
    %v1594 = vadd.f32 %v1592, %v1593
    %v1595 = vld [vmem:[%s12] sm:$0x1]
    %v1596 = vadd.f32 %v1594, %v1595
    %1597 = vst [vmem:[%s13] sm:$0x1] %v1596
    %1598 = vxpose.xlu0.b32.start [1/16] %v380, 128
    %1599 = vxpose.xlu0.b32.cont [2/16] 0.0, 128
    %1600 = vxpose.xlu0.b32.cont [3/16] 0.0, 128
    %1601 = vxpose.xlu0.b32.cont [4/16] 0.0, 128
    %1602 = vxpose.xlu0.b32.cont [5/16] 0.0, 128
    %1603 = vxpose.xlu0.b32.cont [6/16] 0.0, 128
    %1604 = vxpose.xlu0.b32.cont [7/16] 0.0, 128
    %1605 = vxpose.xlu0.b32.cont [8/16] 0.0, 128
    %1606 = vxpose.xlu0.b32.cont [9/16] 0.0, 128
    %1607 = vxpose.xlu0.b32.cont [10/16] 0.0, 128
    %1608 = vxpose.xlu0.b32.cont [11/16] 0.0, 128
    %1609 = vxpose.xlu0.b32.cont [12/16] 0.0, 128
    %1610 = vxpose.xlu0.b32.cont [13/16] 0.0, 128
    %1611 = vxpose.xlu0.b32.cont [14/16] 0.0, 128
    %1612 = vxpose.xlu0.b32.cont [15/16] 0.0, 128
    %1613 = vxpose.xlu0.b32.end [16/16] 0.0, 128
    %v1614 = vpop.trf.xlu0
    %v1615 = vpop.trf.xlu0
    %v1616 = vpop.trf.xlu0
    %v1617 = vpop.trf.xlu0
    %v1618 = vpop.trf.xlu0
    %v1619 = vpop.trf.xlu0
    %v1620 = vpop.trf.xlu0
    %v1621 = vpop.trf.xlu0
    %v1622 = vpop.trf.xlu0
    %v1623 = vpop.trf.xlu0
    %v1624 = vpop.trf.xlu0
    %v1625 = vpop.trf.xlu0
    %v1626 = vpop.trf.xlu0
    %v1627 = vpop.trf.xlu0
    %v1628 = vpop.trf.xlu0
    %v1629 = vpop.trf.xlu0
    %v1631 = vsel %vm1328, %v1614, 0
    %v1634 = vsel %vm1328, %v1615, 0
    %1636 = vmatprep.subr.mxu0 0.0
    %1637 = vmatpush1.msra.mxu0 0.0
    %1638 = vmatprep.subr.mxu0 0.0
    %1639 = vmatpush1.msra.mxu0 0.0
    %1640 = vmatprep.subr.mxu0 0.0
    %1641 = vmatpush1.msra.mxu0 0.0
    %1642 = vmatprep.subr.mxu0 0.0
    %1643 = vmatpush1.msra.mxu0 0.0
    %1644 = vmatprep.subr.mxu0 0.0
    %1645 = vmatpush1.msra.mxu0 0.0
    %1646 = vmatprep.subr.mxu0 0.0
    %1647 = vmatpush1.msra.mxu0 0.0
    %1648 = vmatprep.subr.mxu0 0.0
    %1649 = vmatpush1.msra.mxu0 0.0
    %1650 = vmatprep.subr.mxu0 0.0
    %1651 = vmatpush1.msra.mxu0 0.0
    %1652 = vmatprep.subr.mxu0 0.0
    %1653 = vmatpush1.msra.mxu0 0.0
    %1654 = vmatprep.subr.mxu0 0.0
    %1655 = vmatpush1.msra.mxu0 0.0
    %1656 = vmatprep.subr.mxu0 0.0
    %1657 = vmatpush1.msra.mxu0 0.0
    %1658 = vmatprep.subr.mxu0 0.0
    %1659 = vmatpush1.msra.mxu0 0.0
    %1660 = vmatprep.subr.mxu0 0.0
    %1661 = vmatpush1.msra.mxu0 0.0
    %1662 = vmatprep.subr.mxu0 0.0
    %1663 = vmatpush1.msra.mxu0 0.0
    %1664 = vmatprep.subr.mxu0 0.0
    %1665 = vmatpush1.msra.mxu0 0.0
    %1666 = vmatprep.subr.mxu0 0.0
    %1667 = vmatpush1.msra.mxu0 %v150
    %1668 = vmatprep.subr.mxu0 0.0
    %1669 = vmatpush2.msra.mxu0 0.0
    %1670 = vmatprep.subr.mxu0 0.0
    %1671 = vmatpush2.msra.mxu0 0.0
    %1672 = vmatprep.subr.mxu0 0.0
    %1673 = vmatpush2.msra.mxu0 0.0
    %1674 = vmatprep.subr.mxu0 0.0
    %1675 = vmatpush2.msra.mxu0 0.0
    %1676 = vmatprep.subr.mxu0 0.0
    %1677 = vmatpush2.msra.mxu0 0.0
    %1678 = vmatprep.subr.mxu0 0.0
    %1679 = vmatpush2.msra.mxu0 0.0
    %1680 = vmatprep.subr.mxu0 0.0
    %1681 = vmatpush2.msra.mxu0 0.0
    %1682 = vmatprep.subr.mxu0 0.0
    %1683 = vmatpush2.msra.mxu0 0.0
    %1684 = vmatprep.subr.mxu0 0.0
    %1685 = vmatpush2.msra.mxu0 0.0
    %1686 = vmatprep.subr.mxu0 0.0
    %1687 = vmatpush2.msra.mxu0 0.0
    %1688 = vmatprep.subr.mxu0 0.0
    %1689 = vmatpush2.msra.mxu0 0.0
    %1690 = vmatprep.subr.mxu0 0.0
    %1691 = vmatpush2.msra.mxu0 0.0
    %1692 = vmatprep.subr.mxu0 0.0
    %1693 = vmatpush2.msra.mxu0 0.0
    %1694 = vmatprep.subr.mxu0 0.0
    %1695 = vmatpush2.msra.mxu0 0.0
    %1696 = vmatprep.subr.mxu0 0.0
    %1697 = vmatpush2.msra.mxu0 0.0
    %1698 = vmatprep.subr.mxu0 0.0
    %1699 = vmatpush2.msra.mxu0 0.0
    %1700 = vmatprep.mubr.f32.mxu0 0.0
    %1701 = vmatmul.mubr.f32.gmra.mxu0 %v1631
    %v1702 = vpop.f32.mrf.mxu0
    %v1703 = vadd.f32 0.0, %v1702
    %v1704 = vpop.f32.mrf.mxu0
    %1705 = vmatprep.mubr.f32.mxu0 0.0
    %1706 = vmatmul.mubr.f32.gmra.mxu0 %v1634
    %v1707 = vpop.f32.mrf.mxu0
    %v1708 = vadd.f32 0.0, %v1707
    %v1709 = vpop.f32.mrf.mxu0
    %1710 = vdwg.mxu0
    %v1712 = vsel %vm591, %v1285, 0
    %v1715 = vsel %vm591, %v1287, 0
    %1717 = vmatprep.subr.mxu0 0.0
    %1718 = vmatpush1.msra.mxu0 0.0
    %1719 = vmatprep.subr.mxu0 0.0
    %1720 = vmatpush1.msra.mxu0 0.0
    %1721 = vmatprep.subr.mxu0 0.0
    %1722 = vmatpush1.msra.mxu0 0.0
    %1723 = vmatprep.subr.mxu0 0.0
    %1724 = vmatpush1.msra.mxu0 0.0
    %1725 = vmatprep.subr.mxu0 0.0
    %1726 = vmatpush1.msra.mxu0 0.0
    %1727 = vmatprep.subr.mxu0 0.0
    %1728 = vmatpush1.msra.mxu0 0.0
    %1729 = vmatprep.subr.mxu0 0.0
    %1730 = vmatpush1.msra.mxu0 0.0
    %1731 = vmatprep.subr.mxu0 0.0
    %1732 = vmatpush1.msra.mxu0 0.0
    %1733 = vmatprep.subr.mxu0 0.0
    %1734 = vmatpush1.msra.mxu0 0.0
    %1735 = vmatprep.subr.mxu0 0.0
    %1736 = vmatpush1.msra.mxu0 0.0
    %1737 = vmatprep.subr.mxu0 0.0
    %1738 = vmatpush1.msra.mxu0 0.0
    %1739 = vmatprep.subr.mxu0 0.0
    %1740 = vmatpush1.msra.mxu0 0.0
    %1741 = vmatprep.subr.mxu0 0.0
    %1742 = vmatpush1.msra.mxu0 0.0
    %1743 = vmatprep.subr.mxu0 0.0
    %1744 = vmatpush1.msra.mxu0 0.0
    %1745 = vmatprep.subr.mxu0 0.0
    %1746 = vmatpush1.msra.mxu0 %v1708
    %1747 = vmatprep.subr.mxu0 0.0
    %1748 = vmatpush1.msra.mxu0 %v1703
    %1749 = vmatprep.subr.mxu0 0.0
    %1750 = vmatpush2.msra.mxu0 0.0
    %1751 = vmatprep.subr.mxu0 0.0
    %1752 = vmatpush2.msra.mxu0 0.0
    %1753 = vmatprep.subr.mxu0 0.0
    %1754 = vmatpush2.msra.mxu0 0.0
    %1755 = vmatprep.subr.mxu0 0.0
    %1756 = vmatpush2.msra.mxu0 0.0
    %1757 = vmatprep.subr.mxu0 0.0
    %1758 = vmatpush2.msra.mxu0 0.0
    %1759 = vmatprep.subr.mxu0 0.0
    %1760 = vmatpush2.msra.mxu0 0.0
    %1761 = vmatprep.subr.mxu0 0.0
    %1762 = vmatpush2.msra.mxu0 0.0
    %1763 = vmatprep.subr.mxu0 0.0
    %1764 = vmatpush2.msra.mxu0 0.0
    %1765 = vmatprep.subr.mxu0 0.0
    %1766 = vmatpush2.msra.mxu0 0.0
    %1767 = vmatprep.subr.mxu0 0.0
    %1768 = vmatpush2.msra.mxu0 0.0
    %1769 = vmatprep.subr.mxu0 0.0
    %1770 = vmatpush2.msra.mxu0 0.0
    %1771 = vmatprep.subr.mxu0 0.0
    %1772 = vmatpush2.msra.mxu0 0.0
    %1773 = vmatprep.subr.mxu0 0.0
    %1774 = vmatpush2.msra.mxu0 0.0
    %1775 = vmatprep.subr.mxu0 0.0
    %1776 = vmatpush2.msra.mxu0 0.0
    %1777 = vmatprep.subr.mxu0 0.0
    %1778 = vmatpush2.msra.mxu0 0.0
    %1779 = vmatprep.subr.mxu0 0.0
    %1780 = vmatpush2.msra.mxu0 0.0
    %1781 = vmatprep.mubr.f32.mxu0 0.0
    %1782 = vmatmul.mubr.f32.gmra.mxu0 %v1712
    %v1783 = vpop.f32.mrf.mxu0
    %v1784 = vadd.f32 0.0, %v1783
    %v1785 = vpop.f32.mrf.mxu0
    %1786 = vmatprep.mubr.f32.mxu0 0.0
    %1787 = vmatmul.mubr.f32.gmra.mxu0 %v1715
    %v1788 = vpop.f32.mrf.mxu0
    %v1789 = vadd.f32 0.0, %v1788
    %v1790 = vpop.f32.mrf.mxu0
    %1791 = vdwg.mxu0
    %1792 = vmatprep.subr.mxu0 0.0
    %1793 = vmatpush1.msra.mxu0 0.0
    %1794 = vmatprep.subr.mxu0 0.0
    %1795 = vmatpush1.msra.mxu0 0.0
    %1796 = vmatprep.subr.mxu0 0.0
    %1797 = vmatpush1.msra.mxu0 0.0
    %1798 = vmatprep.subr.mxu0 0.0
    %1799 = vmatpush1.msra.mxu0 0.0
    %1800 = vmatprep.subr.mxu0 0.0
    %1801 = vmatpush1.msra.mxu0 0.0
    %1802 = vmatprep.subr.mxu0 0.0
    %1803 = vmatpush1.msra.mxu0 0.0
    %1804 = vmatprep.subr.mxu0 0.0
    %1805 = vmatpush1.msra.mxu0 0.0
    %1806 = vmatprep.subr.mxu0 0.0
    %1807 = vmatpush1.msra.mxu0 0.0
    %1808 = vmatprep.subr.mxu0 0.0
    %1809 = vmatpush1.msra.mxu0 0.0
    %1810 = vmatprep.subr.mxu0 0.0
    %1811 = vmatpush1.msra.mxu0 0.0
    %1812 = vmatprep.subr.mxu0 0.0
    %1813 = vmatpush1.msra.mxu0 0.0
    %1814 = vmatprep.subr.mxu0 0.0
    %1815 = vmatpush1.msra.mxu0 0.0
    %1816 = vmatprep.subr.mxu0 0.0
    %1817 = vmatpush1.msra.mxu0 0.0
    %1818 = vmatprep.subr.mxu0 0.0
    %1819 = vmatpush1.msra.mxu0 0.0
    %1820 = vmatprep.subr.mxu0 0.0
    %1821 = vmatpush1.msra.mxu0 %v149
    %1822 = vmatprep.subr.mxu0 0.0
    %1823 = vmatpush1.msra.mxu0 %v148
    %1824 = vmatprep.subr.mxu0 0.0
    %1825 = vmatpush2.msra.mxu0 0.0
    %1826 = vmatprep.subr.mxu0 0.0
    %1827 = vmatpush2.msra.mxu0 0.0
    %1828 = vmatprep.subr.mxu0 0.0
    %1829 = vmatpush2.msra.mxu0 0.0
    %1830 = vmatprep.subr.mxu0 0.0
    %1831 = vmatpush2.msra.mxu0 0.0
    %1832 = vmatprep.subr.mxu0 0.0
    %1833 = vmatpush2.msra.mxu0 0.0
    %1834 = vmatprep.subr.mxu0 0.0
    %1835 = vmatpush2.msra.mxu0 0.0
    %1836 = vmatprep.subr.mxu0 0.0
    %1837 = vmatpush2.msra.mxu0 0.0
    %1838 = vmatprep.subr.mxu0 0.0
    %1839 = vmatpush2.msra.mxu0 0.0
    %1840 = vmatprep.subr.mxu0 0.0
    %1841 = vmatpush2.msra.mxu0 0.0
    %1842 = vmatprep.subr.mxu0 0.0
    %1843 = vmatpush2.msra.mxu0 0.0
    %1844 = vmatprep.subr.mxu0 0.0
    %1845 = vmatpush2.msra.mxu0 0.0
    %1846 = vmatprep.subr.mxu0 0.0
    %1847 = vmatpush2.msra.mxu0 0.0
    %1848 = vmatprep.subr.mxu0 0.0
    %1849 = vmatpush2.msra.mxu0 0.0
    %1850 = vmatprep.subr.mxu0 0.0
    %1851 = vmatpush2.msra.mxu0 0.0
    %1852 = vmatprep.subr.mxu0 0.0
    %1853 = vmatpush2.msra.mxu0 0.0
    %1854 = vmatprep.subr.mxu0 0.0
    %1855 = vmatpush2.msra.mxu0 0.0
    %1856 = vmatprep.mubr.f32.mxu0 0.0
    %1857 = vmatmul.mubr.f32.gmra.mxu0 %v1712
    %v1858 = vpop.f32.mrf.mxu0
    %v1859 = vadd.f32 0.0, %v1858
    %v1860 = vpop.f32.mrf.mxu0
    %1861 = vmatprep.mubr.f32.mxu0 0.0
    %1862 = vmatmul.mubr.f32.gmra.mxu0 %v1715
    %v1863 = vpop.f32.mrf.mxu0
    %v1864 = vadd.f32 0.0, %v1863
    %v1865 = vpop.f32.mrf.mxu0
    %1866 = vdwg.mxu0
    %s1867 = scalar_lea.vmem %s10, 1
    %v1868 = vld [vmem:[%s1867] sm:$0x1]
    %v1870 = vlaneseq
    %v1871 = vshrl.u32 %v1870, 7
    %v1872 = vsub.s32 0, %v1871
    %v1873 = vrot.slane %v1868, %v1872
    %v1875 = vmul.f32 %v1873, %v1859
    %v1876 = vmul.f32 %v1873, %v1864
    %s1877 = scalar_lea.vmem %s11, 1
    %v1878 = vld [vmem:[%s1877] sm:$0x1]
    %v1880 = vlaneseq
    %v1881 = vshrl.u32 %v1880, 7
    %v1882 = vsub.s32 0, %v1881
    %v1883 = vrot.slane %v1878, %v1882
    %v1885 = vmul.f32 %v1883, %v1784
    %v1886 = vmul.f32 %v1883, %v1789
    %v1887 = vadd.f32 %v1875, %v1885
    %v1888 = vadd.f32 %v1876, %v1886
    %v1889 = vmul.f32 %v1887, %v151
    %v1890 = vmul.f32 %v1888, %v152
    %v1891 = vadd.f32 %v1889, %v1890
    %v1892 = vrot.slane %v1891, 4
    %v1893 = vadd.f32 %v1891, %v1892
    %v1894 = vrot.slane %v1893, 2
    %v1895 = vadd.f32 %v1893, %v1894
    %v1896 = vrot.slane %v1895, 1
    %v1897 = vadd.f32 %v1895, %v1896
    %s1898 = scalar_lea.vmem %s12, 1
    %v1899 = vld [vmem:[%s1898] sm:$0x1]
    %v1900 = vadd.f32 %v1897, %v1899
    %1901 = vst [vmem:[%s13 + $0x1] sm:$0x1] %v1900
    %1902 = vxpose.xlu0.b32.start [1/16] %v381, 128
    %1903 = vxpose.xlu0.b32.cont [2/16] 0.0, 128
    %1904 = vxpose.xlu0.b32.cont [3/16] 0.0, 128
    %1905 = vxpose.xlu0.b32.cont [4/16] 0.0, 128
    %1906 = vxpose.xlu0.b32.cont [5/16] 0.0, 128
    %1907 = vxpose.xlu0.b32.cont [6/16] 0.0, 128
    %1908 = vxpose.xlu0.b32.cont [7/16] 0.0, 128
    %1909 = vxpose.xlu0.b32.cont [8/16] 0.0, 128
    %1910 = vxpose.xlu0.b32.cont [9/16] 0.0, 128
    %1911 = vxpose.xlu0.b32.cont [10/16] 0.0, 128
    %1912 = vxpose.xlu0.b32.cont [11/16] 0.0, 128
    %1913 = vxpose.xlu0.b32.cont [12/16] 0.0, 128
    %1914 = vxpose.xlu0.b32.cont [13/16] 0.0, 128
    %1915 = vxpose.xlu0.b32.cont [14/16] 0.0, 128
    %1916 = vxpose.xlu0.b32.cont [15/16] 0.0, 128
    %1917 = vxpose.xlu0.b32.end [16/16] 0.0, 128
    %v1918 = vpop.trf.xlu0
    %v1919 = vpop.trf.xlu0
    %v1920 = vpop.trf.xlu0
    %v1921 = vpop.trf.xlu0
    %v1922 = vpop.trf.xlu0
    %v1923 = vpop.trf.xlu0
    %v1924 = vpop.trf.xlu0
    %v1925 = vpop.trf.xlu0
    %v1926 = vpop.trf.xlu0
    %v1927 = vpop.trf.xlu0
    %v1928 = vpop.trf.xlu0
    %v1929 = vpop.trf.xlu0
    %v1930 = vpop.trf.xlu0
    %v1931 = vpop.trf.xlu0
    %v1932 = vpop.trf.xlu0
    %v1933 = vpop.trf.xlu0
    %v1935 = vsel %vm1328, %v1918, 0
    %v1938 = vsel %vm1328, %v1919, 0
    %1940 = vmatprep.subr.mxu0 0.0
    %1941 = vmatpush1.msra.mxu0 0.0
    %1942 = vmatprep.subr.mxu0 0.0
    %1943 = vmatpush1.msra.mxu0 0.0
    %1944 = vmatprep.subr.mxu0 0.0
    %1945 = vmatpush1.msra.mxu0 0.0
    %1946 = vmatprep.subr.mxu0 0.0
    %1947 = vmatpush1.msra.mxu0 0.0
    %1948 = vmatprep.subr.mxu0 0.0
    %1949 = vmatpush1.msra.mxu0 0.0
    %1950 = vmatprep.subr.mxu0 0.0
    %1951 = vmatpush1.msra.mxu0 0.0
    %1952 = vmatprep.subr.mxu0 0.0
    %1953 = vmatpush1.msra.mxu0 0.0
    %1954 = vmatprep.subr.mxu0 0.0
    %1955 = vmatpush1.msra.mxu0 0.0
    %1956 = vmatprep.subr.mxu0 0.0
    %1957 = vmatpush1.msra.mxu0 0.0
    %1958 = vmatprep.subr.mxu0 0.0
    %1959 = vmatpush1.msra.mxu0 0.0
    %1960 = vmatprep.subr.mxu0 0.0
    %1961 = vmatpush1.msra.mxu0 0.0
    %1962 = vmatprep.subr.mxu0 0.0
    %1963 = vmatpush1.msra.mxu0 0.0
    %1964 = vmatprep.subr.mxu0 0.0
    %1965 = vmatpush1.msra.mxu0 0.0
    %1966 = vmatprep.subr.mxu0 0.0
    %1967 = vmatpush1.msra.mxu0 0.0
    %1968 = vmatprep.subr.mxu0 0.0
    %1969 = vmatpush1.msra.mxu0 0.0
    %1970 = vmatprep.subr.mxu0 0.0
    %1971 = vmatpush1.msra.mxu0 %v150
    %1972 = vmatprep.subr.mxu0 0.0
    %1973 = vmatpush2.msra.mxu0 0.0
    %1974 = vmatprep.subr.mxu0 0.0
    %1975 = vmatpush2.msra.mxu0 0.0
    %1976 = vmatprep.subr.mxu0 0.0
    %1977 = vmatpush2.msra.mxu0 0.0
    %1978 = vmatprep.subr.mxu0 0.0
    %1979 = vmatpush2.msra.mxu0 0.0
    %1980 = vmatprep.subr.mxu0 0.0
    %1981 = vmatpush2.msra.mxu0 0.0
    %1982 = vmatprep.subr.mxu0 0.0
    %1983 = vmatpush2.msra.mxu0 0.0
    %1984 = vmatprep.subr.mxu0 0.0
    %1985 = vmatpush2.msra.mxu0 0.0
    %1986 = vmatprep.subr.mxu0 0.0
    %1987 = vmatpush2.msra.mxu0 0.0
    %1988 = vmatprep.subr.mxu0 0.0
    %1989 = vmatpush2.msra.mxu0 0.0
    %1990 = vmatprep.subr.mxu0 0.0
    %1991 = vmatpush2.msra.mxu0 0.0
    %1992 = vmatprep.subr.mxu0 0.0
    %1993 = vmatpush2.msra.mxu0 0.0
    %1994 = vmatprep.subr.mxu0 0.0
    %1995 = vmatpush2.msra.mxu0 0.0
    %1996 = vmatprep.subr.mxu0 0.0
    %1997 = vmatpush2.msra.mxu0 0.0
    %1998 = vmatprep.subr.mxu0 0.0
    %1999 = vmatpush2.msra.mxu0 0.0
    %2000 = vmatprep.subr.mxu0 0.0
    %2001 = vmatpush2.msra.mxu0 0.0
    %2002 = vmatprep.subr.mxu0 0.0
    %2003 = vmatpush2.msra.mxu0 0.0
    %2004 = vmatprep.mubr.f32.mxu0 0.0
    %2005 = vmatmul.mubr.f32.gmra.mxu0 %v1935
    %v2006 = vpop.f32.mrf.mxu0
    %v2007 = vadd.f32 0.0, %v2006
    %v2008 = vpop.f32.mrf.mxu0
    %2009 = vmatprep.mubr.f32.mxu0 0.0
    %2010 = vmatmul.mubr.f32.gmra.mxu0 %v1938
    %v2011 = vpop.f32.mrf.mxu0
    %v2012 = vadd.f32 0.0, %v2011
    %v2013 = vpop.f32.mrf.mxu0
    %2014 = vdwg.mxu0
    %v2016 = vsel %vm591, %v1289, 0
    %v2019 = vsel %vm591, %v1291, 0
    %2021 = vmatprep.subr.mxu0 0.0
    %2022 = vmatpush1.msra.mxu0 0.0
    %2023 = vmatprep.subr.mxu0 0.0
    %2024 = vmatpush1.msra.mxu0 0.0
    %2025 = vmatprep.subr.mxu0 0.0
    %2026 = vmatpush1.msra.mxu0 0.0
    %2027 = vmatprep.subr.mxu0 0.0
    %2028 = vmatpush1.msra.mxu0 0.0
    %2029 = vmatprep.subr.mxu0 0.0
    %2030 = vmatpush1.msra.mxu0 0.0
    %2031 = vmatprep.subr.mxu0 0.0
    %2032 = vmatpush1.msra.mxu0 0.0
    %2033 = vmatprep.subr.mxu0 0.0
    %2034 = vmatpush1.msra.mxu0 0.0
    %2035 = vmatprep.subr.mxu0 0.0
    %2036 = vmatpush1.msra.mxu0 0.0
    %2037 = vmatprep.subr.mxu0 0.0
    %2038 = vmatpush1.msra.mxu0 0.0
    %2039 = vmatprep.subr.mxu0 0.0
    %2040 = vmatpush1.msra.mxu0 0.0
    %2041 = vmatprep.subr.mxu0 0.0
    %2042 = vmatpush1.msra.mxu0 0.0
    %2043 = vmatprep.subr.mxu0 0.0
    %2044 = vmatpush1.msra.mxu0 0.0
    %2045 = vmatprep.subr.mxu0 0.0
    %2046 = vmatpush1.msra.mxu0 0.0
    %2047 = vmatprep.subr.mxu0 0.0
    %2048 = vmatpush1.msra.mxu0 0.0
    %2049 = vmatprep.subr.mxu0 0.0
    %2050 = vmatpush1.msra.mxu0 %v2012
    %2051 = vmatprep.subr.mxu0 0.0
    %2052 = vmatpush1.msra.mxu0 %v2007
    %2053 = vmatprep.subr.mxu0 0.0
    %2054 = vmatpush2.msra.mxu0 0.0
    %2055 = vmatprep.subr.mxu0 0.0
    %2056 = vmatpush2.msra.mxu0 0.0
    %2057 = vmatprep.subr.mxu0 0.0
    %2058 = vmatpush2.msra.mxu0 0.0
    %2059 = vmatprep.subr.mxu0 0.0
    %2060 = vmatpush2.msra.mxu0 0.0
    %2061 = vmatprep.subr.mxu0 0.0
    %2062 = vmatpush2.msra.mxu0 0.0
    %2063 = vmatprep.subr.mxu0 0.0
    %2064 = vmatpush2.msra.mxu0 0.0
    %2065 = vmatprep.subr.mxu0 0.0
    %2066 = vmatpush2.msra.mxu0 0.0
    %2067 = vmatprep.subr.mxu0 0.0
    %2068 = vmatpush2.msra.mxu0 0.0
    %2069 = vmatprep.subr.mxu0 0.0
    %2070 = vmatpush2.msra.mxu0 0.0
    %2071 = vmatprep.subr.mxu0 0.0
    %2072 = vmatpush2.msra.mxu0 0.0
    %2073 = vmatprep.subr.mxu0 0.0
    %2074 = vmatpush2.msra.mxu0 0.0
    %2075 = vmatprep.subr.mxu0 0.0
    %2076 = vmatpush2.msra.mxu0 0.0
    %2077 = vmatprep.subr.mxu0 0.0
    %2078 = vmatpush2.msra.mxu0 0.0
    %2079 = vmatprep.subr.mxu0 0.0
    %2080 = vmatpush2.msra.mxu0 0.0
    %2081 = vmatprep.subr.mxu0 0.0
    %2082 = vmatpush2.msra.mxu0 0.0
    %2083 = vmatprep.subr.mxu0 0.0
    %2084 = vmatpush2.msra.mxu0 0.0
    %2085 = vmatprep.mubr.f32.mxu0 0.0
    %2086 = vmatmul.mubr.f32.gmra.mxu0 %v2016
    %v2087 = vpop.f32.mrf.mxu0
    %v2088 = vadd.f32 0.0, %v2087
    %v2089 = vpop.f32.mrf.mxu0
    %2090 = vmatprep.mubr.f32.mxu0 0.0
    %2091 = vmatmul.mubr.f32.gmra.mxu0 %v2019
    %v2092 = vpop.f32.mrf.mxu0
    %v2093 = vadd.f32 0.0, %v2092
    %v2094 = vpop.f32.mrf.mxu0
    %2095 = vdwg.mxu0
    %2096 = vmatprep.subr.mxu0 0.0
    %2097 = vmatpush1.msra.mxu0 0.0
    %2098 = vmatprep.subr.mxu0 0.0
    %2099 = vmatpush1.msra.mxu0 0.0
    %2100 = vmatprep.subr.mxu0 0.0
    %2101 = vmatpush1.msra.mxu0 0.0
    %2102 = vmatprep.subr.mxu0 0.0
    %2103 = vmatpush1.msra.mxu0 0.0
    %2104 = vmatprep.subr.mxu0 0.0
    %2105 = vmatpush1.msra.mxu0 0.0
    %2106 = vmatprep.subr.mxu0 0.0
    %2107 = vmatpush1.msra.mxu0 0.0
    %2108 = vmatprep.subr.mxu0 0.0
    %2109 = vmatpush1.msra.mxu0 0.0
    %2110 = vmatprep.subr.mxu0 0.0
    %2111 = vmatpush1.msra.mxu0 0.0
    %2112 = vmatprep.subr.mxu0 0.0
    %2113 = vmatpush1.msra.mxu0 0.0
    %2114 = vmatprep.subr.mxu0 0.0
    %2115 = vmatpush1.msra.mxu0 0.0
    %2116 = vmatprep.subr.mxu0 0.0
    %2117 = vmatpush1.msra.mxu0 0.0
    %2118 = vmatprep.subr.mxu0 0.0
    %2119 = vmatpush1.msra.mxu0 0.0
    %2120 = vmatprep.subr.mxu0 0.0
    %2121 = vmatpush1.msra.mxu0 0.0
    %2122 = vmatprep.subr.mxu0 0.0
    %2123 = vmatpush1.msra.mxu0 0.0
    %2124 = vmatprep.subr.mxu0 0.0
    %2125 = vmatpush1.msra.mxu0 %v149
    %2126 = vmatprep.subr.mxu0 0.0
    %2127 = vmatpush1.msra.mxu0 %v148
    %2128 = vmatprep.subr.mxu0 0.0
    %2129 = vmatpush2.msra.mxu0 0.0
    %2130 = vmatprep.subr.mxu0 0.0
    %2131 = vmatpush2.msra.mxu0 0.0
    %2132 = vmatprep.subr.mxu0 0.0
    %2133 = vmatpush2.msra.mxu0 0.0
    %2134 = vmatprep.subr.mxu0 0.0
    %2135 = vmatpush2.msra.mxu0 0.0
    %2136 = vmatprep.subr.mxu0 0.0
    %2137 = vmatpush2.msra.mxu0 0.0
    %2138 = vmatprep.subr.mxu0 0.0
    %2139 = vmatpush2.msra.mxu0 0.0
    %2140 = vmatprep.subr.mxu0 0.0
    %2141 = vmatpush2.msra.mxu0 0.0
    %2142 = vmatprep.subr.mxu0 0.0
    %2143 = vmatpush2.msra.mxu0 0.0
    %2144 = vmatprep.subr.mxu0 0.0
    %2145 = vmatpush2.msra.mxu0 0.0
    %2146 = vmatprep.subr.mxu0 0.0
    %2147 = vmatpush2.msra.mxu0 0.0
    %2148 = vmatprep.subr.mxu0 0.0
    %2149 = vmatpush2.msra.mxu0 0.0
    %2150 = vmatprep.subr.mxu0 0.0
    %2151 = vmatpush2.msra.mxu0 0.0
    %2152 = vmatprep.subr.mxu0 0.0
    %2153 = vmatpush2.msra.mxu0 0.0
    %2154 = vmatprep.subr.mxu0 0.0
    %2155 = vmatpush2.msra.mxu0 0.0
    %2156 = vmatprep.subr.mxu0 0.0
    %2157 = vmatpush2.msra.mxu0 0.0
    %2158 = vmatprep.subr.mxu0 0.0
    %2159 = vmatpush2.msra.mxu0 0.0
    %2160 = vmatprep.mubr.f32.mxu0 0.0
    %2161 = vmatmul.mubr.f32.gmra.mxu0 %v2016
    %v2162 = vpop.f32.mrf.mxu0
    %v2163 = vadd.f32 0.0, %v2162
    %v2164 = vpop.f32.mrf.mxu0
    %2165 = vmatprep.mubr.f32.mxu0 0.0
    %2166 = vmatmul.mubr.f32.gmra.mxu0 %v2019
    %v2167 = vpop.f32.mrf.mxu0
    %v2168 = vadd.f32 0.0, %v2167
    %v2169 = vpop.f32.mrf.mxu0
    %2170 = vdwg.mxu0
    %s2171 = scalar_lea.vmem %s10, 2
    %v2172 = vld [vmem:[%s2171] sm:$0x1]
    %v2174 = vlaneseq
    %v2175 = vshrl.u32 %v2174, 7
    %v2176 = vsub.s32 0, %v2175
    %v2177 = vrot.slane %v2172, %v2176
    %v2179 = vmul.f32 %v2177, %v2163
    %v2180 = vmul.f32 %v2177, %v2168
    %s2181 = scalar_lea.vmem %s11, 2
    %v2182 = vld [vmem:[%s2181] sm:$0x1]
    %v2184 = vlaneseq
    %v2185 = vshrl.u32 %v2184, 7
    %v2186 = vsub.s32 0, %v2185
    %v2187 = vrot.slane %v2182, %v2186
    %v2189 = vmul.f32 %v2187, %v2088
    %v2190 = vmul.f32 %v2187, %v2093
    %v2191 = vadd.f32 %v2179, %v2189
    %v2192 = vadd.f32 %v2180, %v2190
    %v2193 = vmul.f32 %v2191, %v151
    %v2194 = vmul.f32 %v2192, %v152
    %v2195 = vadd.f32 %v2193, %v2194
    %v2196 = vrot.slane %v2195, 4
    %v2197 = vadd.f32 %v2195, %v2196
    %v2198 = vrot.slane %v2197, 2
    %v2199 = vadd.f32 %v2197, %v2198
    %v2200 = vrot.slane %v2199, 1
    %v2201 = vadd.f32 %v2199, %v2200
    %s2202 = scalar_lea.vmem %s12, 2
    %v2203 = vld [vmem:[%s2202] sm:$0x1]
    %v2204 = vadd.f32 %v2201, %v2203
    %2205 = vst [vmem:[%s13 + $0x2] sm:$0x1] %v2204
    %2206 = vxpose.xlu0.b32.start [1/16] %v382, 128
    %2207 = vxpose.xlu0.b32.cont [2/16] 0.0, 128
    %2208 = vxpose.xlu0.b32.cont [3/16] 0.0, 128
    %2209 = vxpose.xlu0.b32.cont [4/16] 0.0, 128
    %2210 = vxpose.xlu0.b32.cont [5/16] 0.0, 128
    %2211 = vxpose.xlu0.b32.cont [6/16] 0.0, 128
    %2212 = vxpose.xlu0.b32.cont [7/16] 0.0, 128
    %2213 = vxpose.xlu0.b32.cont [8/16] 0.0, 128
    %2214 = vxpose.xlu0.b32.cont [9/16] 0.0, 128
    %2215 = vxpose.xlu0.b32.cont [10/16] 0.0, 128
    %2216 = vxpose.xlu0.b32.cont [11/16] 0.0, 128
    %2217 = vxpose.xlu0.b32.cont [12/16] 0.0, 128
    %2218 = vxpose.xlu0.b32.cont [13/16] 0.0, 128
    %2219 = vxpose.xlu0.b32.cont [14/16] 0.0, 128
    %2220 = vxpose.xlu0.b32.cont [15/16] 0.0, 128
    %2221 = vxpose.xlu0.b32.end [16/16] 0.0, 128
    %v2222 = vpop.trf.xlu0
    %v2223 = vpop.trf.xlu0
    %v2224 = vpop.trf.xlu0
    %v2225 = vpop.trf.xlu0
    %v2226 = vpop.trf.xlu0
    %v2227 = vpop.trf.xlu0
    %v2228 = vpop.trf.xlu0
    %v2229 = vpop.trf.xlu0
    %v2230 = vpop.trf.xlu0
    %v2231 = vpop.trf.xlu0
    %v2232 = vpop.trf.xlu0
    %v2233 = vpop.trf.xlu0
    %v2234 = vpop.trf.xlu0
    %v2235 = vpop.trf.xlu0
    %v2236 = vpop.trf.xlu0
    %v2237 = vpop.trf.xlu0
    %v2239 = vsel %vm1328, %v2222, 0
    %v2242 = vsel %vm1328, %v2223, 0
    %2244 = vmatprep.subr.mxu0 0.0
    %2245 = vmatpush1.msra.mxu0 0.0
    %2246 = vmatprep.subr.mxu0 0.0
    %2247 = vmatpush1.msra.mxu0 0.0
    %2248 = vmatprep.subr.mxu0 0.0
    %2249 = vmatpush1.msra.mxu0 0.0
    %2250 = vmatprep.subr.mxu0 0.0
    %2251 = vmatpush1.msra.mxu0 0.0
    %2252 = vmatprep.subr.mxu0 0.0
    %2253 = vmatpush1.msra.mxu0 0.0
    %2254 = vmatprep.subr.mxu0 0.0
    %2255 = vmatpush1.msra.mxu0 0.0
    %2256 = vmatprep.subr.mxu0 0.0
    %2257 = vmatpush1.msra.mxu0 0.0
    %2258 = vmatprep.subr.mxu0 0.0
    %2259 = vmatpush1.msra.mxu0 0.0
    %2260 = vmatprep.subr.mxu0 0.0
    %2261 = vmatpush1.msra.mxu0 0.0
    %2262 = vmatprep.subr.mxu0 0.0
    %2263 = vmatpush1.msra.mxu0 0.0
    %2264 = vmatprep.subr.mxu0 0.0
    %2265 = vmatpush1.msra.mxu0 0.0
    %2266 = vmatprep.subr.mxu0 0.0
    %2267 = vmatpush1.msra.mxu0 0.0
    %2268 = vmatprep.subr.mxu0 0.0
    %2269 = vmatpush1.msra.mxu0 0.0
    %2270 = vmatprep.subr.mxu0 0.0
    %2271 = vmatpush1.msra.mxu0 0.0
    %2272 = vmatprep.subr.mxu0 0.0
    %2273 = vmatpush1.msra.mxu0 0.0
    %2274 = vmatprep.subr.mxu0 0.0
    %2275 = vmatpush1.msra.mxu0 %v150
    %2276 = vmatprep.subr.mxu0 0.0
    %2277 = vmatpush2.msra.mxu0 0.0
    %2278 = vmatprep.subr.mxu0 0.0
    %2279 = vmatpush2.msra.mxu0 0.0
    %2280 = vmatprep.subr.mxu0 0.0
    %2281 = vmatpush2.msra.mxu0 0.0
    %2282 = vmatprep.subr.mxu0 0.0
    %2283 = vmatpush2.msra.mxu0 0.0
    %2284 = vmatprep.subr.mxu0 0.0
    %2285 = vmatpush2.msra.mxu0 0.0
    %2286 = vmatprep.subr.mxu0 0.0
    %2287 = vmatpush2.msra.mxu0 0.0
    %2288 = vmatprep.subr.mxu0 0.0
    %2289 = vmatpush2.msra.mxu0 0.0
    %2290 = vmatprep.subr.mxu0 0.0
    %2291 = vmatpush2.msra.mxu0 0.0
    %2292 = vmatprep.subr.mxu0 0.0
    %2293 = vmatpush2.msra.mxu0 0.0
    %2294 = vmatprep.subr.mxu0 0.0
    %2295 = vmatpush2.msra.mxu0 0.0
    %2296 = vmatprep.subr.mxu0 0.0
    %2297 = vmatpush2.msra.mxu0 0.0
    %2298 = vmatprep.subr.mxu0 0.0
    %2299 = vmatpush2.msra.mxu0 0.0
    %2300 = vmatprep.subr.mxu0 0.0
    %2301 = vmatpush2.msra.mxu0 0.0
    %2302 = vmatprep.subr.mxu0 0.0
    %2303 = vmatpush2.msra.mxu0 0.0
    %2304 = vmatprep.subr.mxu0 0.0
    %2305 = vmatpush2.msra.mxu0 0.0
    %2306 = vmatprep.subr.mxu0 0.0
    %2307 = vmatpush2.msra.mxu0 0.0
    %2308 = vmatprep.mubr.f32.mxu0 0.0
    %2309 = vmatmul.mubr.f32.gmra.mxu0 %v2239
    %v2310 = vpop.f32.mrf.mxu0
    %v2311 = vadd.f32 0.0, %v2310
    %v2312 = vpop.f32.mrf.mxu0
    %2313 = vmatprep.mubr.f32.mxu0 0.0
    %2314 = vmatmul.mubr.f32.gmra.mxu0 %v2242
    %v2315 = vpop.f32.mrf.mxu0
    %v2316 = vadd.f32 0.0, %v2315
    %v2317 = vpop.f32.mrf.mxu0
    %2318 = vdwg.mxu0
    %v2320 = vsel %vm591, %v1293, 0
    %v2323 = vsel %vm591, %v1295, 0
    %2325 = vmatprep.subr.mxu0 0.0
    %2326 = vmatpush1.msra.mxu0 0.0
    %2327 = vmatprep.subr.mxu0 0.0
    %2328 = vmatpush1.msra.mxu0 0.0
    %2329 = vmatprep.subr.mxu0 0.0
    %2330 = vmatpush1.msra.mxu0 0.0
    %2331 = vmatprep.subr.mxu0 0.0
    %2332 = vmatpush1.msra.mxu0 0.0
    %2333 = vmatprep.subr.mxu0 0.0
    %2334 = vmatpush1.msra.mxu0 0.0
    %2335 = vmatprep.subr.mxu0 0.0
    %2336 = vmatpush1.msra.mxu0 0.0
    %2337 = vmatprep.subr.mxu0 0.0
    %2338 = vmatpush1.msra.mxu0 0.0
    %2339 = vmatprep.subr.mxu0 0.0
    %2340 = vmatpush1.msra.mxu0 0.0
    %2341 = vmatprep.subr.mxu0 0.0
    %2342 = vmatpush1.msra.mxu0 0.0
    %2343 = vmatprep.subr.mxu0 0.0
    %2344 = vmatpush1.msra.mxu0 0.0
    %2345 = vmatprep.subr.mxu0 0.0
    %2346 = vmatpush1.msra.mxu0 0.0
    %2347 = vmatprep.subr.mxu0 0.0
    %2348 = vmatpush1.msra.mxu0 0.0
    %2349 = vmatprep.subr.mxu0 0.0
    %2350 = vmatpush1.msra.mxu0 0.0
    %2351 = vmatprep.subr.mxu0 0.0
    %2352 = vmatpush1.msra.mxu0 0.0
    %2353 = vmatprep.subr.mxu0 0.0
    %2354 = vmatpush1.msra.mxu0 %v2316
    %2355 = vmatprep.subr.mxu0 0.0
    %2356 = vmatpush1.msra.mxu0 %v2311
    %2357 = vmatprep.subr.mxu0 0.0
    %2358 = vmatpush2.msra.mxu0 0.0
    %2359 = vmatprep.subr.mxu0 0.0
    %2360 = vmatpush2.msra.mxu0 0.0
    %2361 = vmatprep.subr.mxu0 0.0
    %2362 = vmatpush2.msra.mxu0 0.0
    %2363 = vmatprep.subr.mxu0 0.0
    %2364 = vmatpush2.msra.mxu0 0.0
    %2365 = vmatprep.subr.mxu0 0.0
    %2366 = vmatpush2.msra.mxu0 0.0
    %2367 = vmatprep.subr.mxu0 0.0
    %2368 = vmatpush2.msra.mxu0 0.0
    %2369 = vmatprep.subr.mxu0 0.0
    %2370 = vmatpush2.msra.mxu0 0.0
    %2371 = vmatprep.subr.mxu0 0.0
    %2372 = vmatpush2.msra.mxu0 0.0
    %2373 = vmatprep.subr.mxu0 0.0
    %2374 = vmatpush2.msra.mxu0 0.0
    %2375 = vmatprep.subr.mxu0 0.0
    %2376 = vmatpush2.msra.mxu0 0.0
    %2377 = vmatprep.subr.mxu0 0.0
    %2378 = vmatpush2.msra.mxu0 0.0
    %2379 = vmatprep.subr.mxu0 0.0
    %2380 = vmatpush2.msra.mxu0 0.0
    %2381 = vmatprep.subr.mxu0 0.0
    %2382 = vmatpush2.msra.mxu0 0.0
    %2383 = vmatprep.subr.mxu0 0.0
    %2384 = vmatpush2.msra.mxu0 0.0
    %2385 = vmatprep.subr.mxu0 0.0
    %2386 = vmatpush2.msra.mxu0 0.0
    %2387 = vmatprep.subr.mxu0 0.0
    %2388 = vmatpush2.msra.mxu0 0.0
    %2389 = vmatprep.mubr.f32.mxu0 0.0
    %2390 = vmatmul.mubr.f32.gmra.mxu0 %v2320
    %v2391 = vpop.f32.mrf.mxu0
    %v2392 = vadd.f32 0.0, %v2391
    %v2393 = vpop.f32.mrf.mxu0
    %2394 = vmatprep.mubr.f32.mxu0 0.0
    %2395 = vmatmul.mubr.f32.gmra.mxu0 %v2323
    %v2396 = vpop.f32.mrf.mxu0
    %v2397 = vadd.f32 0.0, %v2396
    %v2398 = vpop.f32.mrf.mxu0
    %2399 = vdwg.mxu0
    %2400 = vmatprep.subr.mxu0 0.0
    %2401 = vmatpush1.msra.mxu0 0.0
    %2402 = vmatprep.subr.mxu0 0.0
    %2403 = vmatpush1.msra.mxu0 0.0
    %2404 = vmatprep.subr.mxu0 0.0
    %2405 = vmatpush1.msra.mxu0 0.0
    %2406 = vmatprep.subr.mxu0 0.0
    %2407 = vmatpush1.msra.mxu0 0.0
    %2408 = vmatprep.subr.mxu0 0.0
    %2409 = vmatpush1.msra.mxu0 0.0
    %2410 = vmatprep.subr.mxu0 0.0
    %2411 = vmatpush1.msra.mxu0 0.0
    %2412 = vmatprep.subr.mxu0 0.0
    %2413 = vmatpush1.msra.mxu0 0.0
    %2414 = vmatprep.subr.mxu0 0.0
    %2415 = vmatpush1.msra.mxu0 0.0
    %2416 = vmatprep.subr.mxu0 0.0
    %2417 = vmatpush1.msra.mxu0 0.0
    %2418 = vmatprep.subr.mxu0 0.0
    %2419 = vmatpush1.msra.mxu0 0.0
    %2420 = vmatprep.subr.mxu0 0.0
    %2421 = vmatpush1.msra.mxu0 0.0
    %2422 = vmatprep.subr.mxu0 0.0
    %2423 = vmatpush1.msra.mxu0 0.0
    %2424 = vmatprep.subr.mxu0 0.0
    %2425 = vmatpush1.msra.mxu0 0.0
    %2426 = vmatprep.subr.mxu0 0.0
    %2427 = vmatpush1.msra.mxu0 0.0
    %2428 = vmatprep.subr.mxu0 0.0
    %2429 = vmatpush1.msra.mxu0 %v149
    %2430 = vmatprep.subr.mxu0 0.0
    %2431 = vmatpush1.msra.mxu0 %v148
    %2432 = vmatprep.subr.mxu0 0.0
    %2433 = vmatpush2.msra.mxu0 0.0
    %2434 = vmatprep.subr.mxu0 0.0
    %2435 = vmatpush2.msra.mxu0 0.0
    %2436 = vmatprep.subr.mxu0 0.0
    %2437 = vmatpush2.msra.mxu0 0.0
    %2438 = vmatprep.subr.mxu0 0.0
    %2439 = vmatpush2.msra.mxu0 0.0
    %2440 = vmatprep.subr.mxu0 0.0
    %2441 = vmatpush2.msra.mxu0 0.0
    %2442 = vmatprep.subr.mxu0 0.0
    %2443 = vmatpush2.msra.mxu0 0.0
    %2444 = vmatprep.subr.mxu0 0.0
    %2445 = vmatpush2.msra.mxu0 0.0
    %2446 = vmatprep.subr.mxu0 0.0
    %2447 = vmatpush2.msra.mxu0 0.0
    %2448 = vmatprep.subr.mxu0 0.0
    %2449 = vmatpush2.msra.mxu0 0.0
    %2450 = vmatprep.subr.mxu0 0.0
    %2451 = vmatpush2.msra.mxu0 0.0
    %2452 = vmatprep.subr.mxu0 0.0
    %2453 = vmatpush2.msra.mxu0 0.0
    %2454 = vmatprep.subr.mxu0 0.0
    %2455 = vmatpush2.msra.mxu0 0.0
    %2456 = vmatprep.subr.mxu0 0.0
    %2457 = vmatpush2.msra.mxu0 0.0
    %2458 = vmatprep.subr.mxu0 0.0
    %2459 = vmatpush2.msra.mxu0 0.0
    %2460 = vmatprep.subr.mxu0 0.0
    %2461 = vmatpush2.msra.mxu0 0.0
    %2462 = vmatprep.subr.mxu0 0.0
    %2463 = vmatpush2.msra.mxu0 0.0
    %2464 = vmatprep.mubr.f32.mxu0 0.0
    %2465 = vmatmul.mubr.f32.gmra.mxu0 %v2320
    %v2466 = vpop.f32.mrf.mxu0
    %v2467 = vadd.f32 0.0, %v2466
    %v2468 = vpop.f32.mrf.mxu0
    %2469 = vmatprep.mubr.f32.mxu0 0.0
    %2470 = vmatmul.mubr.f32.gmra.mxu0 %v2323
    %v2471 = vpop.f32.mrf.mxu0
    %v2472 = vadd.f32 0.0, %v2471
    %v2473 = vpop.f32.mrf.mxu0
    %2474 = vdwg.mxu0
    %s2475 = scalar_lea.vmem %s10, 3
    %v2476 = vld [vmem:[%s2475] sm:$0x1]
    %v2478 = vlaneseq
    %v2479 = vshrl.u32 %v2478, 7
    %v2480 = vsub.s32 0, %v2479
    %v2481 = vrot.slane %v2476, %v2480
    %v2483 = vmul.f32 %v2481, %v2467
    %v2484 = vmul.f32 %v2481, %v2472
    %s2485 = scalar_lea.vmem %s11, 3
    %v2486 = vld [vmem:[%s2485] sm:$0x1]
    %v2488 = vlaneseq
    %v2489 = vshrl.u32 %v2488, 7
    %v2490 = vsub.s32 0, %v2489
    %v2491 = vrot.slane %v2486, %v2490
    %v2493 = vmul.f32 %v2491, %v2392
    %v2494 = vmul.f32 %v2491, %v2397
    %v2495 = vadd.f32 %v2483, %v2493
    %v2496 = vadd.f32 %v2484, %v2494
    %v2497 = vmul.f32 %v2495, %v151
    %v2498 = vmul.f32 %v2496, %v152
    %v2499 = vadd.f32 %v2497, %v2498
    %v2500 = vrot.slane %v2499, 4
    %v2501 = vadd.f32 %v2499, %v2500
    %v2502 = vrot.slane %v2501, 2
    %v2503 = vadd.f32 %v2501, %v2502
    %v2504 = vrot.slane %v2503, 1
    %v2505 = vadd.f32 %v2503, %v2504
    %s2506 = scalar_lea.vmem %s12, 3
    %v2507 = vld [vmem:[%s2506] sm:$0x1]
    %v2508 = vadd.f32 %v2505, %v2507
    %2509 = vst [vmem:[%s13 + $0x3] sm:$0x1] %v2508
    %s2510 = scalar_lea.vmem %s0, 32
    %v2511 = vld [vmem:[%s2510] sm:$0xff]
    %v2512 = vld [vmem:[%s2510 + $0x8] sm:$0xff]
    %v2513 = vld [vmem:[%s2510 + $0x10] sm:$0xff]
    %v2514 = vld [vmem:[%s2510 + $0x18] sm:$0xff]
    %2515 = vmatprep.subr.mxu0 0.0
    %2516 = vmatpush1.msra.mxu0 0.0
    %2517 = vmatprep.subr.mxu0 0.0
    %2518 = vmatpush1.msra.mxu0 0.0
    %2519 = vmatprep.subr.mxu0 0.0
    %2520 = vmatpush1.msra.mxu0 0.0
    %2521 = vmatprep.subr.mxu0 0.0
    %2522 = vmatpush1.msra.mxu0 0.0
    %2523 = vmatprep.subr.mxu0 0.0
    %2524 = vmatpush1.msra.mxu0 0.0
    %2525 = vmatprep.subr.mxu0 0.0
    %2526 = vmatpush1.msra.mxu0 0.0
    %2527 = vmatprep.subr.mxu0 0.0
    %2528 = vmatpush1.msra.mxu0 0.0
    %2529 = vmatprep.subr.mxu0 0.0
    %2530 = vmatpush1.msra.mxu0 0.0
    %2531 = vmatprep.subr.mxu0 0.0
    %2532 = vmatpush1.msra.mxu0 0.0
    %2533 = vmatprep.subr.mxu0 0.0
    %2534 = vmatpush1.msra.mxu0 0.0
    %2535 = vmatprep.subr.mxu0 0.0
    %2536 = vmatpush1.msra.mxu0 0.0
    %2537 = vmatprep.subr.mxu0 0.0
    %2538 = vmatpush1.msra.mxu0 0.0
    %2539 = vmatprep.subr.mxu0 0.0
    %2540 = vmatpush1.msra.mxu0 %v2514
    %2541 = vmatprep.subr.mxu0 0.0
    %2542 = vmatpush1.msra.mxu0 %v2513
    %2543 = vmatprep.subr.mxu0 0.0
    %2544 = vmatpush1.msra.mxu0 %v2512
    %2545 = vmatprep.subr.mxu0 0.0
    %2546 = vmatpush1.msra.mxu0 %v2511
    %2547 = vmatprep.subr.mxu0 0.0
    %2548 = vmatpush2.msra.mxu0 0.0
    %2549 = vmatprep.subr.mxu0 0.0
    %2550 = vmatpush2.msra.mxu0 0.0
    %2551 = vmatprep.subr.mxu0 0.0
    %2552 = vmatpush2.msra.mxu0 0.0
    %2553 = vmatprep.subr.mxu0 0.0
    %2554 = vmatpush2.msra.mxu0 0.0
    %2555 = vmatprep.subr.mxu0 0.0
    %2556 = vmatpush2.msra.mxu0 0.0
    %2557 = vmatprep.subr.mxu0 0.0
    %2558 = vmatpush2.msra.mxu0 0.0
    %2559 = vmatprep.subr.mxu0 0.0
    %2560 = vmatpush2.msra.mxu0 0.0
    %2561 = vmatprep.subr.mxu0 0.0
    %2562 = vmatpush2.msra.mxu0 0.0
    %2563 = vmatprep.subr.mxu0 0.0
    %2564 = vmatpush2.msra.mxu0 0.0
    %2565 = vmatprep.subr.mxu0 0.0
    %2566 = vmatpush2.msra.mxu0 0.0
    %2567 = vmatprep.subr.mxu0 0.0
    %2568 = vmatpush2.msra.mxu0 0.0
    %2569 = vmatprep.subr.mxu0 0.0
    %2570 = vmatpush2.msra.mxu0 0.0
    %2571 = vmatprep.subr.mxu0 0.0
    %2572 = vmatpush2.msra.mxu0 0.0
    %2573 = vmatprep.subr.mxu0 0.0
    %2574 = vmatpush2.msra.mxu0 0.0
    %2575 = vmatprep.subr.mxu0 0.0
    %2576 = vmatpush2.msra.mxu0 0.0
    %2577 = vmatprep.subr.mxu0 0.0
    %2578 = vmatpush2.msra.mxu0 0.0
    %2579 = vmatprep.mubr.f32.mxu0 0.0
    %2580 = vmatmul.mubr.f32.gmra.mxu0 %v159
    %v2581 = vpop.f32.mrf.mxu0
    %v2582 = vadd.f32 0.0, %v2581
    %v2583 = vpop.f32.mrf.mxu0
    %2584 = vmatprep.mubr.f32.mxu0 0.0
    %2585 = vmatmul.mubr.f32.gmra.mxu0 %v162
    %v2586 = vpop.f32.mrf.mxu0
    %v2587 = vadd.f32 0.0, %v2586
    %v2588 = vpop.f32.mrf.mxu0
    %2589 = vmatprep.mubr.f32.mxu0 0.0
    %2590 = vmatmul.mubr.f32.gmra.mxu0 %v165
    %v2591 = vpop.f32.mrf.mxu0
    %v2592 = vadd.f32 0.0, %v2591
    %v2593 = vpop.f32.mrf.mxu0
    %2594 = vmatprep.mubr.f32.mxu0 0.0
    %2595 = vmatmul.mubr.f32.gmra.mxu0 %v168
    %v2596 = vpop.f32.mrf.mxu0
    %v2597 = vadd.f32 0.0, %v2596
    %v2598 = vpop.f32.mrf.mxu0
    %2599 = vmatprep.mubr.f32.mxu0 0.0
    %2600 = vmatmul.mubr.f32.gmra.mxu0 %v171
    %v2601 = vpop.f32.mrf.mxu0
    %v2602 = vadd.f32 0.0, %v2601
    %v2603 = vpop.f32.mrf.mxu0
    %2604 = vmatprep.mubr.f32.mxu0 0.0
    %2605 = vmatmul.mubr.f32.gmra.mxu0 %v174
    %v2606 = vpop.f32.mrf.mxu0
    %v2607 = vadd.f32 0.0, %v2606
    %v2608 = vpop.f32.mrf.mxu0
    %2609 = vmatprep.mubr.f32.mxu0 0.0
    %2610 = vmatmul.mubr.f32.gmra.mxu0 %v177
    %v2611 = vpop.f32.mrf.mxu0
    %v2612 = vadd.f32 0.0, %v2611
    %v2613 = vpop.f32.mrf.mxu0
    %2614 = vmatprep.mubr.f32.mxu0 0.0
    %2615 = vmatmul.mubr.f32.gmra.mxu0 %v180
    %v2616 = vpop.f32.mrf.mxu0
    %v2617 = vadd.f32 0.0, %v2616
    %v2618 = vpop.f32.mrf.mxu0
    %2619 = vdwg.mxu0
    %v2620 = vmul.f32 %v2582, %v290
    %v2621 = vmul.f32 %v2587, %v295
    %v2622 = vmul.f32 %v2592, %v300
    %v2623 = vmul.f32 %v2597, %v305
    %v2624 = vmul.f32 %v2602, %v310
    %v2625 = vmul.f32 %v2607, %v315
    %v2626 = vmul.f32 %v2612, %v320
    %v2627 = vmul.f32 %v2617, %v325
    %v2628 = vadd.f32 %v2620, %v338
    %v2629 = vadd.f32 %v2621, %v343
    %v2630 = vadd.f32 %v2622, %v348
    %v2631 = vadd.f32 %v2623, %v353
    %v2632 = vadd.f32 %v2624, %v358
    %v2633 = vadd.f32 %v2625, %v363
    %v2634 = vadd.f32 %v2626, %v368
    %v2635 = vadd.f32 %v2627, %v373
    %v2636 = vlaneseq
    %v2637 = vshrl.u32 %v2636, 7
    %v2638 = vsub.s32 0, %v2637
    %v2639 = vrot.slane %v2628, %v2638
    %2641 = vbcast.lane.b32.xlu0 %v2639, 256
    %v2642 = vpop.permute.xlu0 %2641
    %s2644 = sor.u32 256, 8
    %2645 = vbcast.lane.b32.xlu0 %v2639, %s2644
    %v2646 = vpop.permute.xlu0 %2645
    %v2647 = vlaneseq
    %v2648 = vshrl.u32 %v2647, 7
    %v2649 = vsub.s32 1, %v2648
    %v2650 = vrot.slane %v2628, %v2649
    %2652 = vbcast.lane.b32.xlu0 %v2650, 256
    %v2653 = vpop.permute.xlu0 %2652
    %s2655 = sor.u32 256, 8
    %2656 = vbcast.lane.b32.xlu0 %v2650, %s2655
    %v2657 = vpop.permute.xlu0 %2656
    %v2658 = vlaneseq
    %v2659 = vshrl.u32 %v2658, 7
    %v2660 = vsub.s32 2, %v2659
    %v2661 = vrot.slane %v2628, %v2660
    %2663 = vbcast.lane.b32.xlu0 %v2661, 256
    %v2664 = vpop.permute.xlu0 %2663
    %s2666 = sor.u32 256, 8
    %2667 = vbcast.lane.b32.xlu0 %v2661, %s2666
    %v2668 = vpop.permute.xlu0 %2667
    %v2669 = vlaneseq
    %v2670 = vshrl.u32 %v2669, 7
    %v2671 = vsub.s32 3, %v2670
    %v2672 = vrot.slane %v2628, %v2671
    %2674 = vbcast.lane.b32.xlu0 %v2672, 256
    %v2675 = vpop.permute.xlu0 %2674
    %s2677 = sor.u32 256, 8
    %2678 = vbcast.lane.b32.xlu0 %v2672, %s2677
    %v2679 = vpop.permute.xlu0 %2678
    %v2680 = vlaneseq
    %v2681 = vshrl.u32 %v2680, 7
    %v2682 = vsub.s32 4, %v2681
    %v2683 = vrot.slane %v2628, %v2682
    %2685 = vbcast.lane.b32.xlu0 %v2683, 256
    %v2686 = vpop.permute.xlu0 %2685
    %s2688 = sor.u32 256, 8
    %2689 = vbcast.lane.b32.xlu0 %v2683, %s2688
    %v2690 = vpop.permute.xlu0 %2689
    %v2691 = vlaneseq
    %v2692 = vshrl.u32 %v2691, 7
    %v2693 = vsub.s32 5, %v2692
    %v2694 = vrot.slane %v2628, %v2693
    %2696 = vbcast.lane.b32.xlu0 %v2694, 256
    %v2697 = vpop.permute.xlu0 %2696
    %s2699 = sor.u32 256, 8
    %2700 = vbcast.lane.b32.xlu0 %v2694, %s2699
    %v2701 = vpop.permute.xlu0 %2700
    %v2702 = vlaneseq
    %v2703 = vshrl.u32 %v2702, 7
    %v2704 = vsub.s32 6, %v2703
    %v2705 = vrot.slane %v2628, %v2704
    %2707 = vbcast.lane.b32.xlu0 %v2705, 256
    %v2708 = vpop.permute.xlu0 %2707
    %s2710 = sor.u32 256, 8
    %2711 = vbcast.lane.b32.xlu0 %v2705, %s2710
    %v2712 = vpop.permute.xlu0 %2711
    %v2713 = vlaneseq
    %v2714 = vshrl.u32 %v2713, 7
    %v2715 = vsub.s32 7, %v2714
    %v2716 = vrot.slane %v2628, %v2715
    %2718 = vbcast.lane.b32.xlu0 %v2716, 256
    %v2719 = vpop.permute.xlu0 %2718
    %s2721 = sor.u32 256, 8
    %2722 = vbcast.lane.b32.xlu0 %v2716, %s2721
    %v2723 = vpop.permute.xlu0 %2722
    %v2724 = vlaneseq
    %v2725 = vshrl.u32 %v2724, 7
    %v2726 = vsub.s32 0, %v2725
    %v2727 = vrot.slane %v2629, %v2726
    %2729 = vbcast.lane.b32.xlu0 %v2727, 256
    %v2730 = vpop.permute.xlu0 %2729
    %s2732 = sor.u32 256, 8
    %2733 = vbcast.lane.b32.xlu0 %v2727, %s2732
    %v2734 = vpop.permute.xlu0 %2733
    %v2735 = vlaneseq
    %v2736 = vshrl.u32 %v2735, 7
    %v2737 = vsub.s32 1, %v2736
    %v2738 = vrot.slane %v2629, %v2737
    %2740 = vbcast.lane.b32.xlu0 %v2738, 256
    %v2741 = vpop.permute.xlu0 %2740
    %s2743 = sor.u32 256, 8
    %2744 = vbcast.lane.b32.xlu0 %v2738, %s2743
    %v2745 = vpop.permute.xlu0 %2744
    %v2746 = vlaneseq
    %v2747 = vshrl.u32 %v2746, 7
    %v2748 = vsub.s32 2, %v2747
    %v2749 = vrot.slane %v2629, %v2748
    %2751 = vbcast.lane.b32.xlu0 %v2749, 256
    %v2752 = vpop.permute.xlu0 %2751
    %s2754 = sor.u32 256, 8
    %2755 = vbcast.lane.b32.xlu0 %v2749, %s2754
    %v2756 = vpop.permute.xlu0 %2755
    %v2757 = vlaneseq
    %v2758 = vshrl.u32 %v2757, 7
    %v2759 = vsub.s32 3, %v2758
    %v2760 = vrot.slane %v2629, %v2759
    %2762 = vbcast.lane.b32.xlu0 %v2760, 256
    %v2763 = vpop.permute.xlu0 %2762
    %s2765 = sor.u32 256, 8
    %2766 = vbcast.lane.b32.xlu0 %v2760, %s2765
    %v2767 = vpop.permute.xlu0 %2766
    %v2768 = vlaneseq
    %v2769 = vshrl.u32 %v2768, 7
    %v2770 = vsub.s32 4, %v2769
    %v2771 = vrot.slane %v2629, %v2770
    %2773 = vbcast.lane.b32.xlu0 %v2771, 256
    %v2774 = vpop.permute.xlu0 %2773
    %s2776 = sor.u32 256, 8
    %2777 = vbcast.lane.b32.xlu0 %v2771, %s2776
    %v2778 = vpop.permute.xlu0 %2777
    %v2779 = vlaneseq
    %v2780 = vshrl.u32 %v2779, 7
    %v2781 = vsub.s32 5, %v2780
    %v2782 = vrot.slane %v2629, %v2781
    %2784 = vbcast.lane.b32.xlu0 %v2782, 256
    %v2785 = vpop.permute.xlu0 %2784
    %s2787 = sor.u32 256, 8
    %2788 = vbcast.lane.b32.xlu0 %v2782, %s2787
    %v2789 = vpop.permute.xlu0 %2788
    %v2790 = vlaneseq
    %v2791 = vshrl.u32 %v2790, 7
    %v2792 = vsub.s32 6, %v2791
    %v2793 = vrot.slane %v2629, %v2792
    %2795 = vbcast.lane.b32.xlu0 %v2793, 256
    %v2796 = vpop.permute.xlu0 %2795
    %s2798 = sor.u32 256, 8
    %2799 = vbcast.lane.b32.xlu0 %v2793, %s2798
    %v2800 = vpop.permute.xlu0 %2799
    %v2801 = vlaneseq
    %v2802 = vshrl.u32 %v2801, 7
    %v2803 = vsub.s32 7, %v2802
    %v2804 = vrot.slane %v2629, %v2803
    %2806 = vbcast.lane.b32.xlu0 %v2804, 256
    %v2807 = vpop.permute.xlu0 %2806
    %s2809 = sor.u32 256, 8
    %2810 = vbcast.lane.b32.xlu0 %v2804, %s2809
    %v2811 = vpop.permute.xlu0 %2810
    %v2812 = vmul.f32 %v2642, %v82
    %v2813 = vmul.f32 %v2646, %v83
    %v2814 = vmul.f32 %v2653, %v84
    %v2815 = vmul.f32 %v2657, %v85
    %v2816 = vmul.f32 %v2664, %v86
    %v2817 = vmul.f32 %v2668, %v87
    %v2818 = vmul.f32 %v2675, %v88
    %v2819 = vmul.f32 %v2679, %v89
    %v2820 = vmul.f32 %v2686, %v90
    %v2821 = vmul.f32 %v2690, %v91
    %v2822 = vmul.f32 %v2697, %v92
    %v2823 = vmul.f32 %v2701, %v93
    %v2824 = vmul.f32 %v2708, %v94
    %v2825 = vmul.f32 %v2712, %v95
    %v2826 = vmul.f32 %v2719, %v96
    %v2827 = vmul.f32 %v2723, %v97
    %v2828 = vmul.f32 %v2730, %v98
    %v2829 = vmul.f32 %v2734, %v99
    %v2830 = vmul.f32 %v2741, %v100
    %v2831 = vmul.f32 %v2745, %v101
    %v2832 = vmul.f32 %v2752, %v102
    %v2833 = vmul.f32 %v2756, %v103
    %v2834 = vmul.f32 %v2763, %v104
    %v2835 = vmul.f32 %v2767, %v105
    %v2836 = vmul.f32 %v2774, %v106
    %v2837 = vmul.f32 %v2778, %v107
    %v2838 = vmul.f32 %v2785, %v108
    %v2839 = vmul.f32 %v2789, %v109
    %v2840 = vmul.f32 %v2796, %v110
    %v2841 = vmul.f32 %v2800, %v111
    %v2842 = vmul.f32 %v2807, %v112
    %v2843 = vmul.f32 %v2811, %v113
    %v2844 = vsel %vm591, %v2812, 0.0
    %v2845 = vsel %vm591, %v2814, 0.0
    %v2846 = vadd.f32 %v2844, %v2845
    %v2847 = vsel %vm591, %v2816, 0.0
    %v2848 = vadd.f32 %v2846, %v2847
    %v2849 = vsel %vm591, %v2818, 0.0
    %v2850 = vadd.f32 %v2848, %v2849
    %v2851 = vsel %vm591, %v2813, 0.0
    %v2852 = vsel %vm591, %v2815, 0.0
    %v2853 = vadd.f32 %v2851, %v2852
    %v2854 = vsel %vm591, %v2817, 0.0
    %v2855 = vadd.f32 %v2853, %v2854
    %v2856 = vsel %vm591, %v2819, 0.0
    %v2857 = vadd.f32 %v2855, %v2856
    %v2858 = vsel %vm591, %v2820, 0.0
    %v2859 = vsel %vm591, %v2822, 0.0
    %v2860 = vadd.f32 %v2858, %v2859
    %v2861 = vsel %vm591, %v2824, 0.0
    %v2862 = vadd.f32 %v2860, %v2861
    %v2863 = vsel %vm591, %v2826, 0.0
    %v2864 = vadd.f32 %v2862, %v2863
    %v2865 = vsel %vm591, %v2821, 0.0
    %v2866 = vsel %vm591, %v2823, 0.0
    %v2867 = vadd.f32 %v2865, %v2866
    %v2868 = vsel %vm591, %v2825, 0.0
    %v2869 = vadd.f32 %v2867, %v2868
    %v2870 = vsel %vm591, %v2827, 0.0
    %v2871 = vadd.f32 %v2869, %v2870
    %v2872 = vsel %vm591, %v2828, 0.0
    %v2873 = vsel %vm591, %v2830, 0.0
    %v2874 = vadd.f32 %v2872, %v2873
    %v2875 = vsel %vm591, %v2832, 0.0
    %v2876 = vadd.f32 %v2874, %v2875
    %v2877 = vsel %vm591, %v2834, 0.0
    %v2878 = vadd.f32 %v2876, %v2877
    %v2879 = vsel %vm591, %v2829, 0.0
    %v2880 = vsel %vm591, %v2831, 0.0
    %v2881 = vadd.f32 %v2879, %v2880
    %v2882 = vsel %vm591, %v2833, 0.0
    %v2883 = vadd.f32 %v2881, %v2882
    %v2884 = vsel %vm591, %v2835, 0.0
    %v2885 = vadd.f32 %v2883, %v2884
    %v2886 = vsel %vm591, %v2836, 0.0
    %v2887 = vsel %vm591, %v2838, 0.0
    %v2888 = vadd.f32 %v2886, %v2887
    %v2889 = vsel %vm591, %v2840, 0.0
    %v2890 = vadd.f32 %v2888, %v2889
    %v2891 = vsel %vm591, %v2842, 0.0
    %v2892 = vadd.f32 %v2890, %v2891
    %v2893 = vsel %vm591, %v2837, 0.0
    %v2894 = vsel %vm591, %v2839, 0.0
    %v2895 = vadd.f32 %v2893, %v2894
    %v2896 = vsel %vm591, %v2841, 0.0
    %v2897 = vadd.f32 %v2895, %v2896
    %v2898 = vsel %vm591, %v2843, 0.0
    %v2899 = vadd.f32 %v2897, %v2898
    %v2900 = vlaneseq
    %v2901 = vshrl.u32 %v2900, 7
    %v2902 = vsub.s32 0, %v2901
    %v2903 = vrot.slane %v2630, %v2902
    %2905 = vbcast.lane.b32.xlu0 %v2903, 256
    %v2906 = vpop.permute.xlu0 %2905
    %s2908 = sor.u32 256, 8
    %2909 = vbcast.lane.b32.xlu0 %v2903, %s2908
    %v2910 = vpop.permute.xlu0 %2909
    %v2911 = vlaneseq
    %v2912 = vshrl.u32 %v2911, 7
    %v2913 = vsub.s32 1, %v2912
    %v2914 = vrot.slane %v2630, %v2913
    %2916 = vbcast.lane.b32.xlu0 %v2914, 256
    %v2917 = vpop.permute.xlu0 %2916
    %s2919 = sor.u32 256, 8
    %2920 = vbcast.lane.b32.xlu0 %v2914, %s2919
    %v2921 = vpop.permute.xlu0 %2920
    %v2922 = vlaneseq
    %v2923 = vshrl.u32 %v2922, 7
    %v2924 = vsub.s32 2, %v2923
    %v2925 = vrot.slane %v2630, %v2924
    %2927 = vbcast.lane.b32.xlu0 %v2925, 256
    %v2928 = vpop.permute.xlu0 %2927
    %s2930 = sor.u32 256, 8
    %2931 = vbcast.lane.b32.xlu0 %v2925, %s2930
    %v2932 = vpop.permute.xlu0 %2931
    %v2933 = vlaneseq
    %v2934 = vshrl.u32 %v2933, 7
    %v2935 = vsub.s32 3, %v2934
    %v2936 = vrot.slane %v2630, %v2935
    %2938 = vbcast.lane.b32.xlu0 %v2936, 256
    %v2939 = vpop.permute.xlu0 %2938
    %s2941 = sor.u32 256, 8
    %2942 = vbcast.lane.b32.xlu0 %v2936, %s2941
    %v2943 = vpop.permute.xlu0 %2942
    %v2944 = vlaneseq
    %v2945 = vshrl.u32 %v2944, 7
    %v2946 = vsub.s32 4, %v2945
    %v2947 = vrot.slane %v2630, %v2946
    %2949 = vbcast.lane.b32.xlu0 %v2947, 256
    %v2950 = vpop.permute.xlu0 %2949
    %s2952 = sor.u32 256, 8
    %2953 = vbcast.lane.b32.xlu0 %v2947, %s2952
    %v2954 = vpop.permute.xlu0 %2953
    %v2955 = vlaneseq
    %v2956 = vshrl.u32 %v2955, 7
    %v2957 = vsub.s32 5, %v2956
    %v2958 = vrot.slane %v2630, %v2957
    %2960 = vbcast.lane.b32.xlu0 %v2958, 256
    %v2961 = vpop.permute.xlu0 %2960
    %s2963 = sor.u32 256, 8
    %2964 = vbcast.lane.b32.xlu0 %v2958, %s2963
    %v2965 = vpop.permute.xlu0 %2964
    %v2966 = vlaneseq
    %v2967 = vshrl.u32 %v2966, 7
    %v2968 = vsub.s32 6, %v2967
    %v2969 = vrot.slane %v2630, %v2968
    %2971 = vbcast.lane.b32.xlu0 %v2969, 256
    %v2972 = vpop.permute.xlu0 %2971
    %s2974 = sor.u32 256, 8
    %2975 = vbcast.lane.b32.xlu0 %v2969, %s2974
    %v2976 = vpop.permute.xlu0 %2975
    %v2977 = vlaneseq
    %v2978 = vshrl.u32 %v2977, 7
    %v2979 = vsub.s32 7, %v2978
    %v2980 = vrot.slane %v2630, %v2979
    %2982 = vbcast.lane.b32.xlu0 %v2980, 256
    %v2983 = vpop.permute.xlu0 %2982
    %s2985 = sor.u32 256, 8
    %2986 = vbcast.lane.b32.xlu0 %v2980, %s2985
    %v2987 = vpop.permute.xlu0 %2986
    %v2988 = vlaneseq
    %v2989 = vshrl.u32 %v2988, 7
    %v2990 = vsub.s32 0, %v2989
    %v2991 = vrot.slane %v2631, %v2990
    %2993 = vbcast.lane.b32.xlu0 %v2991, 256
    %v2994 = vpop.permute.xlu0 %2993
    %s2996 = sor.u32 256, 8
    %2997 = vbcast.lane.b32.xlu0 %v2991, %s2996
    %v2998 = vpop.permute.xlu0 %2997
    %v2999 = vlaneseq
    %v3000 = vshrl.u32 %v2999, 7
    %v3001 = vsub.s32 1, %v3000
    %v3002 = vrot.slane %v2631, %v3001
    %3004 = vbcast.lane.b32.xlu0 %v3002, 256
    %v3005 = vpop.permute.xlu0 %3004
    %s3007 = sor.u32 256, 8
    %3008 = vbcast.lane.b32.xlu0 %v3002, %s3007
    %v3009 = vpop.permute.xlu0 %3008
    %v3010 = vlaneseq
    %v3011 = vshrl.u32 %v3010, 7
    %v3012 = vsub.s32 2, %v3011
    %v3013 = vrot.slane %v2631, %v3012
    %3015 = vbcast.lane.b32.xlu0 %v3013, 256
    %v3016 = vpop.permute.xlu0 %3015
    %s3018 = sor.u32 256, 8
    %3019 = vbcast.lane.b32.xlu0 %v3013, %s3018
    %v3020 = vpop.permute.xlu0 %3019
    %v3021 = vlaneseq
    %v3022 = vshrl.u32 %v3021, 7
    %v3023 = vsub.s32 3, %v3022
    %v3024 = vrot.slane %v2631, %v3023
    %3026 = vbcast.lane.b32.xlu0 %v3024, 256
    %v3027 = vpop.permute.xlu0 %3026
    %s3029 = sor.u32 256, 8
    %3030 = vbcast.lane.b32.xlu0 %v3024, %s3029
    %v3031 = vpop.permute.xlu0 %3030
    %v3032 = vlaneseq
    %v3033 = vshrl.u32 %v3032, 7
    %v3034 = vsub.s32 4, %v3033
    %v3035 = vrot.slane %v2631, %v3034
    %3037 = vbcast.lane.b32.xlu0 %v3035, 256
    %v3038 = vpop.permute.xlu0 %3037
    %s3040 = sor.u32 256, 8
    %3041 = vbcast.lane.b32.xlu0 %v3035, %s3040
    %v3042 = vpop.permute.xlu0 %3041
    %v3043 = vlaneseq
    %v3044 = vshrl.u32 %v3043, 7
    %v3045 = vsub.s32 5, %v3044
    %v3046 = vrot.slane %v2631, %v3045
    %3048 = vbcast.lane.b32.xlu0 %v3046, 256
    %v3049 = vpop.permute.xlu0 %3048
    %s3051 = sor.u32 256, 8
    %3052 = vbcast.lane.b32.xlu0 %v3046, %s3051
    %v3053 = vpop.permute.xlu0 %3052
    %v3054 = vlaneseq
    %v3055 = vshrl.u32 %v3054, 7
    %v3056 = vsub.s32 6, %v3055
    %v3057 = vrot.slane %v2631, %v3056
    %3059 = vbcast.lane.b32.xlu0 %v3057, 256
    %v3060 = vpop.permute.xlu0 %3059
    %s3062 = sor.u32 256, 8
    %3063 = vbcast.lane.b32.xlu0 %v3057, %s3062
    %v3064 = vpop.permute.xlu0 %3063
    %v3065 = vlaneseq
    %v3066 = vshrl.u32 %v3065, 7
    %v3067 = vsub.s32 7, %v3066
    %v3068 = vrot.slane %v2631, %v3067
    %3070 = vbcast.lane.b32.xlu0 %v3068, 256
    %v3071 = vpop.permute.xlu0 %3070
    %s3073 = sor.u32 256, 8
    %3074 = vbcast.lane.b32.xlu0 %v3068, %s3073
    %v3075 = vpop.permute.xlu0 %3074
    %v3076 = vmul.f32 %v2906, %v114
    %v3077 = vmul.f32 %v2910, %v115
    %v3078 = vmul.f32 %v2917, %v116
    %v3079 = vmul.f32 %v2921, %v117
    %v3080 = vmul.f32 %v2928, %v118
    %v3081 = vmul.f32 %v2932, %v119
    %v3082 = vmul.f32 %v2939, %v120
    %v3083 = vmul.f32 %v2943, %v121
    %v3084 = vmul.f32 %v2950, %v122
    %v3085 = vmul.f32 %v2954, %v123
    %v3086 = vmul.f32 %v2961, %v124
    %v3087 = vmul.f32 %v2965, %v125
    %v3088 = vmul.f32 %v2972, %v126
    %v3089 = vmul.f32 %v2976, %v127
    %v3090 = vmul.f32 %v2983, %v128
    %v3091 = vmul.f32 %v2987, %v129
    %v3092 = vmul.f32 %v2994, %v130
    %v3093 = vmul.f32 %v2998, %v131
    %v3094 = vmul.f32 %v3005, %v132
    %v3095 = vmul.f32 %v3009, %v133
    %v3096 = vmul.f32 %v3016, %v134
    %v3097 = vmul.f32 %v3020, %v135
    %v3098 = vmul.f32 %v3027, %v136
    %v3099 = vmul.f32 %v3031, %v137
    %v3100 = vmul.f32 %v3038, %v138
    %v3101 = vmul.f32 %v3042, %v139
    %v3102 = vmul.f32 %v3049, %v140
    %v3103 = vmul.f32 %v3053, %v141
    %v3104 = vmul.f32 %v3060, %v142
    %v3105 = vmul.f32 %v3064, %v143
    %v3106 = vmul.f32 %v3071, %v144
    %v3107 = vmul.f32 %v3075, %v145
    %v3108 = vsel %vm591, %v3076, 0.0
    %v3109 = vsel %vm591, %v3078, 0.0
    %v3110 = vadd.f32 %v3108, %v3109
    %v3111 = vsel %vm591, %v3080, 0.0
    %v3112 = vadd.f32 %v3110, %v3111
    %v3113 = vsel %vm591, %v3082, 0.0
    %v3114 = vadd.f32 %v3112, %v3113
    %v3115 = vsel %vm591, %v3077, 0.0
    %v3116 = vsel %vm591, %v3079, 0.0
    %v3117 = vadd.f32 %v3115, %v3116
    %v3118 = vsel %vm591, %v3081, 0.0
    %v3119 = vadd.f32 %v3117, %v3118
    %v3120 = vsel %vm591, %v3083, 0.0
    %v3121 = vadd.f32 %v3119, %v3120
    %v3122 = vsel %vm591, %v3084, 0.0
    %v3123 = vsel %vm591, %v3086, 0.0
    %v3124 = vadd.f32 %v3122, %v3123
    %v3125 = vsel %vm591, %v3088, 0.0
    %v3126 = vadd.f32 %v3124, %v3125
    %v3127 = vsel %vm591, %v3090, 0.0
    %v3128 = vadd.f32 %v3126, %v3127
    %v3129 = vsel %vm591, %v3085, 0.0
    %v3130 = vsel %vm591, %v3087, 0.0
    %v3131 = vadd.f32 %v3129, %v3130
    %v3132 = vsel %vm591, %v3089, 0.0
    %v3133 = vadd.f32 %v3131, %v3132
    %v3134 = vsel %vm591, %v3091, 0.0
    %v3135 = vadd.f32 %v3133, %v3134
    %v3136 = vsel %vm591, %v3092, 0.0
    %v3137 = vsel %vm591, %v3094, 0.0
    %v3138 = vadd.f32 %v3136, %v3137
    %v3139 = vsel %vm591, %v3096, 0.0
    %v3140 = vadd.f32 %v3138, %v3139
    %v3141 = vsel %vm591, %v3098, 0.0
    %v3142 = vadd.f32 %v3140, %v3141
    %v3143 = vsel %vm591, %v3093, 0.0
    %v3144 = vsel %vm591, %v3095, 0.0
    %v3145 = vadd.f32 %v3143, %v3144
    %v3146 = vsel %vm591, %v3097, 0.0
    %v3147 = vadd.f32 %v3145, %v3146
    %v3148 = vsel %vm591, %v3099, 0.0
    %v3149 = vadd.f32 %v3147, %v3148
    %v3150 = vsel %vm591, %v3100, 0.0
    %v3151 = vsel %vm591, %v3102, 0.0
    %v3152 = vadd.f32 %v3150, %v3151
    %v3153 = vsel %vm591, %v3104, 0.0
    %v3154 = vadd.f32 %v3152, %v3153
    %v3155 = vsel %vm591, %v3106, 0.0
    %v3156 = vadd.f32 %v3154, %v3155
    %v3157 = vsel %vm591, %v3101, 0.0
    %v3158 = vsel %vm591, %v3103, 0.0
    %v3159 = vadd.f32 %v3157, %v3158
    %v3160 = vsel %vm591, %v3105, 0.0
    %v3161 = vadd.f32 %v3159, %v3160
    %v3162 = vsel %vm591, %v3107, 0.0
    %v3163 = vadd.f32 %v3161, %v3162
    %v3164 = vmul.f32 %v2630, %v915
    %v3165 = vmul.f32 %v2631, %v920
    %v3168 = vcombine.high %v3164, %v3164
    %v3170 = vunpack.c.l.s4 1966171168
    %v3171 = vunpack.c.0.s8 %v3170
    %v3172 = vlaneseq
    %v3173 = vshrl.u32 %v3172, 7
    %v3174 = vsub.s32 %v3171, %v3173
    %v3175 = vrot.slane %v3164, %v3174
    %v3177 = vunpack.c.l.s4 1966171168
    %v3178 = vunpack.c.0.s8 %v3177
    %v3179 = vlaneseq
    %v3180 = vshrl.u32 %v3179, 7
    %v3181 = vsub.s32 %v3178, %v3180
    %v3182 = vrot.slane %v3168, %v3181
    %v3183 = vcombine.high %v3175, %v3175
    %v3184 = vcombine.high %v3182, %v3182
    %v3186 = vunpack.c.l.s4 1966171168
    %v3187 = vunpack.c.0.s8 %v3186
    %v3188 = vlaneseq
    %v3189 = vshrl.u32 %v3188, 7
    %v3190 = vsub.s32 %v3187, %v3189
    %v3191 = vrot.slane %v3175, %v3190
    %v3193 = vunpack.c.l.s4 1966171168
    %v3194 = vunpack.c.0.s8 %v3193
    %v3195 = vlaneseq
    %v3196 = vshrl.u32 %v3195, 7
    %v3197 = vsub.s32 %v3194, %v3196
    %v3198 = vrot.slane %v3182, %v3197
    %v3200 = vunpack.c.l.s4 1966171168
    %v3201 = vunpack.c.0.s8 %v3200
    %v3202 = vlaneseq
    %v3203 = vshrl.u32 %v3202, 7
    %v3204 = vsub.s32 %v3201, %v3203
    %v3205 = vrot.slane %v3183, %v3204
    %v3207 = vunpack.c.l.s4 1966171168
    %v3208 = vunpack.c.0.s8 %v3207
    %v3209 = vlaneseq
    %v3210 = vshrl.u32 %v3209, 7
    %v3211 = vsub.s32 %v3208, %v3210
    %v3212 = vrot.slane %v3184, %v3211
    %v3213 = vcombine.high %v3191, %v3191
    %v3214 = vcombine.high %v3198, %v3198
    %v3215 = vcombine.high %v3205, %v3205
    %v3216 = vcombine.high %v3212, %v3212
    %v3217 = vcombine.high %v3165, %v3165
    %v3219 = vunpack.c.l.s4 1966171168
    %v3220 = vunpack.c.0.s8 %v3219
    %v3221 = vlaneseq
    %v3222 = vshrl.u32 %v3221, 7
    %v3223 = vsub.s32 %v3220, %v3222
    %v3224 = vrot.slane %v3165, %v3223
    %v3226 = vunpack.c.l.s4 1966171168
    %v3227 = vunpack.c.0.s8 %v3226
    %v3228 = vlaneseq
    %v3229 = vshrl.u32 %v3228, 7
    %v3230 = vsub.s32 %v3227, %v3229
    %v3231 = vrot.slane %v3217, %v3230
    %v3232 = vcombine.high %v3224, %v3224
    %v3233 = vcombine.high %v3231, %v3231
    %v3235 = vunpack.c.l.s4 1966171168
    %v3236 = vunpack.c.0.s8 %v3235
    %v3237 = vlaneseq
    %v3238 = vshrl.u32 %v3237, 7
    %v3239 = vsub.s32 %v3236, %v3238
    %v3240 = vrot.slane %v3224, %v3239
    %v3242 = vunpack.c.l.s4 1966171168
    %v3243 = vunpack.c.0.s8 %v3242
    %v3244 = vlaneseq
    %v3245 = vshrl.u32 %v3244, 7
    %v3246 = vsub.s32 %v3243, %v3245
    %v3247 = vrot.slane %v3231, %v3246
    %v3249 = vunpack.c.l.s4 1966171168
    %v3250 = vunpack.c.0.s8 %v3249
    %v3251 = vlaneseq
    %v3252 = vshrl.u32 %v3251, 7
    %v3253 = vsub.s32 %v3250, %v3252
    %v3254 = vrot.slane %v3232, %v3253
    %v3256 = vunpack.c.l.s4 1966171168
    %v3257 = vunpack.c.0.s8 %v3256
    %v3258 = vlaneseq
    %v3259 = vshrl.u32 %v3258, 7
    %v3260 = vsub.s32 %v3257, %v3259
    %v3261 = vrot.slane %v3233, %v3260
    %v3262 = vcombine.high %v3240, %v3240
    %v3263 = vcombine.high %v3247, %v3247
    %v3264 = vcombine.high %v3254, %v3254
    %v3265 = vcombine.high %v3261, %v3261
    %v3266 = vlaneseq
    %v3267 = vshrl.u32 %v3266, 7
    %v3268 = vsub.s32 0, %v3267
    %v3269 = vrot.slane %v3191, %v3268
    %v3270 = vlaneseq
    %v3271 = vshrl.u32 %v3270, 7
    %v3272 = vsub.s32 0, %v3271
    %v3273 = vrot.slane %v3205, %v3272
    %v3274 = vlaneseq
    %v3275 = vshrl.u32 %v3274, 7
    %v3276 = vsub.s32 0, %v3275
    %v3277 = vrot.slane %v3213, %v3276
    %v3278 = vlaneseq
    %v3279 = vshrl.u32 %v3278, 7
    %v3280 = vsub.s32 0, %v3279
    %v3281 = vrot.slane %v3215, %v3280
    %v3282 = vlaneseq
    %v3283 = vshrl.u32 %v3282, 7
    %v3284 = vsub.s32 0, %v3283
    %v3285 = vrot.slane %v3198, %v3284
    %v3286 = vlaneseq
    %v3287 = vshrl.u32 %v3286, 7
    %v3288 = vsub.s32 0, %v3287
    %v3289 = vrot.slane %v3212, %v3288
    %v3290 = vlaneseq
    %v3291 = vshrl.u32 %v3290, 7
    %v3292 = vsub.s32 0, %v3291
    %v3293 = vrot.slane %v3214, %v3292
    %v3294 = vlaneseq
    %v3295 = vshrl.u32 %v3294, 7
    %v3296 = vsub.s32 0, %v3295
    %v3297 = vrot.slane %v3216, %v3296
    %v3298 = vlaneseq
    %v3299 = vshrl.u32 %v3298, 7
    %v3300 = vsub.s32 0, %v3299
    %v3301 = vrot.slane %v3240, %v3300
    %v3302 = vlaneseq
    %v3303 = vshrl.u32 %v3302, 7
    %v3304 = vsub.s32 0, %v3303
    %v3305 = vrot.slane %v3254, %v3304
    %v3306 = vlaneseq
    %v3307 = vshrl.u32 %v3306, 7
    %v3308 = vsub.s32 0, %v3307
    %v3309 = vrot.slane %v3262, %v3308
    %v3310 = vlaneseq
    %v3311 = vshrl.u32 %v3310, 7
    %v3312 = vsub.s32 0, %v3311
    %v3313 = vrot.slane %v3264, %v3312
    %v3314 = vlaneseq
    %v3315 = vshrl.u32 %v3314, 7
    %v3316 = vsub.s32 0, %v3315
    %v3317 = vrot.slane %v3247, %v3316
    %v3318 = vlaneseq
    %v3319 = vshrl.u32 %v3318, 7
    %v3320 = vsub.s32 0, %v3319
    %v3321 = vrot.slane %v3261, %v3320
    %v3322 = vlaneseq
    %v3323 = vshrl.u32 %v3322, 7
    %v3324 = vsub.s32 0, %v3323
    %v3325 = vrot.slane %v3263, %v3324
    %v3326 = vlaneseq
    %v3327 = vshrl.u32 %v3326, 7
    %v3328 = vsub.s32 0, %v3327
    %v3329 = vrot.slane %v3265, %v3328
    %v3346 = vmul.f32 %v2642, %v3269
    %v3347 = vmul.f32 %v2646, %v3269
    %v3348 = vmul.f32 %v2653, %v3273
    %v3349 = vmul.f32 %v2657, %v3273
    %v3350 = vmul.f32 %v2664, %v3277
    %v3351 = vmul.f32 %v2668, %v3277
    %v3352 = vmul.f32 %v2675, %v3281
    %v3353 = vmul.f32 %v2679, %v3281
    %v3354 = vmul.f32 %v2686, %v3285
    %v3355 = vmul.f32 %v2690, %v3285
    %v3356 = vmul.f32 %v2697, %v3289
    %v3357 = vmul.f32 %v2701, %v3289
    %v3358 = vmul.f32 %v2708, %v3293
    %v3359 = vmul.f32 %v2712, %v3293
    %v3360 = vmul.f32 %v2719, %v3297
    %v3361 = vmul.f32 %v2723, %v3297
    %v3362 = vmul.f32 %v2730, %v3301
    %v3363 = vmul.f32 %v2734, %v3301
    %v3364 = vmul.f32 %v2741, %v3305
    %v3365 = vmul.f32 %v2745, %v3305
    %v3366 = vmul.f32 %v2752, %v3309
    %v3367 = vmul.f32 %v2756, %v3309
    %v3368 = vmul.f32 %v2763, %v3313
    %v3369 = vmul.f32 %v2767, %v3313
    %v3370 = vmul.f32 %v2774, %v3317
    %v3371 = vmul.f32 %v2778, %v3317
    %v3372 = vmul.f32 %v2785, %v3321
    %v3373 = vmul.f32 %v2789, %v3321
    %v3374 = vmul.f32 %v2796, %v3325
    %v3375 = vmul.f32 %v2800, %v3325
    %v3376 = vmul.f32 %v2807, %v3329
    %v3377 = vmul.f32 %v2811, %v3329
    %v3378 = vsel %vm591, %v3346, 0.0
    %v3379 = vsel %vm591, %v3348, 0.0
    %v3380 = vadd.f32 %v3378, %v3379
    %v3381 = vsel %vm591, %v3350, 0.0
    %v3382 = vadd.f32 %v3380, %v3381
    %v3383 = vsel %vm591, %v3352, 0.0
    %v3384 = vadd.f32 %v3382, %v3383
    %v3385 = vsel %vm591, %v3347, 0.0
    %v3386 = vsel %vm591, %v3349, 0.0
    %v3387 = vadd.f32 %v3385, %v3386
    %v3388 = vsel %vm591, %v3351, 0.0
    %v3389 = vadd.f32 %v3387, %v3388
    %v3390 = vsel %vm591, %v3353, 0.0
    %v3391 = vadd.f32 %v3389, %v3390
    %v3392 = vsel %vm591, %v3354, 0.0
    %v3393 = vsel %vm591, %v3356, 0.0
    %v3394 = vadd.f32 %v3392, %v3393
    %v3395 = vsel %vm591, %v3358, 0.0
    %v3396 = vadd.f32 %v3394, %v3395
    %v3397 = vsel %vm591, %v3360, 0.0
    %v3398 = vadd.f32 %v3396, %v3397
    %v3399 = vsel %vm591, %v3355, 0.0
    %v3400 = vsel %vm591, %v3357, 0.0
    %v3401 = vadd.f32 %v3399, %v3400
    %v3402 = vsel %vm591, %v3359, 0.0
    %v3403 = vadd.f32 %v3401, %v3402
    %v3404 = vsel %vm591, %v3361, 0.0
    %v3405 = vadd.f32 %v3403, %v3404
    %v3406 = vsel %vm591, %v3362, 0.0
    %v3407 = vsel %vm591, %v3364, 0.0
    %v3408 = vadd.f32 %v3406, %v3407
    %v3409 = vsel %vm591, %v3366, 0.0
    %v3410 = vadd.f32 %v3408, %v3409
    %v3411 = vsel %vm591, %v3368, 0.0
    %v3412 = vadd.f32 %v3410, %v3411
    %v3413 = vsel %vm591, %v3363, 0.0
    %v3414 = vsel %vm591, %v3365, 0.0
    %v3415 = vadd.f32 %v3413, %v3414
    %v3416 = vsel %vm591, %v3367, 0.0
    %v3417 = vadd.f32 %v3415, %v3416
    %v3418 = vsel %vm591, %v3369, 0.0
    %v3419 = vadd.f32 %v3417, %v3418
    %v3420 = vsel %vm591, %v3370, 0.0
    %v3421 = vsel %vm591, %v3372, 0.0
    %v3422 = vadd.f32 %v3420, %v3421
    %v3423 = vsel %vm591, %v3374, 0.0
    %v3424 = vadd.f32 %v3422, %v3423
    %v3425 = vsel %vm591, %v3376, 0.0
    %v3426 = vadd.f32 %v3424, %v3425
    %v3427 = vsel %vm591, %v3371, 0.0
    %v3428 = vsel %vm591, %v3373, 0.0
    %v3429 = vadd.f32 %v3427, %v3428
    %v3430 = vsel %vm591, %v3375, 0.0
    %v3431 = vadd.f32 %v3429, %v3430
    %v3432 = vsel %vm591, %v3377, 0.0
    %v3433 = vadd.f32 %v3431, %v3432
    %v3434 = vadd.f32 %v2850, %v3114
    %v3435 = vadd.f32 %v2857, %v3121
    %v3436 = vadd.f32 %v2864, %v3128
    %v3437 = vadd.f32 %v2871, %v3135
    %v3438 = vadd.f32 %v2878, %v3142
    %v3439 = vadd.f32 %v2885, %v3149
    %v3440 = vadd.f32 %v2892, %v3156
    %v3441 = vadd.f32 %v2899, %v3163
    %v3442 = vadd.f32 %v3434, %v3384
    %v3443 = vadd.f32 %v3435, %v3391
    %v3444 = vadd.f32 %v3436, %v3398
    %v3445 = vadd.f32 %v3437, %v3405
    %v3446 = vadd.f32 %v3438, %v3412
    %v3447 = vadd.f32 %v3439, %v3419
    %v3448 = vadd.f32 %v3440, %v3426
    %v3449 = vadd.f32 %v3441, %v3433
    %v3450 = vsel %vm591, %v3442, -inf
    %3451 = vmax.xlane.f32.xlu0 %v3450
    %v3452 = vpop.xlane.xlu0 %3451
    %v3453 = vsel %vm591, %v3443, -inf
    %3454 = vmax.xlane.f32.xlu0 %v3453
    %v3455 = vpop.xlane.xlu0 %3454
    %v3456 = vsel %vm591, %v3444, -inf
    %3457 = vmax.xlane.f32.xlu0 %v3456
    %v3458 = vpop.xlane.xlu0 %3457
    %v3459 = vsel %vm591, %v3445, -inf
    %3460 = vmax.xlane.f32.xlu0 %v3459
    %v3461 = vpop.xlane.xlu0 %3460
    %v3462 = vsel %vm591, %v3446, -inf
    %3463 = vmax.xlane.f32.xlu0 %v3462
    %v3464 = vpop.xlane.xlu0 %3463
    %v3465 = vsel %vm591, %v3447, -inf
    %3466 = vmax.xlane.f32.xlu0 %v3465
    %v3467 = vpop.xlane.xlu0 %3466
    %v3468 = vsel %vm591, %v3448, -inf
    %3469 = vmax.xlane.f32.xlu0 %v3468
    %v3470 = vpop.xlane.xlu0 %3469
    %v3471 = vsel %vm591, %v3449, -inf
    %3472 = vmax.xlane.f32.xlu0 %v3471
    %v3473 = vpop.xlane.xlu0 %3472
    %v3474 = vsub.f32 %v3442, %v3452
    %v3475 = vsub.f32 %v3443, %v3455
    %v3476 = vsub.f32 %v3444, %v3458
    %v3477 = vsub.f32 %v3445, %v3461
    %v3478 = vsub.f32 %v3446, %v3464
    %v3479 = vsub.f32 %v3447, %v3467
    %v3480 = vsub.f32 %v3448, %v3470
    %v3481 = vsub.f32 %v3449, %v3473
    %v3482 = vmul.f32 %v3474, 1.442695
    %v3483 = vpow.pop %v3482
    %v3484 = vmul.f32 %v3475, 1.442695
    %v3485 = vpow.pop %v3484
    %v3486 = vmul.f32 %v3476, 1.442695
    %v3487 = vpow.pop %v3486
    %v3488 = vmul.f32 %v3477, 1.442695
    %v3489 = vpow.pop %v3488
    %v3490 = vmul.f32 %v3478, 1.442695
    %v3491 = vpow.pop %v3490
    %v3492 = vmul.f32 %v3479, 1.442695
    %v3493 = vpow.pop %v3492
    %v3494 = vmul.f32 %v3480, 1.442695
    %v3495 = vpow.pop %v3494
    %v3496 = vmul.f32 %v3481, 1.442695
    %v3497 = vpow.pop %v3496
    %v3498 = vsel %vm591, %v3483, 0.0
    %3499 = vadd.xlane.f32.xlu0 %v3498
    %v3500 = vpop.xlane.xlu0 %3499
    %v3501 = vsel %vm591, %v3485, 0.0
    %3502 = vadd.xlane.f32.xlu0 %v3501
    %v3503 = vpop.xlane.xlu0 %3502
    %v3504 = vsel %vm591, %v3487, 0.0
    %3505 = vadd.xlane.f32.xlu0 %v3504
    %v3506 = vpop.xlane.xlu0 %3505
    %v3507 = vsel %vm591, %v3489, 0.0
    %3508 = vadd.xlane.f32.xlu0 %v3507
    %v3509 = vpop.xlane.xlu0 %3508
    %v3510 = vsel %vm591, %v3491, 0.0
    %3511 = vadd.xlane.f32.xlu0 %v3510
    %v3512 = vpop.xlane.xlu0 %3511
    %v3513 = vsel %vm591, %v3493, 0.0
    %3514 = vadd.xlane.f32.xlu0 %v3513
    %v3515 = vpop.xlane.xlu0 %3514
    %v3516 = vsel %vm591, %v3495, 0.0
    %3517 = vadd.xlane.f32.xlu0 %v3516
    %v3518 = vpop.xlane.xlu0 %3517
    %v3519 = vsel %vm591, %v3497, 0.0
    %3520 = vadd.xlane.f32.xlu0 %v3519
    %v3521 = vpop.xlane.xlu0 %3520
    %v3522 = vrcp.pop %v3500
    %v3523 = vmul.f32 %v3483, %v3522
    %v3524 = vrcp.pop %v3503
    %v3525 = vmul.f32 %v3485, %v3524
    %v3526 = vrcp.pop %v3506
    %v3527 = vmul.f32 %v3487, %v3526
    %v3528 = vrcp.pop %v3509
    %v3529 = vmul.f32 %v3489, %v3528
    %v3530 = vrcp.pop %v3512
    %v3531 = vmul.f32 %v3491, %v3530
    %v3532 = vrcp.pop %v3515
    %v3533 = vmul.f32 %v3493, %v3532
    %v3534 = vrcp.pop %v3518
    %v3535 = vmul.f32 %v3495, %v3534
    %v3536 = vrcp.pop %v3521
    %v3537 = vmul.f32 %v3497, %v3536
    %3538 = vxpose.xlu0.b32.start [1/16] %v2632, 128
    %3539 = vxpose.xlu0.b32.cont [2/16] 0.0, 128
    %3540 = vxpose.xlu0.b32.cont [3/16] 0.0, 128
    %3541 = vxpose.xlu0.b32.cont [4/16] 0.0, 128
    %3542 = vxpose.xlu0.b32.cont [5/16] 0.0, 128
    %3543 = vxpose.xlu0.b32.cont [6/16] 0.0, 128
    %3544 = vxpose.xlu0.b32.cont [7/16] 0.0, 128
    %3545 = vxpose.xlu0.b32.cont [8/16] 0.0, 128
    %3546 = vxpose.xlu0.b32.cont [9/16] 0.0, 128
    %3547 = vxpose.xlu0.b32.cont [10/16] 0.0, 128
    %3548 = vxpose.xlu0.b32.cont [11/16] 0.0, 128
    %3549 = vxpose.xlu0.b32.cont [12/16] 0.0, 128
    %3550 = vxpose.xlu0.b32.cont [13/16] 0.0, 128
    %3551 = vxpose.xlu0.b32.cont [14/16] 0.0, 128
    %3552 = vxpose.xlu0.b32.cont [15/16] 0.0, 128
    %3553 = vxpose.xlu0.b32.end [16/16] 0.0, 128
    %v3554 = vpop.trf.xlu0
    %v3555 = vpop.trf.xlu0
    %v3556 = vpop.trf.xlu0
    %v3557 = vpop.trf.xlu0
    %v3558 = vpop.trf.xlu0
    %v3559 = vpop.trf.xlu0
    %v3560 = vpop.trf.xlu0
    %v3561 = vpop.trf.xlu0
    %v3562 = vpop.trf.xlu0
    %v3563 = vpop.trf.xlu0
    %v3564 = vpop.trf.xlu0
    %v3565 = vpop.trf.xlu0
    %v3566 = vpop.trf.xlu0
    %v3567 = vpop.trf.xlu0
    %v3568 = vpop.trf.xlu0
    %v3569 = vpop.trf.xlu0
    %v3571 = vsel %vm1328, %v3554, 0
    %v3574 = vsel %vm1328, %v3555, 0
    %3576 = vmatprep.subr.mxu0 0.0
    %3577 = vmatpush1.msra.mxu0 0.0
    %3578 = vmatprep.subr.mxu0 0.0
    %3579 = vmatpush1.msra.mxu0 0.0
    %3580 = vmatprep.subr.mxu0 0.0
    %3581 = vmatpush1.msra.mxu0 0.0
    %3582 = vmatprep.subr.mxu0 0.0
    %3583 = vmatpush1.msra.mxu0 0.0
    %3584 = vmatprep.subr.mxu0 0.0
    %3585 = vmatpush1.msra.mxu0 0.0
    %3586 = vmatprep.subr.mxu0 0.0
    %3587 = vmatpush1.msra.mxu0 0.0
    %3588 = vmatprep.subr.mxu0 0.0
    %3589 = vmatpush1.msra.mxu0 0.0
    %3590 = vmatprep.subr.mxu0 0.0
    %3591 = vmatpush1.msra.mxu0 0.0
    %3592 = vmatprep.subr.mxu0 0.0
    %3593 = vmatpush1.msra.mxu0 0.0
    %3594 = vmatprep.subr.mxu0 0.0
    %3595 = vmatpush1.msra.mxu0 0.0
    %3596 = vmatprep.subr.mxu0 0.0
    %3597 = vmatpush1.msra.mxu0 0.0
    %3598 = vmatprep.subr.mxu0 0.0
    %3599 = vmatpush1.msra.mxu0 0.0
    %3600 = vmatprep.subr.mxu0 0.0
    %3601 = vmatpush1.msra.mxu0 0.0
    %3602 = vmatprep.subr.mxu0 0.0
    %3603 = vmatpush1.msra.mxu0 0.0
    %3604 = vmatprep.subr.mxu0 0.0
    %3605 = vmatpush1.msra.mxu0 0.0
    %3606 = vmatprep.subr.mxu0 0.0
    %3607 = vmatpush1.msra.mxu0 %v150
    %3608 = vmatprep.subr.mxu0 0.0
    %3609 = vmatpush2.msra.mxu0 0.0
    %3610 = vmatprep.subr.mxu0 0.0
    %3611 = vmatpush2.msra.mxu0 0.0
    %3612 = vmatprep.subr.mxu0 0.0
    %3613 = vmatpush2.msra.mxu0 0.0
    %3614 = vmatprep.subr.mxu0 0.0
    %3615 = vmatpush2.msra.mxu0 0.0
    %3616 = vmatprep.subr.mxu0 0.0
    %3617 = vmatpush2.msra.mxu0 0.0
    %3618 = vmatprep.subr.mxu0 0.0
    %3619 = vmatpush2.msra.mxu0 0.0
    %3620 = vmatprep.subr.mxu0 0.0
    %3621 = vmatpush2.msra.mxu0 0.0
    %3622 = vmatprep.subr.mxu0 0.0
    %3623 = vmatpush2.msra.mxu0 0.0
    %3624 = vmatprep.subr.mxu0 0.0
    %3625 = vmatpush2.msra.mxu0 0.0
    %3626 = vmatprep.subr.mxu0 0.0
    %3627 = vmatpush2.msra.mxu0 0.0
    %3628 = vmatprep.subr.mxu0 0.0
    %3629 = vmatpush2.msra.mxu0 0.0
    %3630 = vmatprep.subr.mxu0 0.0
    %3631 = vmatpush2.msra.mxu0 0.0
    %3632 = vmatprep.subr.mxu0 0.0
    %3633 = vmatpush2.msra.mxu0 0.0
    %3634 = vmatprep.subr.mxu0 0.0
    %3635 = vmatpush2.msra.mxu0 0.0
    %3636 = vmatprep.subr.mxu0 0.0
    %3637 = vmatpush2.msra.mxu0 0.0
    %3638 = vmatprep.subr.mxu0 0.0
    %3639 = vmatpush2.msra.mxu0 0.0
    %3640 = vmatprep.mubr.f32.mxu0 0.0
    %3641 = vmatmul.mubr.f32.gmra.mxu0 %v3571
    %v3642 = vpop.f32.mrf.mxu0
    %v3643 = vadd.f32 0.0, %v3642
    %v3644 = vpop.f32.mrf.mxu0
    %3645 = vmatprep.mubr.f32.mxu0 0.0
    %3646 = vmatmul.mubr.f32.gmra.mxu0 %v3574
    %v3647 = vpop.f32.mrf.mxu0
    %v3648 = vadd.f32 0.0, %v3647
    %v3649 = vpop.f32.mrf.mxu0
    %3650 = vdwg.mxu0
    %v3652 = vsel %vm591, %v3523, 0
    %v3655 = vsel %vm591, %v3525, 0
    %3657 = vmatprep.subr.mxu0 0.0
    %3658 = vmatpush1.msra.mxu0 0.0
    %3659 = vmatprep.subr.mxu0 0.0
    %3660 = vmatpush1.msra.mxu0 0.0
    %3661 = vmatprep.subr.mxu0 0.0
    %3662 = vmatpush1.msra.mxu0 0.0
    %3663 = vmatprep.subr.mxu0 0.0
    %3664 = vmatpush1.msra.mxu0 0.0
    %3665 = vmatprep.subr.mxu0 0.0
    %3666 = vmatpush1.msra.mxu0 0.0
    %3667 = vmatprep.subr.mxu0 0.0
    %3668 = vmatpush1.msra.mxu0 0.0
    %3669 = vmatprep.subr.mxu0 0.0
    %3670 = vmatpush1.msra.mxu0 0.0
    %3671 = vmatprep.subr.mxu0 0.0
    %3672 = vmatpush1.msra.mxu0 0.0
    %3673 = vmatprep.subr.mxu0 0.0
    %3674 = vmatpush1.msra.mxu0 0.0
    %3675 = vmatprep.subr.mxu0 0.0
    %3676 = vmatpush1.msra.mxu0 0.0
    %3677 = vmatprep.subr.mxu0 0.0
    %3678 = vmatpush1.msra.mxu0 0.0
    %3679 = vmatprep.subr.mxu0 0.0
    %3680 = vmatpush1.msra.mxu0 0.0
    %3681 = vmatprep.subr.mxu0 0.0
    %3682 = vmatpush1.msra.mxu0 0.0
    %3683 = vmatprep.subr.mxu0 0.0
    %3684 = vmatpush1.msra.mxu0 0.0
    %3685 = vmatprep.subr.mxu0 0.0
    %3686 = vmatpush1.msra.mxu0 %v3648
    %3687 = vmatprep.subr.mxu0 0.0
    %3688 = vmatpush1.msra.mxu0 %v3643
    %3689 = vmatprep.subr.mxu0 0.0
    %3690 = vmatpush2.msra.mxu0 0.0
    %3691 = vmatprep.subr.mxu0 0.0
    %3692 = vmatpush2.msra.mxu0 0.0
    %3693 = vmatprep.subr.mxu0 0.0
    %3694 = vmatpush2.msra.mxu0 0.0
    %3695 = vmatprep.subr.mxu0 0.0
    %3696 = vmatpush2.msra.mxu0 0.0
    %3697 = vmatprep.subr.mxu0 0.0
    %3698 = vmatpush2.msra.mxu0 0.0
    %3699 = vmatprep.subr.mxu0 0.0
    %3700 = vmatpush2.msra.mxu0 0.0
    %3701 = vmatprep.subr.mxu0 0.0
    %3702 = vmatpush2.msra.mxu0 0.0
    %3703 = vmatprep.subr.mxu0 0.0
    %3704 = vmatpush2.msra.mxu0 0.0
    %3705 = vmatprep.subr.mxu0 0.0
    %3706 = vmatpush2.msra.mxu0 0.0
    %3707 = vmatprep.subr.mxu0 0.0
    %3708 = vmatpush2.msra.mxu0 0.0
    %3709 = vmatprep.subr.mxu0 0.0
    %3710 = vmatpush2.msra.mxu0 0.0
    %3711 = vmatprep.subr.mxu0 0.0
    %3712 = vmatpush2.msra.mxu0 0.0
    %3713 = vmatprep.subr.mxu0 0.0
    %3714 = vmatpush2.msra.mxu0 0.0
    %3715 = vmatprep.subr.mxu0 0.0
    %3716 = vmatpush2.msra.mxu0 0.0
    %3717 = vmatprep.subr.mxu0 0.0
    %3718 = vmatpush2.msra.mxu0 0.0
    %3719 = vmatprep.subr.mxu0 0.0
    %3720 = vmatpush2.msra.mxu0 0.0
    %3721 = vmatprep.mubr.f32.mxu0 0.0
    %3722 = vmatmul.mubr.f32.gmra.mxu0 %v3652
    %v3723 = vpop.f32.mrf.mxu0
    %v3724 = vadd.f32 0.0, %v3723
    %v3725 = vpop.f32.mrf.mxu0
    %3726 = vmatprep.mubr.f32.mxu0 0.0
    %3727 = vmatmul.mubr.f32.gmra.mxu0 %v3655
    %v3728 = vpop.f32.mrf.mxu0
    %v3729 = vadd.f32 0.0, %v3728
    %v3730 = vpop.f32.mrf.mxu0
    %3731 = vdwg.mxu0
    %3732 = vmatprep.subr.mxu0 0.0
    %3733 = vmatpush1.msra.mxu0 0.0
    %3734 = vmatprep.subr.mxu0 0.0
    %3735 = vmatpush1.msra.mxu0 0.0
    %3736 = vmatprep.subr.mxu0 0.0
    %3737 = vmatpush1.msra.mxu0 0.0
    %3738 = vmatprep.subr.mxu0 0.0
    %3739 = vmatpush1.msra.mxu0 0.0
    %3740 = vmatprep.subr.mxu0 0.0
    %3741 = vmatpush1.msra.mxu0 0.0
    %3742 = vmatprep.subr.mxu0 0.0
    %3743 = vmatpush1.msra.mxu0 0.0
    %3744 = vmatprep.subr.mxu0 0.0
    %3745 = vmatpush1.msra.mxu0 0.0
    %3746 = vmatprep.subr.mxu0 0.0
    %3747 = vmatpush1.msra.mxu0 0.0
    %3748 = vmatprep.subr.mxu0 0.0
    %3749 = vmatpush1.msra.mxu0 0.0
    %3750 = vmatprep.subr.mxu0 0.0
    %3751 = vmatpush1.msra.mxu0 0.0
    %3752 = vmatprep.subr.mxu0 0.0
    %3753 = vmatpush1.msra.mxu0 0.0
    %3754 = vmatprep.subr.mxu0 0.0
    %3755 = vmatpush1.msra.mxu0 0.0
    %3756 = vmatprep.subr.mxu0 0.0
    %3757 = vmatpush1.msra.mxu0 0.0
    %3758 = vmatprep.subr.mxu0 0.0
    %3759 = vmatpush1.msra.mxu0 0.0
    %3760 = vmatprep.subr.mxu0 0.0
    %3761 = vmatpush1.msra.mxu0 %v149
    %3762 = vmatprep.subr.mxu0 0.0
    %3763 = vmatpush1.msra.mxu0 %v148
    %3764 = vmatprep.subr.mxu0 0.0
    %3765 = vmatpush2.msra.mxu0 0.0
    %3766 = vmatprep.subr.mxu0 0.0
    %3767 = vmatpush2.msra.mxu0 0.0
    %3768 = vmatprep.subr.mxu0 0.0
    %3769 = vmatpush2.msra.mxu0 0.0
    %3770 = vmatprep.subr.mxu0 0.0
    %3771 = vmatpush2.msra.mxu0 0.0
    %3772 = vmatprep.subr.mxu0 0.0
    %3773 = vmatpush2.msra.mxu0 0.0
    %3774 = vmatprep.subr.mxu0 0.0
    %3775 = vmatpush2.msra.mxu0 0.0
    %3776 = vmatprep.subr.mxu0 0.0
    %3777 = vmatpush2.msra.mxu0 0.0
    %3778 = vmatprep.subr.mxu0 0.0
    %3779 = vmatpush2.msra.mxu0 0.0
    %3780 = vmatprep.subr.mxu0 0.0
    %3781 = vmatpush2.msra.mxu0 0.0
    %3782 = vmatprep.subr.mxu0 0.0
    %3783 = vmatpush2.msra.mxu0 0.0
    %3784 = vmatprep.subr.mxu0 0.0
    %3785 = vmatpush2.msra.mxu0 0.0
    %3786 = vmatprep.subr.mxu0 0.0
    %3787 = vmatpush2.msra.mxu0 0.0
    %3788 = vmatprep.subr.mxu0 0.0
    %3789 = vmatpush2.msra.mxu0 0.0
    %3790 = vmatprep.subr.mxu0 0.0
    %3791 = vmatpush2.msra.mxu0 0.0
    %3792 = vmatprep.subr.mxu0 0.0
    %3793 = vmatpush2.msra.mxu0 0.0
    %3794 = vmatprep.subr.mxu0 0.0
    %3795 = vmatpush2.msra.mxu0 0.0
    %3796 = vmatprep.mubr.f32.mxu0 0.0
    %3797 = vmatmul.mubr.f32.gmra.mxu0 %v3652
    %v3798 = vpop.f32.mrf.mxu0
    %v3799 = vadd.f32 0.0, %v3798
    %v3800 = vpop.f32.mrf.mxu0
    %3801 = vmatprep.mubr.f32.mxu0 0.0
    %3802 = vmatmul.mubr.f32.gmra.mxu0 %v3655
    %v3803 = vpop.f32.mrf.mxu0
    %v3804 = vadd.f32 0.0, %v3803
    %v3805 = vpop.f32.mrf.mxu0
    %3806 = vdwg.mxu0
    %v3807 = vld [vmem:[%s10] sm:$0x1]
    %v3809 = vlaneseq
    %v3810 = vshrl.u32 %v3809, 7
    %v3811 = vsub.s32 0, %v3810
    %v3812 = vrot.slane %v3807, %v3811
    %v3814 = vmul.f32 %v3812, %v3799
    %v3815 = vmul.f32 %v3812, %v3804
    %v3816 = vld [vmem:[%s11] sm:$0x1]
    %v3818 = vlaneseq
    %v3819 = vshrl.u32 %v3818, 7
    %v3820 = vsub.s32 0, %v3819
    %v3821 = vrot.slane %v3816, %v3820
    %v3823 = vmul.f32 %v3821, %v3724
    %v3824 = vmul.f32 %v3821, %v3729
    %v3825 = vadd.f32 %v3814, %v3823
    %v3826 = vadd.f32 %v3815, %v3824
    %v3827 = vmul.f32 %v3825, %v151
    %v3828 = vmul.f32 %v3826, %v152
    %v3829 = vadd.f32 %v3827, %v3828
    %v3830 = vrot.slane %v3829, 4
    %v3831 = vadd.f32 %v3829, %v3830
    %v3832 = vrot.slane %v3831, 2
    %v3833 = vadd.f32 %v3831, %v3832
    %v3834 = vrot.slane %v3833, 1
    %v3835 = vadd.f32 %v3833, %v3834
    %v3836 = vld [vmem:[%s12] sm:$0x1]
    %v3837 = vadd.f32 %v3835, %v3836
    %3838 = vst [vmem:[%s13 + $0x4] sm:$0x1] %v3837
    %3839 = vxpose.xlu0.b32.start [1/16] %v2633, 128
    %3840 = vxpose.xlu0.b32.cont [2/16] 0.0, 128
    %3841 = vxpose.xlu0.b32.cont [3/16] 0.0, 128
    %3842 = vxpose.xlu0.b32.cont [4/16] 0.0, 128
    %3843 = vxpose.xlu0.b32.cont [5/16] 0.0, 128
    %3844 = vxpose.xlu0.b32.cont [6/16] 0.0, 128
    %3845 = vxpose.xlu0.b32.cont [7/16] 0.0, 128
    %3846 = vxpose.xlu0.b32.cont [8/16] 0.0, 128
    %3847 = vxpose.xlu0.b32.cont [9/16] 0.0, 128
    %3848 = vxpose.xlu0.b32.cont [10/16] 0.0, 128
    %3849 = vxpose.xlu0.b32.cont [11/16] 0.0, 128
    %3850 = vxpose.xlu0.b32.cont [12/16] 0.0, 128
    %3851 = vxpose.xlu0.b32.cont [13/16] 0.0, 128
    %3852 = vxpose.xlu0.b32.cont [14/16] 0.0, 128
    %3853 = vxpose.xlu0.b32.cont [15/16] 0.0, 128
    %3854 = vxpose.xlu0.b32.end [16/16] 0.0, 128
    %v3855 = vpop.trf.xlu0
    %v3856 = vpop.trf.xlu0
    %v3857 = vpop.trf.xlu0
    %v3858 = vpop.trf.xlu0
    %v3859 = vpop.trf.xlu0
    %v3860 = vpop.trf.xlu0
    %v3861 = vpop.trf.xlu0
    %v3862 = vpop.trf.xlu0
    %v3863 = vpop.trf.xlu0
    %v3864 = vpop.trf.xlu0
    %v3865 = vpop.trf.xlu0
    %v3866 = vpop.trf.xlu0
    %v3867 = vpop.trf.xlu0
    %v3868 = vpop.trf.xlu0
    %v3869 = vpop.trf.xlu0
    %v3870 = vpop.trf.xlu0
    %v3872 = vsel %vm1328, %v3855, 0
    %v3875 = vsel %vm1328, %v3856, 0
    %3877 = vmatprep.subr.mxu0 0.0
    %3878 = vmatpush1.msra.mxu0 0.0
    %3879 = vmatprep.subr.mxu0 0.0
    %3880 = vmatpush1.msra.mxu0 0.0
    %3881 = vmatprep.subr.mxu0 0.0
    %3882 = vmatpush1.msra.mxu0 0.0
    %3883 = vmatprep.subr.mxu0 0.0
    %3884 = vmatpush1.msra.mxu0 0.0
    %3885 = vmatprep.subr.mxu0 0.0
    %3886 = vmatpush1.msra.mxu0 0.0
    %3887 = vmatprep.subr.mxu0 0.0
    %3888 = vmatpush1.msra.mxu0 0.0
    %3889 = vmatprep.subr.mxu0 0.0
    %3890 = vmatpush1.msra.mxu0 0.0
    %3891 = vmatprep.subr.mxu0 0.0
    %3892 = vmatpush1.msra.mxu0 0.0
    %3893 = vmatprep.subr.mxu0 0.0
    %3894 = vmatpush1.msra.mxu0 0.0
    %3895 = vmatprep.subr.mxu0 0.0
    %3896 = vmatpush1.msra.mxu0 0.0
    %3897 = vmatprep.subr.mxu0 0.0
    %3898 = vmatpush1.msra.mxu0 0.0
    %3899 = vmatprep.subr.mxu0 0.0
    %3900 = vmatpush1.msra.mxu0 0.0
    %3901 = vmatprep.subr.mxu0 0.0
    %3902 = vmatpush1.msra.mxu0 0.0
    %3903 = vmatprep.subr.mxu0 0.0
    %3904 = vmatpush1.msra.mxu0 0.0
    %3905 = vmatprep.subr.mxu0 0.0
    %3906 = vmatpush1.msra.mxu0 0.0
    %3907 = vmatprep.subr.mxu0 0.0
    %3908 = vmatpush1.msra.mxu0 %v150
    %3909 = vmatprep.subr.mxu0 0.0
    %3910 = vmatpush2.msra.mxu0 0.0
    %3911 = vmatprep.subr.mxu0 0.0
    %3912 = vmatpush2.msra.mxu0 0.0
    %3913 = vmatprep.subr.mxu0 0.0
    %3914 = vmatpush2.msra.mxu0 0.0
    %3915 = vmatprep.subr.mxu0 0.0
    %3916 = vmatpush2.msra.mxu0 0.0
    %3917 = vmatprep.subr.mxu0 0.0
    %3918 = vmatpush2.msra.mxu0 0.0
    %3919 = vmatprep.subr.mxu0 0.0
    %3920 = vmatpush2.msra.mxu0 0.0
    %3921 = vmatprep.subr.mxu0 0.0
    %3922 = vmatpush2.msra.mxu0 0.0
    %3923 = vmatprep.subr.mxu0 0.0
    %3924 = vmatpush2.msra.mxu0 0.0
    %3925 = vmatprep.subr.mxu0 0.0
    %3926 = vmatpush2.msra.mxu0 0.0
    %3927 = vmatprep.subr.mxu0 0.0
    %3928 = vmatpush2.msra.mxu0 0.0
    %3929 = vmatprep.subr.mxu0 0.0
    %3930 = vmatpush2.msra.mxu0 0.0
    %3931 = vmatprep.subr.mxu0 0.0
    %3932 = vmatpush2.msra.mxu0 0.0
    %3933 = vmatprep.subr.mxu0 0.0
    %3934 = vmatpush2.msra.mxu0 0.0
    %3935 = vmatprep.subr.mxu0 0.0
    %3936 = vmatpush2.msra.mxu0 0.0
    %3937 = vmatprep.subr.mxu0 0.0
    %3938 = vmatpush2.msra.mxu0 0.0
    %3939 = vmatprep.subr.mxu0 0.0
    %3940 = vmatpush2.msra.mxu0 0.0
    %3941 = vmatprep.mubr.f32.mxu0 0.0
    %3942 = vmatmul.mubr.f32.gmra.mxu0 %v3872
    %v3943 = vpop.f32.mrf.mxu0
    %v3944 = vadd.f32 0.0, %v3943
    %v3945 = vpop.f32.mrf.mxu0
    %3946 = vmatprep.mubr.f32.mxu0 0.0
    %3947 = vmatmul.mubr.f32.gmra.mxu0 %v3875
    %v3948 = vpop.f32.mrf.mxu0
    %v3949 = vadd.f32 0.0, %v3948
    %v3950 = vpop.f32.mrf.mxu0
    %3951 = vdwg.mxu0
    %v3953 = vsel %vm591, %v3527, 0
    %v3956 = vsel %vm591, %v3529, 0
    %3958 = vmatprep.subr.mxu0 0.0
    %3959 = vmatpush1.msra.mxu0 0.0
    %3960 = vmatprep.subr.mxu0 0.0
    %3961 = vmatpush1.msra.mxu0 0.0
    %3962 = vmatprep.subr.mxu0 0.0
    %3963 = vmatpush1.msra.mxu0 0.0
    %3964 = vmatprep.subr.mxu0 0.0
    %3965 = vmatpush1.msra.mxu0 0.0
    %3966 = vmatprep.subr.mxu0 0.0
    %3967 = vmatpush1.msra.mxu0 0.0
    %3968 = vmatprep.subr.mxu0 0.0
    %3969 = vmatpush1.msra.mxu0 0.0
    %3970 = vmatprep.subr.mxu0 0.0
    %3971 = vmatpush1.msra.mxu0 0.0
    %3972 = vmatprep.subr.mxu0 0.0
    %3973 = vmatpush1.msra.mxu0 0.0
    %3974 = vmatprep.subr.mxu0 0.0
    %3975 = vmatpush1.msra.mxu0 0.0
    %3976 = vmatprep.subr.mxu0 0.0
    %3977 = vmatpush1.msra.mxu0 0.0
    %3978 = vmatprep.subr.mxu0 0.0
    %3979 = vmatpush1.msra.mxu0 0.0
    %3980 = vmatprep.subr.mxu0 0.0
    %3981 = vmatpush1.msra.mxu0 0.0
    %3982 = vmatprep.subr.mxu0 0.0
    %3983 = vmatpush1.msra.mxu0 0.0
    %3984 = vmatprep.subr.mxu0 0.0
    %3985 = vmatpush1.msra.mxu0 0.0
    %3986 = vmatprep.subr.mxu0 0.0
    %3987 = vmatpush1.msra.mxu0 %v3949
    %3988 = vmatprep.subr.mxu0 0.0
    %3989 = vmatpush1.msra.mxu0 %v3944
    %3990 = vmatprep.subr.mxu0 0.0
    %3991 = vmatpush2.msra.mxu0 0.0
    %3992 = vmatprep.subr.mxu0 0.0
    %3993 = vmatpush2.msra.mxu0 0.0
    %3994 = vmatprep.subr.mxu0 0.0
    %3995 = vmatpush2.msra.mxu0 0.0
    %3996 = vmatprep.subr.mxu0 0.0
    %3997 = vmatpush2.msra.mxu0 0.0
    %3998 = vmatprep.subr.mxu0 0.0
    %3999 = vmatpush2.msra.mxu0 0.0
    %4000 = vmatprep.subr.mxu0 0.0
    %4001 = vmatpush2.msra.mxu0 0.0
    %4002 = vmatprep.subr.mxu0 0.0
    %4003 = vmatpush2.msra.mxu0 0.0
    %4004 = vmatprep.subr.mxu0 0.0
    %4005 = vmatpush2.msra.mxu0 0.0
    %4006 = vmatprep.subr.mxu0 0.0
    %4007 = vmatpush2.msra.mxu0 0.0
    %4008 = vmatprep.subr.mxu0 0.0
    %4009 = vmatpush2.msra.mxu0 0.0
    %4010 = vmatprep.subr.mxu0 0.0
    %4011 = vmatpush2.msra.mxu0 0.0
    %4012 = vmatprep.subr.mxu0 0.0
    %4013 = vmatpush2.msra.mxu0 0.0
    %4014 = vmatprep.subr.mxu0 0.0
    %4015 = vmatpush2.msra.mxu0 0.0
    %4016 = vmatprep.subr.mxu0 0.0
    %4017 = vmatpush2.msra.mxu0 0.0
    %4018 = vmatprep.subr.mxu0 0.0
    %4019 = vmatpush2.msra.mxu0 0.0
    %4020 = vmatprep.subr.mxu0 0.0
    %4021 = vmatpush2.msra.mxu0 0.0
    %4022 = vmatprep.mubr.f32.mxu0 0.0
    %4023 = vmatmul.mubr.f32.gmra.mxu0 %v3953
    %v4024 = vpop.f32.mrf.mxu0
    %v4025 = vadd.f32 0.0, %v4024
    %v4026 = vpop.f32.mrf.mxu0
    %4027 = vmatprep.mubr.f32.mxu0 0.0
    %4028 = vmatmul.mubr.f32.gmra.mxu0 %v3956
    %v4029 = vpop.f32.mrf.mxu0
    %v4030 = vadd.f32 0.0, %v4029
    %v4031 = vpop.f32.mrf.mxu0
    %4032 = vdwg.mxu0
    %4033 = vmatprep.subr.mxu0 0.0
    %4034 = vmatpush1.msra.mxu0 0.0
    %4035 = vmatprep.subr.mxu0 0.0
    %4036 = vmatpush1.msra.mxu0 0.0
    %4037 = vmatprep.subr.mxu0 0.0
    %4038 = vmatpush1.msra.mxu0 0.0
    %4039 = vmatprep.subr.mxu0 0.0
    %4040 = vmatpush1.msra.mxu0 0.0
    %4041 = vmatprep.subr.mxu0 0.0
    %4042 = vmatpush1.msra.mxu0 0.0
    %4043 = vmatprep.subr.mxu0 0.0
    %4044 = vmatpush1.msra.mxu0 0.0
    %4045 = vmatprep.subr.mxu0 0.0
    %4046 = vmatpush1.msra.mxu0 0.0
    %4047 = vmatprep.subr.mxu0 0.0
    %4048 = vmatpush1.msra.mxu0 0.0
    %4049 = vmatprep.subr.mxu0 0.0
    %4050 = vmatpush1.msra.mxu0 0.0
    %4051 = vmatprep.subr.mxu0 0.0
    %4052 = vmatpush1.msra.mxu0 0.0
    %4053 = vmatprep.subr.mxu0 0.0
    %4054 = vmatpush1.msra.mxu0 0.0
    %4055 = vmatprep.subr.mxu0 0.0
    %4056 = vmatpush1.msra.mxu0 0.0
    %4057 = vmatprep.subr.mxu0 0.0
    %4058 = vmatpush1.msra.mxu0 0.0
    %4059 = vmatprep.subr.mxu0 0.0
    %4060 = vmatpush1.msra.mxu0 0.0
    %4061 = vmatprep.subr.mxu0 0.0
    %4062 = vmatpush1.msra.mxu0 %v149
    %4063 = vmatprep.subr.mxu0 0.0
    %4064 = vmatpush1.msra.mxu0 %v148
    %4065 = vmatprep.subr.mxu0 0.0
    %4066 = vmatpush2.msra.mxu0 0.0
    %4067 = vmatprep.subr.mxu0 0.0
    %4068 = vmatpush2.msra.mxu0 0.0
    %4069 = vmatprep.subr.mxu0 0.0
    %4070 = vmatpush2.msra.mxu0 0.0
    %4071 = vmatprep.subr.mxu0 0.0
    %4072 = vmatpush2.msra.mxu0 0.0
    %4073 = vmatprep.subr.mxu0 0.0
    %4074 = vmatpush2.msra.mxu0 0.0
    %4075 = vmatprep.subr.mxu0 0.0
    %4076 = vmatpush2.msra.mxu0 0.0
    %4077 = vmatprep.subr.mxu0 0.0
    %4078 = vmatpush2.msra.mxu0 0.0
    %4079 = vmatprep.subr.mxu0 0.0
    %4080 = vmatpush2.msra.mxu0 0.0
    %4081 = vmatprep.subr.mxu0 0.0
    %4082 = vmatpush2.msra.mxu0 0.0
    %4083 = vmatprep.subr.mxu0 0.0
    %4084 = vmatpush2.msra.mxu0 0.0
    %4085 = vmatprep.subr.mxu0 0.0
    %4086 = vmatpush2.msra.mxu0 0.0
    %4087 = vmatprep.subr.mxu0 0.0
    %4088 = vmatpush2.msra.mxu0 0.0
    %4089 = vmatprep.subr.mxu0 0.0
    %4090 = vmatpush2.msra.mxu0 0.0
    %4091 = vmatprep.subr.mxu0 0.0
    %4092 = vmatpush2.msra.mxu0 0.0
    %4093 = vmatprep.subr.mxu0 0.0
    %4094 = vmatpush2.msra.mxu0 0.0
    %4095 = vmatprep.subr.mxu0 0.0
    %4096 = vmatpush2.msra.mxu0 0.0
    %4097 = vmatprep.mubr.f32.mxu0 0.0
    %4098 = vmatmul.mubr.f32.gmra.mxu0 %v3953
    %v4099 = vpop.f32.mrf.mxu0
    %v4100 = vadd.f32 0.0, %v4099
    %v4101 = vpop.f32.mrf.mxu0
    %4102 = vmatprep.mubr.f32.mxu0 0.0
    %4103 = vmatmul.mubr.f32.gmra.mxu0 %v3956
    %v4104 = vpop.f32.mrf.mxu0
    %v4105 = vadd.f32 0.0, %v4104
    %v4106 = vpop.f32.mrf.mxu0
    %4107 = vdwg.mxu0
    %v4108 = vld [vmem:[%s1867] sm:$0x1]
    %v4110 = vlaneseq
    %v4111 = vshrl.u32 %v4110, 7
    %v4112 = vsub.s32 0, %v4111
    %v4113 = vrot.slane %v4108, %v4112
    %v4115 = vmul.f32 %v4113, %v4100
    %v4116 = vmul.f32 %v4113, %v4105
    %v4117 = vld [vmem:[%s1877] sm:$0x1]
    %v4119 = vlaneseq
    %v4120 = vshrl.u32 %v4119, 7
    %v4121 = vsub.s32 0, %v4120
    %v4122 = vrot.slane %v4117, %v4121
    %v4124 = vmul.f32 %v4122, %v4025
    %v4125 = vmul.f32 %v4122, %v4030
    %v4126 = vadd.f32 %v4115, %v4124
    %v4127 = vadd.f32 %v4116, %v4125
    %v4128 = vmul.f32 %v4126, %v151
    %v4129 = vmul.f32 %v4127, %v152
    %v4130 = vadd.f32 %v4128, %v4129
    %v4131 = vrot.slane %v4130, 4
    %v4132 = vadd.f32 %v4130, %v4131
    %v4133 = vrot.slane %v4132, 2
    %v4134 = vadd.f32 %v4132, %v4133
    %v4135 = vrot.slane %v4134, 1
    %v4136 = vadd.f32 %v4134, %v4135
    %v4137 = vld [vmem:[%s1898] sm:$0x1]
    %v4138 = vadd.f32 %v4136, %v4137
    %4139 = vst [vmem:[%s13 + $0x5] sm:$0x1] %v4138
    %4140 = vxpose.xlu0.b32.start [1/16] %v2634, 128
    %4141 = vxpose.xlu0.b32.cont [2/16] 0.0, 128
    %4142 = vxpose.xlu0.b32.cont [3/16] 0.0, 128
    %4143 = vxpose.xlu0.b32.cont [4/16] 0.0, 128
    %4144 = vxpose.xlu0.b32.cont [5/16] 0.0, 128
    %4145 = vxpose.xlu0.b32.cont [6/16] 0.0, 128
    %4146 = vxpose.xlu0.b32.cont [7/16] 0.0, 128
    %4147 = vxpose.xlu0.b32.cont [8/16] 0.0, 128
    %4148 = vxpose.xlu0.b32.cont [9/16] 0.0, 128
    %4149 = vxpose.xlu0.b32.cont [10/16] 0.0, 128
    %4150 = vxpose.xlu0.b32.cont [11/16] 0.0, 128
    %4151 = vxpose.xlu0.b32.cont [12/16] 0.0, 128
    %4152 = vxpose.xlu0.b32.cont [13/16] 0.0, 128
    %4153 = vxpose.xlu0.b32.cont [14/16] 0.0, 128
    %4154 = vxpose.xlu0.b32.cont [15/16] 0.0, 128
    %4155 = vxpose.xlu0.b32.end [16/16] 0.0, 128
    %v4156 = vpop.trf.xlu0
    %v4157 = vpop.trf.xlu0
    %v4158 = vpop.trf.xlu0
    %v4159 = vpop.trf.xlu0
    %v4160 = vpop.trf.xlu0
    %v4161 = vpop.trf.xlu0
    %v4162 = vpop.trf.xlu0
    %v4163 = vpop.trf.xlu0
    %v4164 = vpop.trf.xlu0
    %v4165 = vpop.trf.xlu0
    %v4166 = vpop.trf.xlu0
    %v4167 = vpop.trf.xlu0
    %v4168 = vpop.trf.xlu0
    %v4169 = vpop.trf.xlu0
    %v4170 = vpop.trf.xlu0
    %v4171 = vpop.trf.xlu0
    %v4173 = vsel %vm1328, %v4156, 0
    %v4176 = vsel %vm1328, %v4157, 0
    %4178 = vmatprep.subr.mxu0 0.0
    %4179 = vmatpush1.msra.mxu0 0.0
    %4180 = vmatprep.subr.mxu0 0.0
    %4181 = vmatpush1.msra.mxu0 0.0
    %4182 = vmatprep.subr.mxu0 0.0
    %4183 = vmatpush1.msra.mxu0 0.0
    %4184 = vmatprep.subr.mxu0 0.0
    %4185 = vmatpush1.msra.mxu0 0.0
    %4186 = vmatprep.subr.mxu0 0.0
    %4187 = vmatpush1.msra.mxu0 0.0
    %4188 = vmatprep.subr.mxu0 0.0
    %4189 = vmatpush1.msra.mxu0 0.0
    %4190 = vmatprep.subr.mxu0 0.0
    %4191 = vmatpush1.msra.mxu0 0.0
    %4192 = vmatprep.subr.mxu0 0.0
    %4193 = vmatpush1.msra.mxu0 0.0
    %4194 = vmatprep.subr.mxu0 0.0
    %4195 = vmatpush1.msra.mxu0 0.0
    %4196 = vmatprep.subr.mxu0 0.0
    %4197 = vmatpush1.msra.mxu0 0.0
    %4198 = vmatprep.subr.mxu0 0.0
    %4199 = vmatpush1.msra.mxu0 0.0
    %4200 = vmatprep.subr.mxu0 0.0
    %4201 = vmatpush1.msra.mxu0 0.0
    %4202 = vmatprep.subr.mxu0 0.0
    %4203 = vmatpush1.msra.mxu0 0.0
    %4204 = vmatprep.subr.mxu0 0.0
    %4205 = vmatpush1.msra.mxu0 0.0
    %4206 = vmatprep.subr.mxu0 0.0
    %4207 = vmatpush1.msra.mxu0 0.0
    %4208 = vmatprep.subr.mxu0 0.0
    %4209 = vmatpush1.msra.mxu0 %v150
    %4210 = vmatprep.subr.mxu0 0.0
    %4211 = vmatpush2.msra.mxu0 0.0
    %4212 = vmatprep.subr.mxu0 0.0
    %4213 = vmatpush2.msra.mxu0 0.0
    %4214 = vmatprep.subr.mxu0 0.0
    %4215 = vmatpush2.msra.mxu0 0.0
    %4216 = vmatprep.subr.mxu0 0.0
    %4217 = vmatpush2.msra.mxu0 0.0
    %4218 = vmatprep.subr.mxu0 0.0
    %4219 = vmatpush2.msra.mxu0 0.0
    %4220 = vmatprep.subr.mxu0 0.0
    %4221 = vmatpush2.msra.mxu0 0.0
    %4222 = vmatprep.subr.mxu0 0.0
    %4223 = vmatpush2.msra.mxu0 0.0
    %4224 = vmatprep.subr.mxu0 0.0
    %4225 = vmatpush2.msra.mxu0 0.0
    %4226 = vmatprep.subr.mxu0 0.0
    %4227 = vmatpush2.msra.mxu0 0.0
    %4228 = vmatprep.subr.mxu0 0.0
    %4229 = vmatpush2.msra.mxu0 0.0
    %4230 = vmatprep.subr.mxu0 0.0
    %4231 = vmatpush2.msra.mxu0 0.0
    %4232 = vmatprep.subr.mxu0 0.0
    %4233 = vmatpush2.msra.mxu0 0.0
    %4234 = vmatprep.subr.mxu0 0.0
    %4235 = vmatpush2.msra.mxu0 0.0
    %4236 = vmatprep.subr.mxu0 0.0
    %4237 = vmatpush2.msra.mxu0 0.0
    %4238 = vmatprep.subr.mxu0 0.0
    %4239 = vmatpush2.msra.mxu0 0.0
    %4240 = vmatprep.subr.mxu0 0.0
    %4241 = vmatpush2.msra.mxu0 0.0
    %4242 = vmatprep.mubr.f32.mxu0 0.0
    %4243 = vmatmul.mubr.f32.gmra.mxu0 %v4173
    %v4244 = vpop.f32.mrf.mxu0
    %v4245 = vadd.f32 0.0, %v4244
    %v4246 = vpop.f32.mrf.mxu0
    %4247 = vmatprep.mubr.f32.mxu0 0.0
    %4248 = vmatmul.mubr.f32.gmra.mxu0 %v4176
    %v4249 = vpop.f32.mrf.mxu0
    %v4250 = vadd.f32 0.0, %v4249
    %v4251 = vpop.f32.mrf.mxu0
    %4252 = vdwg.mxu0
    %v4254 = vsel %vm591, %v3531, 0
    %v4257 = vsel %vm591, %v3533, 0
    %4259 = vmatprep.subr.mxu0 0.0
    %4260 = vmatpush1.msra.mxu0 0.0
    %4261 = vmatprep.subr.mxu0 0.0
    %4262 = vmatpush1.msra.mxu0 0.0
    %4263 = vmatprep.subr.mxu0 0.0
    %4264 = vmatpush1.msra.mxu0 0.0
    %4265 = vmatprep.subr.mxu0 0.0
    %4266 = vmatpush1.msra.mxu0 0.0
    %4267 = vmatprep.subr.mxu0 0.0
    %4268 = vmatpush1.msra.mxu0 0.0
    %4269 = vmatprep.subr.mxu0 0.0
    %4270 = vmatpush1.msra.mxu0 0.0
    %4271 = vmatprep.subr.mxu0 0.0
    %4272 = vmatpush1.msra.mxu0 0.0
    %4273 = vmatprep.subr.mxu0 0.0
    %4274 = vmatpush1.msra.mxu0 0.0
    %4275 = vmatprep.subr.mxu0 0.0
    %4276 = vmatpush1.msra.mxu0 0.0
    %4277 = vmatprep.subr.mxu0 0.0
    %4278 = vmatpush1.msra.mxu0 0.0
    %4279 = vmatprep.subr.mxu0 0.0
    %4280 = vmatpush1.msra.mxu0 0.0
    %4281 = vmatprep.subr.mxu0 0.0
    %4282 = vmatpush1.msra.mxu0 0.0
    %4283 = vmatprep.subr.mxu0 0.0
    %4284 = vmatpush1.msra.mxu0 0.0
    %4285 = vmatprep.subr.mxu0 0.0
    %4286 = vmatpush1.msra.mxu0 0.0
    %4287 = vmatprep.subr.mxu0 0.0
    %4288 = vmatpush1.msra.mxu0 %v4250
    %4289 = vmatprep.subr.mxu0 0.0
    %4290 = vmatpush1.msra.mxu0 %v4245
    %4291 = vmatprep.subr.mxu0 0.0
    %4292 = vmatpush2.msra.mxu0 0.0
    %4293 = vmatprep.subr.mxu0 0.0
    %4294 = vmatpush2.msra.mxu0 0.0
    %4295 = vmatprep.subr.mxu0 0.0
    %4296 = vmatpush2.msra.mxu0 0.0
    %4297 = vmatprep.subr.mxu0 0.0
    %4298 = vmatpush2.msra.mxu0 0.0
    %4299 = vmatprep.subr.mxu0 0.0
    %4300 = vmatpush2.msra.mxu0 0.0
    %4301 = vmatprep.subr.mxu0 0.0
    %4302 = vmatpush2.msra.mxu0 0.0
    %4303 = vmatprep.subr.mxu0 0.0
    %4304 = vmatpush2.msra.mxu0 0.0
    %4305 = vmatprep.subr.mxu0 0.0
    %4306 = vmatpush2.msra.mxu0 0.0
    %4307 = vmatprep.subr.mxu0 0.0
    %4308 = vmatpush2.msra.mxu0 0.0
    %4309 = vmatprep.subr.mxu0 0.0
    %4310 = vmatpush2.msra.mxu0 0.0
    %4311 = vmatprep.subr.mxu0 0.0
    %4312 = vmatpush2.msra.mxu0 0.0
    %4313 = vmatprep.subr.mxu0 0.0
    %4314 = vmatpush2.msra.mxu0 0.0
    %4315 = vmatprep.subr.mxu0 0.0
    %4316 = vmatpush2.msra.mxu0 0.0
    %4317 = vmatprep.subr.mxu0 0.0
    %4318 = vmatpush2.msra.mxu0 0.0
    %4319 = vmatprep.subr.mxu0 0.0
    %4320 = vmatpush2.msra.mxu0 0.0
    %4321 = vmatprep.subr.mxu0 0.0
    %4322 = vmatpush2.msra.mxu0 0.0
    %4323 = vmatprep.mubr.f32.mxu0 0.0
    %4324 = vmatmul.mubr.f32.gmra.mxu0 %v4254
    %v4325 = vpop.f32.mrf.mxu0
    %v4326 = vadd.f32 0.0, %v4325
    %v4327 = vpop.f32.mrf.mxu0
    %4328 = vmatprep.mubr.f32.mxu0 0.0
    %4329 = vmatmul.mubr.f32.gmra.mxu0 %v4257
    %v4330 = vpop.f32.mrf.mxu0
    %v4331 = vadd.f32 0.0, %v4330
    %v4332 = vpop.f32.mrf.mxu0
    %4333 = vdwg.mxu0
    %4334 = vmatprep.subr.mxu0 0.0
    %4335 = vmatpush1.msra.mxu0 0.0
    %4336 = vmatprep.subr.mxu0 0.0
    %4337 = vmatpush1.msra.mxu0 0.0
    %4338 = vmatprep.subr.mxu0 0.0
    %4339 = vmatpush1.msra.mxu0 0.0
    %4340 = vmatprep.subr.mxu0 0.0
    %4341 = vmatpush1.msra.mxu0 0.0
    %4342 = vmatprep.subr.mxu0 0.0
    %4343 = vmatpush1.msra.mxu0 0.0
    %4344 = vmatprep.subr.mxu0 0.0
    %4345 = vmatpush1.msra.mxu0 0.0
    %4346 = vmatprep.subr.mxu0 0.0
    %4347 = vmatpush1.msra.mxu0 0.0
    %4348 = vmatprep.subr.mxu0 0.0
    %4349 = vmatpush1.msra.mxu0 0.0
    %4350 = vmatprep.subr.mxu0 0.0
    %4351 = vmatpush1.msra.mxu0 0.0
    %4352 = vmatprep.subr.mxu0 0.0
    %4353 = vmatpush1.msra.mxu0 0.0
    %4354 = vmatprep.subr.mxu0 0.0
    %4355 = vmatpush1.msra.mxu0 0.0
    %4356 = vmatprep.subr.mxu0 0.0
    %4357 = vmatpush1.msra.mxu0 0.0
    %4358 = vmatprep.subr.mxu0 0.0
    %4359 = vmatpush1.msra.mxu0 0.0
    %4360 = vmatprep.subr.mxu0 0.0
    %4361 = vmatpush1.msra.mxu0 0.0
    %4362 = vmatprep.subr.mxu0 0.0
    %4363 = vmatpush1.msra.mxu0 %v149
    %4364 = vmatprep.subr.mxu0 0.0
    %4365 = vmatpush1.msra.mxu0 %v148
    %4366 = vmatprep.subr.mxu0 0.0
    %4367 = vmatpush2.msra.mxu0 0.0
    %4368 = vmatprep.subr.mxu0 0.0
    %4369 = vmatpush2.msra.mxu0 0.0
    %4370 = vmatprep.subr.mxu0 0.0
    %4371 = vmatpush2.msra.mxu0 0.0
    %4372 = vmatprep.subr.mxu0 0.0
    %4373 = vmatpush2.msra.mxu0 0.0
    %4374 = vmatprep.subr.mxu0 0.0
    %4375 = vmatpush2.msra.mxu0 0.0
    %4376 = vmatprep.subr.mxu0 0.0
    %4377 = vmatpush2.msra.mxu0 0.0
    %4378 = vmatprep.subr.mxu0 0.0
    %4379 = vmatpush2.msra.mxu0 0.0
    %4380 = vmatprep.subr.mxu0 0.0
    %4381 = vmatpush2.msra.mxu0 0.0
    %4382 = vmatprep.subr.mxu0 0.0
    %4383 = vmatpush2.msra.mxu0 0.0
    %4384 = vmatprep.subr.mxu0 0.0
    %4385 = vmatpush2.msra.mxu0 0.0
    %4386 = vmatprep.subr.mxu0 0.0
    %4387 = vmatpush2.msra.mxu0 0.0
    %4388 = vmatprep.subr.mxu0 0.0
    %4389 = vmatpush2.msra.mxu0 0.0
    %4390 = vmatprep.subr.mxu0 0.0
    %4391 = vmatpush2.msra.mxu0 0.0
    %4392 = vmatprep.subr.mxu0 0.0
    %4393 = vmatpush2.msra.mxu0 0.0
    %4394 = vmatprep.subr.mxu0 0.0
    %4395 = vmatpush2.msra.mxu0 0.0
    %4396 = vmatprep.subr.mxu0 0.0
    %4397 = vmatpush2.msra.mxu0 0.0
    %4398 = vmatprep.mubr.f32.mxu0 0.0
    %4399 = vmatmul.mubr.f32.gmra.mxu0 %v4254
    %v4400 = vpop.f32.mrf.mxu0
    %v4401 = vadd.f32 0.0, %v4400
    %v4402 = vpop.f32.mrf.mxu0
    %4403 = vmatprep.mubr.f32.mxu0 0.0
    %4404 = vmatmul.mubr.f32.gmra.mxu0 %v4257
    %v4405 = vpop.f32.mrf.mxu0
    %v4406 = vadd.f32 0.0, %v4405
    %v4407 = vpop.f32.mrf.mxu0
    %4408 = vdwg.mxu0
    %v4409 = vld [vmem:[%s2171] sm:$0x1]
    %v4411 = vlaneseq
    %v4412 = vshrl.u32 %v4411, 7
    %v4413 = vsub.s32 0, %v4412
    %v4414 = vrot.slane %v4409, %v4413
    %v4416 = vmul.f32 %v4414, %v4401
    %v4417 = vmul.f32 %v4414, %v4406
    %v4418 = vld [vmem:[%s2181] sm:$0x1]
    %v4420 = vlaneseq
    %v4421 = vshrl.u32 %v4420, 7
    %v4422 = vsub.s32 0, %v4421
    %v4423 = vrot.slane %v4418, %v4422
    %v4425 = vmul.f32 %v4423, %v4326
    %v4426 = vmul.f32 %v4423, %v4331
    %v4427 = vadd.f32 %v4416, %v4425
    %v4428 = vadd.f32 %v4417, %v4426
    %v4429 = vmul.f32 %v4427, %v151
    %v4430 = vmul.f32 %v4428, %v152
    %v4431 = vadd.f32 %v4429, %v4430
    %v4432 = vrot.slane %v4431, 4
    %v4433 = vadd.f32 %v4431, %v4432
    %v4434 = vrot.slane %v4433, 2
    %v4435 = vadd.f32 %v4433, %v4434
    %v4436 = vrot.slane %v4435, 1
    %v4437 = vadd.f32 %v4435, %v4436
    %v4438 = vld [vmem:[%s2202] sm:$0x1]
    %v4439 = vadd.f32 %v4437, %v4438
    %4440 = vst [vmem:[%s13 + $0x6] sm:$0x1] %v4439
    %4441 = vxpose.xlu0.b32.start [1/16] %v2635, 128
    %4442 = vxpose.xlu0.b32.cont [2/16] 0.0, 128
    %4443 = vxpose.xlu0.b32.cont [3/16] 0.0, 128
    %4444 = vxpose.xlu0.b32.cont [4/16] 0.0, 128
    %4445 = vxpose.xlu0.b32.cont [5/16] 0.0, 128
    %4446 = vxpose.xlu0.b32.cont [6/16] 0.0, 128
    %4447 = vxpose.xlu0.b32.cont [7/16] 0.0, 128
    %4448 = vxpose.xlu0.b32.cont [8/16] 0.0, 128
    %4449 = vxpose.xlu0.b32.cont [9/16] 0.0, 128
    %4450 = vxpose.xlu0.b32.cont [10/16] 0.0, 128
    %4451 = vxpose.xlu0.b32.cont [11/16] 0.0, 128
    %4452 = vxpose.xlu0.b32.cont [12/16] 0.0, 128
    %4453 = vxpose.xlu0.b32.cont [13/16] 0.0, 128
    %4454 = vxpose.xlu0.b32.cont [14/16] 0.0, 128
    %4455 = vxpose.xlu0.b32.cont [15/16] 0.0, 128
    %4456 = vxpose.xlu0.b32.end [16/16] 0.0, 128
    %v4457 = vpop.trf.xlu0
    %v4458 = vpop.trf.xlu0
    %v4459 = vpop.trf.xlu0
    %v4460 = vpop.trf.xlu0
    %v4461 = vpop.trf.xlu0
    %v4462 = vpop.trf.xlu0
    %v4463 = vpop.trf.xlu0
    %v4464 = vpop.trf.xlu0
    %v4465 = vpop.trf.xlu0
    %v4466 = vpop.trf.xlu0
    %v4467 = vpop.trf.xlu0
    %v4468 = vpop.trf.xlu0
    %v4469 = vpop.trf.xlu0
    %v4470 = vpop.trf.xlu0
    %v4471 = vpop.trf.xlu0
    %v4472 = vpop.trf.xlu0
    %v4474 = vsel %vm1328, %v4457, 0
    %v4477 = vsel %vm1328, %v4458, 0
    %4479 = vmatprep.subr.mxu0 0.0
    %4480 = vmatpush1.msra.mxu0 0.0
    %4481 = vmatprep.subr.mxu0 0.0
    %4482 = vmatpush1.msra.mxu0 0.0
    %4483 = vmatprep.subr.mxu0 0.0
    %4484 = vmatpush1.msra.mxu0 0.0
    %4485 = vmatprep.subr.mxu0 0.0
    %4486 = vmatpush1.msra.mxu0 0.0
    %4487 = vmatprep.subr.mxu0 0.0
    %4488 = vmatpush1.msra.mxu0 0.0
    %4489 = vmatprep.subr.mxu0 0.0
    %4490 = vmatpush1.msra.mxu0 0.0
    %4491 = vmatprep.subr.mxu0 0.0
    %4492 = vmatpush1.msra.mxu0 0.0
    %4493 = vmatprep.subr.mxu0 0.0
    %4494 = vmatpush1.msra.mxu0 0.0
    %4495 = vmatprep.subr.mxu0 0.0
    %4496 = vmatpush1.msra.mxu0 0.0
    %4497 = vmatprep.subr.mxu0 0.0
    %4498 = vmatpush1.msra.mxu0 0.0
    %4499 = vmatprep.subr.mxu0 0.0
    %4500 = vmatpush1.msra.mxu0 0.0
    %4501 = vmatprep.subr.mxu0 0.0
    %4502 = vmatpush1.msra.mxu0 0.0
    %4503 = vmatprep.subr.mxu0 0.0
    %4504 = vmatpush1.msra.mxu0 0.0
    %4505 = vmatprep.subr.mxu0 0.0
    %4506 = vmatpush1.msra.mxu0 0.0
    %4507 = vmatprep.subr.mxu0 0.0
    %4508 = vmatpush1.msra.mxu0 0.0
    %4509 = vmatprep.subr.mxu0 0.0
    %4510 = vmatpush1.msra.mxu0 %v150
    %4511 = vmatprep.subr.mxu0 0.0
    %4512 = vmatpush2.msra.mxu0 0.0
    %4513 = vmatprep.subr.mxu0 0.0
    %4514 = vmatpush2.msra.mxu0 0.0
    %4515 = vmatprep.subr.mxu0 0.0
    %4516 = vmatpush2.msra.mxu0 0.0
    %4517 = vmatprep.subr.mxu0 0.0
    %4518 = vmatpush2.msra.mxu0 0.0
    %4519 = vmatprep.subr.mxu0 0.0
    %4520 = vmatpush2.msra.mxu0 0.0
    %4521 = vmatprep.subr.mxu0 0.0
    %4522 = vmatpush2.msra.mxu0 0.0
    %4523 = vmatprep.subr.mxu0 0.0
    %4524 = vmatpush2.msra.mxu0 0.0
    %4525 = vmatprep.subr.mxu0 0.0
    %4526 = vmatpush2.msra.mxu0 0.0
    %4527 = vmatprep.subr.mxu0 0.0
    %4528 = vmatpush2.msra.mxu0 0.0
    %4529 = vmatprep.subr.mxu0 0.0
    %4530 = vmatpush2.msra.mxu0 0.0
    %4531 = vmatprep.subr.mxu0 0.0
    %4532 = vmatpush2.msra.mxu0 0.0
    %4533 = vmatprep.subr.mxu0 0.0
    %4534 = vmatpush2.msra.mxu0 0.0
    %4535 = vmatprep.subr.mxu0 0.0
    %4536 = vmatpush2.msra.mxu0 0.0
    %4537 = vmatprep.subr.mxu0 0.0
    %4538 = vmatpush2.msra.mxu0 0.0
    %4539 = vmatprep.subr.mxu0 0.0
    %4540 = vmatpush2.msra.mxu0 0.0
    %4541 = vmatprep.subr.mxu0 0.0
    %4542 = vmatpush2.msra.mxu0 0.0
    %4543 = vmatprep.mubr.f32.mxu0 0.0
    %4544 = vmatmul.mubr.f32.gmra.mxu0 %v4474
    %v4545 = vpop.f32.mrf.mxu0
    %v4546 = vadd.f32 0.0, %v4545
    %v4547 = vpop.f32.mrf.mxu0
    %4548 = vmatprep.mubr.f32.mxu0 0.0
    %4549 = vmatmul.mubr.f32.gmra.mxu0 %v4477
    %v4550 = vpop.f32.mrf.mxu0
    %v4551 = vadd.f32 0.0, %v4550
    %v4552 = vpop.f32.mrf.mxu0
    %4553 = vdwg.mxu0
    %v4555 = vsel %vm591, %v3535, 0
    %v4558 = vsel %vm591, %v3537, 0
    %4560 = vmatprep.subr.mxu0 0.0
    %4561 = vmatpush1.msra.mxu0 0.0
    %4562 = vmatprep.subr.mxu0 0.0
    %4563 = vmatpush1.msra.mxu0 0.0
    %4564 = vmatprep.subr.mxu0 0.0
    %4565 = vmatpush1.msra.mxu0 0.0
    %4566 = vmatprep.subr.mxu0 0.0
    %4567 = vmatpush1.msra.mxu0 0.0
    %4568 = vmatprep.subr.mxu0 0.0
    %4569 = vmatpush1.msra.mxu0 0.0
    %4570 = vmatprep.subr.mxu0 0.0
    %4571 = vmatpush1.msra.mxu0 0.0
    %4572 = vmatprep.subr.mxu0 0.0
    %4573 = vmatpush1.msra.mxu0 0.0
    %4574 = vmatprep.subr.mxu0 0.0
    %4575 = vmatpush1.msra.mxu0 0.0
    %4576 = vmatprep.subr.mxu0 0.0
    %4577 = vmatpush1.msra.mxu0 0.0
    %4578 = vmatprep.subr.mxu0 0.0
    %4579 = vmatpush1.msra.mxu0 0.0
    %4580 = vmatprep.subr.mxu0 0.0
    %4581 = vmatpush1.msra.mxu0 0.0
    %4582 = vmatprep.subr.mxu0 0.0
    %4583 = vmatpush1.msra.mxu0 0.0
    %4584 = vmatprep.subr.mxu0 0.0
    %4585 = vmatpush1.msra.mxu0 0.0
    %4586 = vmatprep.subr.mxu0 0.0
    %4587 = vmatpush1.msra.mxu0 0.0
    %4588 = vmatprep.subr.mxu0 0.0
    %4589 = vmatpush1.msra.mxu0 %v4551
    %4590 = vmatprep.subr.mxu0 0.0
    %4591 = vmatpush1.msra.mxu0 %v4546
    %4592 = vmatprep.subr.mxu0 0.0
    %4593 = vmatpush2.msra.mxu0 0.0
    %4594 = vmatprep.subr.mxu0 0.0
    %4595 = vmatpush2.msra.mxu0 0.0
    %4596 = vmatprep.subr.mxu0 0.0
    %4597 = vmatpush2.msra.mxu0 0.0
    %4598 = vmatprep.subr.mxu0 0.0
    %4599 = vmatpush2.msra.mxu0 0.0
    %4600 = vmatprep.subr.mxu0 0.0
    %4601 = vmatpush2.msra.mxu0 0.0
    %4602 = vmatprep.subr.mxu0 0.0
    %4603 = vmatpush2.msra.mxu0 0.0
    %4604 = vmatprep.subr.mxu0 0.0
    %4605 = vmatpush2.msra.mxu0 0.0
    %4606 = vmatprep.subr.mxu0 0.0
    %4607 = vmatpush2.msra.mxu0 0.0
    %4608 = vmatprep.subr.mxu0 0.0
    %4609 = vmatpush2.msra.mxu0 0.0
    %4610 = vmatprep.subr.mxu0 0.0
    %4611 = vmatpush2.msra.mxu0 0.0
    %4612 = vmatprep.subr.mxu0 0.0
    %4613 = vmatpush2.msra.mxu0 0.0
    %4614 = vmatprep.subr.mxu0 0.0
    %4615 = vmatpush2.msra.mxu0 0.0
    %4616 = vmatprep.subr.mxu0 0.0
    %4617 = vmatpush2.msra.mxu0 0.0
    %4618 = vmatprep.subr.mxu0 0.0
    %4619 = vmatpush2.msra.mxu0 0.0
    %4620 = vmatprep.subr.mxu0 0.0
    %4621 = vmatpush2.msra.mxu0 0.0
    %4622 = vmatprep.subr.mxu0 0.0
    %4623 = vmatpush2.msra.mxu0 0.0
    %4624 = vmatprep.mubr.f32.mxu0 0.0
    %4625 = vmatmul.mubr.f32.gmra.mxu0 %v4555
    %v4626 = vpop.f32.mrf.mxu0
    %v4627 = vadd.f32 0.0, %v4626
    %v4628 = vpop.f32.mrf.mxu0
    %4629 = vmatprep.mubr.f32.mxu0 0.0
    %4630 = vmatmul.mubr.f32.gmra.mxu0 %v4558
    %v4631 = vpop.f32.mrf.mxu0
    %v4632 = vadd.f32 0.0, %v4631
    %v4633 = vpop.f32.mrf.mxu0
    %4634 = vdwg.mxu0
    %4635 = vmatprep.subr.mxu0 0.0
    %4636 = vmatpush1.msra.mxu0 0.0
    %4637 = vmatprep.subr.mxu0 0.0
    %4638 = vmatpush1.msra.mxu0 0.0
    %4639 = vmatprep.subr.mxu0 0.0
    %4640 = vmatpush1.msra.mxu0 0.0
    %4641 = vmatprep.subr.mxu0 0.0
    %4642 = vmatpush1.msra.mxu0 0.0
    %4643 = vmatprep.subr.mxu0 0.0
    %4644 = vmatpush1.msra.mxu0 0.0
    %4645 = vmatprep.subr.mxu0 0.0
    %4646 = vmatpush1.msra.mxu0 0.0
    %4647 = vmatprep.subr.mxu0 0.0
    %4648 = vmatpush1.msra.mxu0 0.0
    %4649 = vmatprep.subr.mxu0 0.0
    %4650 = vmatpush1.msra.mxu0 0.0
    %4651 = vmatprep.subr.mxu0 0.0
    %4652 = vmatpush1.msra.mxu0 0.0
    %4653 = vmatprep.subr.mxu0 0.0
    %4654 = vmatpush1.msra.mxu0 0.0
    %4655 = vmatprep.subr.mxu0 0.0
    %4656 = vmatpush1.msra.mxu0 0.0
    %4657 = vmatprep.subr.mxu0 0.0
    %4658 = vmatpush1.msra.mxu0 0.0
    %4659 = vmatprep.subr.mxu0 0.0
    %4660 = vmatpush1.msra.mxu0 0.0
    %4661 = vmatprep.subr.mxu0 0.0
    %4662 = vmatpush1.msra.mxu0 0.0
    %4663 = vmatprep.subr.mxu0 0.0
    %4664 = vmatpush1.msra.mxu0 %v149
    %4665 = vmatprep.subr.mxu0 0.0
    %4666 = vmatpush1.msra.mxu0 %v148
    %4667 = vmatprep.subr.mxu0 0.0
    %4668 = vmatpush2.msra.mxu0 0.0
    %4669 = vmatprep.subr.mxu0 0.0
    %4670 = vmatpush2.msra.mxu0 0.0
    %4671 = vmatprep.subr.mxu0 0.0
    %4672 = vmatpush2.msra.mxu0 0.0
    %4673 = vmatprep.subr.mxu0 0.0
    %4674 = vmatpush2.msra.mxu0 0.0
    %4675 = vmatprep.subr.mxu0 0.0
    %4676 = vmatpush2.msra.mxu0 0.0
    %4677 = vmatprep.subr.mxu0 0.0
    %4678 = vmatpush2.msra.mxu0 0.0
    %4679 = vmatprep.subr.mxu0 0.0
    %4680 = vmatpush2.msra.mxu0 0.0
    %4681 = vmatprep.subr.mxu0 0.0
    %4682 = vmatpush2.msra.mxu0 0.0
    %4683 = vmatprep.subr.mxu0 0.0
    %4684 = vmatpush2.msra.mxu0 0.0
    %4685 = vmatprep.subr.mxu0 0.0
    %4686 = vmatpush2.msra.mxu0 0.0
    %4687 = vmatprep.subr.mxu0 0.0
    %4688 = vmatpush2.msra.mxu0 0.0
    %4689 = vmatprep.subr.mxu0 0.0
    %4690 = vmatpush2.msra.mxu0 0.0
    %4691 = vmatprep.subr.mxu0 0.0
    %4692 = vmatpush2.msra.mxu0 0.0
    %4693 = vmatprep.subr.mxu0 0.0
    %4694 = vmatpush2.msra.mxu0 0.0
    %4695 = vmatprep.subr.mxu0 0.0
    %4696 = vmatpush2.msra.mxu0 0.0
    %4697 = vmatprep.subr.mxu0 0.0
    %4698 = vmatpush2.msra.mxu0 0.0
    %4699 = vmatprep.mubr.f32.mxu0 0.0
    %4700 = vmatmul.mubr.f32.gmra.mxu0 %v4555
    %v4701 = vpop.f32.mrf.mxu0
    %v4702 = vadd.f32 0.0, %v4701
    %v4703 = vpop.f32.mrf.mxu0
    %4704 = vmatprep.mubr.f32.mxu0 0.0
    %4705 = vmatmul.mubr.f32.gmra.mxu0 %v4558
    %v4706 = vpop.f32.mrf.mxu0
    %v4707 = vadd.f32 0.0, %v4706
    %v4708 = vpop.f32.mrf.mxu0
    %4709 = vdwg.mxu0
    %v4710 = vld [vmem:[%s2475] sm:$0x1]
    %v4712 = vlaneseq
    %v4713 = vshrl.u32 %v4712, 7
    %v4714 = vsub.s32 0, %v4713
    %v4715 = vrot.slane %v4710, %v4714
    %v4717 = vmul.f32 %v4715, %v4702
    %v4718 = vmul.f32 %v4715, %v4707
    %v4719 = vld [vmem:[%s2485] sm:$0x1]
    %v4721 = vlaneseq
    %v4722 = vshrl.u32 %v4721, 7
    %v4723 = vsub.s32 0, %v4722
    %v4724 = vrot.slane %v4719, %v4723
    %v4726 = vmul.f32 %v4724, %v4627
    %v4727 = vmul.f32 %v4724, %v4632
    %v4728 = vadd.f32 %v4717, %v4726
    %v4729 = vadd.f32 %v4718, %v4727
    %v4730 = vmul.f32 %v4728, %v151
    %v4731 = vmul.f32 %v4729, %v152
    %v4732 = vadd.f32 %v4730, %v4731
    %v4733 = vrot.slane %v4732, 4
    %v4734 = vadd.f32 %v4732, %v4733
    %v4735 = vrot.slane %v4734, 2
    %v4736 = vadd.f32 %v4734, %v4735
    %v4737 = vrot.slane %v4736, 1
    %v4738 = vadd.f32 %v4736, %v4737
    %v4739 = vld [vmem:[%s2506] sm:$0x1]
    %v4740 = vadd.f32 %v4738, %v4739
    %4741 = vst [vmem:[%s13 + $0x7] sm:$0x1] %v4740
    // Predicated region
    $region58: #{axial_attention_forward.1} parent=1 // pred_check
      _
    $region59: #{axial_attention_forward.1} parent=1 // pred_check_branch
      %4743 = sbr.rel (0) target = $region61
    $region60: #{axial_attention_forward.1} parent=1 // pred_region
      _
    $region61: #{axial_attention_forward.1} parent=1 // pred_fallthru
      _
    // Predicated region
    $region62: #{axial_attention_forward.1} parent=1 // pred_check
      _
    $region63: #{axial_attention_forward.1} parent=1 // pred_check_branch
      %4745 = sbr.rel (0) target = $region65
    $region64: #{axial_attention_forward.1} parent=1 // pred_region
      _
    $region65: #{axial_attention_forward.1} parent=1 // pred_fallthru
      _
    %4746 = vsyncpa [#allocation3], 1

</llo_original>
